<compile_context>
chip_gen: v5e
topology: v5e:2x2
jax: 0.10.0
libtpu: 0.0.40
codegen_flags: <defaults>
</compile_context>

<pallas_src>
import functools
import math

import jax
import jax.numpy as jnp
from jax.experimental import pallas as pl
from jax.experimental.pallas import tpu as pltpu


NHEAD = 8


def _round_up(x, m):
    return ((x + m - 1) // m) * m


# ----------------------------------------------------------------------------
# Kernel 1: fused backbone stand-in for ALL encoders (grid over nb_enc).
# Per step: (M, HW) @ (HW, nf_pad) -> ReLU -> (nf_pad, F) projection.
# ----------------------------------------------------------------------------

def _stem_kernel(x_ref, w1_ref, b1_ref, w2_ref, b2_ref, o_ref):
    x = x_ref[...].astype(jnp.bfloat16)                               # (M, HW)
    h = jnp.dot(x, w1_ref[0], preferred_element_type=jnp.float32) + b1_ref[0]
    h = jnp.maximum(h, 0.0)
    o_ref[0] = jnp.dot(h.astype(jnp.bfloat16), w2_ref[0],
                       preferred_element_type=jnp.float32) + b2_ref[0]


def stem_all(x_flat, sp):
    E, HW, nfp = sp["w1"].shape
    F = sp["w2"].shape[-1]
    M = x_flat.shape[0]
    return pl.pallas_call(
        _stem_kernel,
        out_shape=jax.ShapeDtypeStruct((E, M, F), jnp.float32),
        grid=(E,),
        in_specs=[
            pl.BlockSpec((M, HW), lambda e: (0, 0)),          # x shared by all encoders
            pl.BlockSpec((1, HW, nfp), lambda e: (e, 0, 0)),
            pl.BlockSpec((1, 1, nfp), lambda e: (e, 0, 0)),
            pl.BlockSpec((1, nfp, F), lambda e: (e, 0, 0)),
            pl.BlockSpec((1, 1, F), lambda e: (e, 0, 0)),
        ],
        out_specs=pl.BlockSpec((1, M, F), lambda e: (e, 0, 0)),
        compiler_params=pltpu.CompilerParams(dimension_semantics=("parallel",)),
    )(x_flat, sp["w1"], sp["b1"], sp["w2"], sp["b2"])


# ----------------------------------------------------------------------------
# Kernel 2: the FULL transformer stack in one call, grid=(E, L).
# The activation slab lives in a VMEM scratch across the (arbitrary) layer axis;
# per-layer weights are streamed (double-buffered) by the L grid coordinate.
# Attention: per-query-block online softmax over key positions, head-segment
# dot products via the precomputed seg / segt constant matrices.
# ----------------------------------------------------------------------------

def _layers_kernel(x_ref, seg_ref, segt_ref,
                   wq_ref, bq_ref, wk_ref, bk_ref, wv_ref, bv_ref,
                   wo_ref, bo_ref, g1_ref, be1_ref,
                   w1_ref, b1_ref, w2_ref, b2_ref, g2_ref, be2_ref,
                   o_ref, act_ref, *, S, NP, NH, eps):
    l = pl.program_id(1)

    @pl.when(l == 0)
    def _():
        act_ref[...] = x_ref[0]          # load the encoder's stacked encodings once

    F = act_ref.shape[-1]
    x = act_ref[...]                                                   # (M, F) f32
    xb = x.astype(jnp.bfloat16)

    q = jnp.dot(xb, wq_ref[0, 0], preferred_element_type=jnp.float32) + bq_ref[0, 0]
    k = jnp.dot(xb, wk_ref[0, 0], preferred_element_type=jnp.float32) + bk_ref[0, 0]
    v = jnp.dot(xb, wv_ref[0, 0], preferred_element_type=jnp.float32) + bv_ref[0, 0]

    seg = seg_ref[...]        # (F, NH), 1/sqrt(Dh) folded in
    segt = segt_ref[...]      # (NH, F), head -> lane-segment broadcast

    # Multi-head attention over the seq axis (S = batch B).  Rows are grouped
    # seq-major in blocks of NP (= Cs padded to 8 sublanes), so every slice is
    # sublane-tile aligned.  Streaming online softmax: live set is O(NP*F) per
    # query block, independent of S.  (S is small/static here; for large S this
    # Python loop should become a lax.fori_loop.)
    out_blocks = []
    for i in range(S):
        qi = q[i * NP:(i + 1) * NP, :]                                 # (NP, F)
        m = jnp.full((NP, NH), -1e30, jnp.float32)
        lsum = jnp.zeros((NP, NH), jnp.float32)
        acc = jnp.zeros((NP, F), jnp.float32)
        for j in range(S):
            kj = k[j * NP:(j + 1) * NP, :]
            vj = v[j * NP:(j + 1) * NP, :]
            s = jnp.dot(qi * kj, seg, preferred_element_type=jnp.float32)  # (NP, NH)
            m_new = jnp.maximum(m, s)
            alpha = jnp.exp(m - m_new)
            p = jnp.exp(s - m_new)
            lsum = alpha * lsum + p
            alpha_f = jnp.dot(alpha, segt, preferred_element_type=jnp.float32)
            p_f = jnp.dot(p, segt, preferred_element_type=jnp.float32)
            acc = alpha_f * acc + p_f * vj
            m = m_new
        inv = pl.reciprocal(lsum, approx=True)                         # (NP, NH)
        inv_f = jnp.dot(inv, segt, preferred_element_type=jnp.float32)
        out_blocks.append(acc * inv_f)
    attn = jnp.concatenate(out_blocks, axis=0)                         # (M, F)

    ao = jnp.dot(attn.astype(jnp.bfloat16), wo_ref[0, 0],
                 preferred_element_type=jnp.float32) + bo_ref[0, 0]

    # residual + LayerNorm 1 (one-pass moments, f32)
    h1 = x + ao
    mu = jnp.mean(h1, axis=-1, keepdims=True)
    var = jnp.mean(h1 * h1, axis=-1, keepdims=True) - mu * mu
    h1 = (h1 - mu) * jax.lax.rsqrt(var + eps) * g1_ref[0, 0] + be1_ref[0, 0]

    # feed-forward (Linear -> ReLU -> Linear)
    ff = jnp.dot(h1.astype(jnp.bfloat16), w1_ref[0, 0],
                 preferred_element_type=jnp.float32) + b1_ref[0, 0]
    ff = jnp.maximum(ff, 0.0)
    ff = jnp.dot(ff.astype(jnp.bfloat16), w2_ref[0, 0],
                 preferred_element_type=jnp.float32) + b2_ref[0, 0]

    # residual + LayerNorm 2
    h2 = h1 + ff
    mu2 = jnp.mean(h2, axis=-1, keepdims=True)
    var2 = jnp.mean(h2 * h2, axis=-1, keepdims=True) - mu2 * mu2
    h2 = (h2 - mu2) * jax.lax.rsqrt(var2 + eps) * g2_ref[0, 0] + be2_ref[0, 0]

    act_ref[...] = h2

    @pl.when(l == pl.num_programs(1) - 1)
    def _():
        o_ref[0] = h2


def transformer_layers(x, lp, seg, segt, *, S, NP, nhead=NHEAD, eps=1e-5):
    E, M, F = x.shape
    L = lp["wq"].shape[0]
    dff = lp["w1"].shape[-1]

    def wspec(*dims):
        nd = len(dims)
        return pl.BlockSpec((1, 1) + dims, lambda e, l, _nd=nd: (l, e) + (0,) * _nd)

    def cspec(shape):
        nd = len(shape)
        return pl.BlockSpec(shape, lambda e, l, _nd=nd: (0,) * _nd)

    kernel = functools.partial(_layers_kernel, S=S, NP=NP, NH=nhead, eps=eps)
    in_specs = [
        pl.BlockSpec((1, M, F), lambda e, l: (e, 0, 0)),    # stacked encodings
        cspec((F, nhead)), cspec((nhead, F)),               # seg, segt constants
        wspec(F, F), wspec(1, F),                           # wq, bq
        wspec(F, F), wspec(1, F),                           # wk, bk
        wspec(F, F), wspec(1, F),                           # wv, bv
        wspec(F, F), wspec(1, F),                           # wo, bo
        wspec(1, F), wspec(1, F),                           # ln1 gamma, beta
        wspec(F, dff), wspec(1, dff),                       # ffn w1, b1
        wspec(dff, F), wspec(1, F),                         # ffn w2, b2
        wspec(1, F), wspec(1, F),                           # ln2 gamma, beta
    ]
    return pl.pallas_call(
        kernel,
        out_shape=jax.ShapeDtypeStruct((E, M, F), jnp.float32),
        grid=(E, L),
        in_specs=in_specs,
        out_specs=pl.BlockSpec((1, M, F), lambda e, l: (e, 0, 0)),
        scratch_shapes=[pltpu.VMEM((M, F), jnp.float32)],   # layer-resident activations
        compiler_params=pltpu.CompilerParams(
            dimension_semantics=("parallel", "arbitrary"),
            # explicit scoped VMEM budget; re-derive for production F/dff on v7x
            vmem_limit_bytes=32 * 1024 * 1024),
    )(x, seg, segt, lp["wq"], lp["bq"], lp["wk"], lp["bk"], lp["wv"], lp["bv"],
      lp["wo"], lp["bo"], lp["g1"], lp["be1"],
      lp["w1"], lp["b1"], lp["w2"], lp["b2"], lp["g2"], lp["be2"])


# ----------------------------------------------------------------------------
# Kernel 3: masked series-max + all K classifier MLPs (lane-dense, batched) +
# gate mixing, grid over encoders ("parallel").  softmax(gate)/K is folded into
# the per-encoder mixing matrix `mix`; the final sum over encoders is one tiny
# XLA reduction in the wrapper.
# ----------------------------------------------------------------------------

def _classifier_kernel(t_ref, w1_ref, b1_ref, w2_ref, b2_ref, mix_ref, o_ref,
                       *, S, NP, Cs):
    t = t_ref[0]                                                       # (S*NP, F)
    F = t.shape[-1]
    row = jax.lax.broadcasted_iota(jnp.int32, (S * NP, F), 0)
    valid = (row % NP) < Cs                                            # mask padded series
    tmask = jnp.where(valid, t, -1e30)
    # torch.max(trans_out, dim=1): max over the Cs axis per batch row
    rows = [jnp.max(tmask[i * NP:(i + 1) * NP, :], axis=0, keepdims=True)
            for i in range(S)]
    enc = jnp.concatenate(rows, axis=0)                                # (B, F)

    # all K classifiers at once: (B, F) @ (F, K*Hc) -> ReLU -> block-diag (K*Hc, K*C)
    h = jnp.dot(enc.astype(jnp.bfloat16), w1_ref[...],
                preferred_element_type=jnp.float32) + b1_ref[...]
    h = jnp.maximum(h, 0.0)                 # dropout = identity (eval semantics)
    logits = jnp.dot(h.astype(jnp.bfloat16), w2_ref[...],
                     preferred_element_type=jnp.float32) + b2_ref[...]  # (B, K*C)
    # gate-weighted mix (softmax(gate)/K folded into mix)
    o_ref[0] = jnp.dot(logits, mix_ref[0], preferred_element_type=jnp.float32)


def classify_and_gate(trans, cp, mix, *, S, NP, Cs):
    E, M, F = trans.shape
    KH = cp["w1"].shape[-1]
    KC = cp["w2"].shape[-1]
    C = mix.shape[-1]
    kernel = functools.partial(_classifier_kernel, S=S, NP=NP, Cs=Cs)
    return pl.pallas_call(
        kernel,
        out_shape=jax.ShapeDtypeStruct((E, S, C), jnp.float32),
        grid=(E,),
        in_specs=[
            pl.BlockSpec((1, M, F), lambda e: (e, 0, 0)),
            pl.BlockSpec((F, KH), lambda e: (0, 0)),
            pl.BlockSpec((1, KH), lambda e: (0, 0)),
            pl.BlockSpec((KH, KC), lambda e: (0, 0)),
            pl.BlockSpec((1, KC), lambda e: (0, 0)),
            pl.BlockSpec((1, KC, C), lambda e: (e, 0, 0)),
        ],
        out_specs=pl.BlockSpec((1, S, C), lambda e: (e, 0, 0)),
        compiler_params=pltpu.CompilerParams(dimension_semantics=("parallel",)),
    )(trans, cp["w1"], cp["b1"], cp["w2"], cp["b2"], mix)


# ----------------------------------------------------------------------------
# Forward (jit glue: only the one-time input pad/reshape, gate softmax, and the
# tiny sum over encoders)
# ----------------------------------------------------------------------------

def _rem_forward(crop, params, mode):
    assert mode in ("inference", "train_gate")   # TODO(synk): 'train' host-RNG branch
    B, Cs, H, W = crop.shape
    NP = max(8, _round_up(Cs, 8))                # pad series axis to sublane tile
    x = crop.reshape(B, Cs, H * W)
    if NP > Cs:
        x = jnp.pad(x, ((0, 0), (0, NP - Cs), (0, 0)))
    x_flat = x.reshape(B * NP, H * W)            # rows: seq(B)-major, series(NP)-minor

    t = stem_all(x_flat, params["stems"])                              # (E, B*NP, F)
    t = transformer_layers(t, params["layers"], params["seg"], params["segt"],
                           S=B, NP=NP)                                 # (E, B*NP, F)

    gate_sm = jax.nn.softmax(params["gate_w"], axis=-1)                # (K, E)
    K, E = gate_sm.shape
    C = params["cls"]["b2"].shape[-1] // K
    eye = jnp.eye(C, dtype=jnp.float32)
    mix = jnp.einsum("ke,cd->ekcd", gate_sm / K, eye).reshape(E, K * C, C)

    per_enc = classify_and_gate(t, params["cls"], mix, S=B, NP=NP, Cs=Cs)  # (E, B, C)
    return jnp.sum(per_enc, axis=0)                                        # (B, C)


rem_forward = jax.jit(_rem_forward, static_argnames=("mode",))


# ----------------------------------------------------------------------------
# Deterministic, kernel-ready parameter construction: pre-transposed, padded to
# lane/sublane-friendly widths, stacked with (L, E) / (E,) leading axes.
# Matmul weights bf16, biases / LayerNorm params f32.
# ----------------------------------------------------------------------------

def init_params(key, *, backbone_num_features, F, n_classes, nb_classifiers,
                H, W, dff=2048, n_layers=2, nhead=NHEAD):
    E = len(backbone_num_features)
    HW = H * W
    nf_pad = _round_up(max(backbone_num_features), 128)

    def nrm(k, shape, scale=0.05):
        return scale * jax.random.normal(k, shape, dtype=jnp.float32)

    # --- stems (timm-backbone stand-ins), zero-padded to a common width -----
    w1l, b1l, w2l, b2l = [], [], [], []
    for nf in backbone_num_features:
        key, k1, k2, k3, k4 = jax.random.split(key, 5)
        w_stem = nrm(k1, (nf, 3 * HW))
        # fold the 1->3 channel broadcast: w @ [x;x;x] == (w0+w1+w2) @ x
        w_eff = (w_stem[:, :HW] + w_stem[:, HW:2 * HW] + w_stem[:, 2 * HW:]).T
        w1l.append(jnp.zeros((HW, nf_pad), jnp.float32).at[:, :nf].set(w_eff))
        b1l.append(jnp.zeros((1, nf_pad), jnp.float32).at[:, :nf].set(nrm(k2, (1, nf))))
        w2l.append(jnp.zeros((nf_pad, F), jnp.float32).at[:nf, :].set(nrm(k3, (F, nf)).T))
        b2l.append(nrm(k4, (1, F)))
    stems = {"w1": jnp.stack(w1l).astype(jnp.bfloat16),   # (E, HW, nf_pad)
             "b1": jnp.stack(b1l),                        # (E, 1, nf_pad)
             "w2": jnp.stack(w2l).astype(jnp.bfloat16),   # (E, nf_pad, F)
             "b2": jnp.stack(b2l)}                        # (E, 1, F)

    # --- transformer layers, stacked (L, E, ...) -----------------------------
    bf16_names = {"wq", "wk", "wv", "wo", "w1", "w2"}
    per_layer = []
    for _ in range(n_layers):
        per_enc = []
        for _ in range(E):
            key, *kl = jax.random.split(key, 9)
            in_w = nrm(kl[0], (3 * F, F))
            in_b = nrm(kl[1], (3 * F,))
            per_enc.append({
                "wq": in_w[:F].T, "wk": in_w[F:2 * F].T, "wv": in_w[2 * F:].T,
                "bq": in_b[:F].reshape(1, F),
                "bk": in_b[F:2 * F].reshape(1, F),
                "bv": in_b[2 * F:].reshape(1, F),
                "wo": nrm(kl[2], (F, F)).T, "bo": nrm(kl[3], (F,)).reshape(1, F),
                "g1": jnp.ones((1, F), jnp.float32),
                "be1": jnp.zeros((1, F), jnp.float32),
                "w1": nrm(kl[4], (dff, F)).T, "b1": nrm(kl[5], (dff,)).reshape(1, dff),
                "w2": nrm(kl[6], (F, dff)).T, "b2": nrm(kl[7], (F,)).reshape(1, F),
                "g2": jnp.ones((1, F), jnp.float32),
                "be2": jnp.zeros((1, F), jnp.float32),
            })
        per_layer.append(per_enc)
    layers = {}
    for name in per_layer[0][0]:
        arr = jnp.stack([jnp.stack([per_layer[l][e][name] for e in range(E)], axis=0)
                         for l in range(n_layers)], axis=0)            # (L, E, ...)
        if name in bf16_names:
            arr = arr.astype(jnp.bfloat16)
        layers[name] = arr

    # --- classifiers: concat first layers, block-diagonal second layer -------
    Hc = F // 2
    K = nb_classifiers
    w1_list, b1_list, w2_list, b2_list = [], [], [], []
    for _ in range(K):
        key, k1, k2, k3, k4 = jax.random.split(key, 5)
        w1_list.append(nrm(k1, (Hc, F)).T)          # (F, Hc)
        b1_list.append(nrm(k2, (1, Hc)))
        w2_list.append(nrm(k3, (n_classes, Hc)).T)  # (Hc, C)
        b2_list.append(nrm(k4, (1, n_classes)))
    w1cat = jnp.concatenate(w1_list, axis=1)                           # (F, K*Hc)
    b1cat = jnp.concatenate(b1_list, axis=1)                           # (1, K*Hc)
    w2blk = jnp.zeros((K * Hc, K * n_classes), jnp.float32)
    for k in range(K):
        w2blk = w2blk.at[k * Hc:(k + 1) * Hc,
                         k * n_classes:(k + 1) * n_classes].set(w2_list[k])
    b2cat = jnp.concatenate(b2_list, axis=1)                           # (1, K*C)
    cls = {"w1": w1cat.astype(jnp.bfloat16), "b1": b1cat,
           "w2": w2blk.astype(jnp.bfloat16), "b2": b2cat}

    # --- precomputed head-segment constants (scale folded into seg) ----------
    Dh = F // nhead
    f_idx = jnp.arange(F)[:, None] // Dh
    h_idx = jnp.arange(nhead)[None, :]
    seg = (f_idx == h_idx).astype(jnp.float32) / math.sqrt(Dh)         # (F, NH)
    segt = (jnp.arange(nhead)[:, None] == (jnp.arange(F)[None, :] // Dh)
            ).astype(jnp.float32)                                      # (NH, F)

    # nn.Parameter(torch.ones(nb_classifiers, nb_encoders))
    gate_w = jnp.ones((K, E), jnp.float32)

    return {"stems": stems, "layers": layers, "cls": cls,
            "gate_w": gate_w, "seg": seg, "segt": segt}


# ----------------------------------------------------------------------------
if __name__ == "__main__":
    B, Cs, H, W = 2, 3, 8, 8              # crop: (batch, series, H, W)
    F = 128                               # unification_features_size (8 heads x 16)
    n_classes = 4
    nb_classifiers = 2
    backbone_num_features = [32, 48]      # stand-in for two timm backbones

    key = jax.random.PRNGKey(0)
    k_x, k_p = jax.random.split(key)
    crop = jax.random.normal(k_x, (B, Cs, H, W), dtype=jnp.float32)
    params = init_params(k_p, backbone_num_features=backbone_num_features,
                         F=F, n_classes=n_classes,
                         nb_classifiers=nb_classifiers, H=H, W=W,
                         dff=2048, n_layers=2)

    out = rem_forward(crop, params, mode="inference")
    out = jax.block_until_ready(out)
    assert out.shape == (B, n_classes), out.shape
    assert bool(jnp.all(jnp.isfinite(out)))
    print("KERNEL_OK")
</pallas_src>

<mosaic_0001>
module attributes {stable_mosaic.version = 11 : i64} {
  func.func @_stem_kernel(%arg0: i32, %arg1: memref<16x64xf32, #tpu.memory_space<vmem>>, %arg2: memref<1x64x128xbf16, #tpu.memory_space<vmem>>, %arg3: memref<1x1x128xf32, #tpu.memory_space<vmem>>, %arg4: memref<1x128x128xbf16, #tpu.memory_space<vmem>>, %arg5: memref<1x1x128xf32, #tpu.memory_space<vmem>>, %arg6: memref<1x16x128xf32, #tpu.memory_space<vmem>>) attributes {dimension_semantics = [#tpu.dimension_semantics<parallel>], iteration_bounds = array<i64: 2>, scalar_prefetch = 0 : i64, scratch_operands = 0 : i64, tpu.core_type = #tpu.core_type<tc>, window_params = [{pipeline_mode = #tpu.pipeline_mode<synchronous>, transform_indices = @transform_0, window_bounds = array<i64: 16, 64>}, {transform_indices = @transform_1, window_bounds = array<i64: 1, 64, 128>}, {transform_indices = @transform_2, window_bounds = array<i64: 1, 1, 128>}, {transform_indices = @transform_3, window_bounds = array<i64: 1, 128, 128>}, {transform_indices = @transform_4, window_bounds = array<i64: 1, 1, 128>}, {transform_indices = @transform_5, window_bounds = array<i64: 1, 16, 128>}]} {
    %c0 = arith.constant 0 : index
    %c0_0 = arith.constant 0 : index
    %0 = vector.load %arg1[%c0, %c0_0] : memref<16x64xf32, #tpu.memory_space<vmem>>, vector<16x64xf32>
    %1 = arith.truncf %0 : vector<16x64xf32> to vector<16x64xbf16>
    %c0_1 = arith.constant 0 : index
    %c0_2 = arith.constant 0 : index
    %c0_3 = arith.constant 0 : index
    %2 = vector.load %arg2[%c0_1, %c0_2, %c0_3] : memref<1x64x128xbf16, #tpu.memory_space<vmem>>, vector<1x64x128xbf16>
    %3 = vector.shape_cast %2 : vector<1x64x128xbf16> to vector<64x128xbf16>
    %cst = arith.constant dense<0.000000e+00> : vector<16x128xf32>
    %4 = tpu.matmul %1, %3, %cst {dimension_numbers = #tpu.dot_dimension_numbers<[1], [0], [0], [1], [0, 0, 1, 1], [], []>} : vector<16x64xbf16>, vector<64x128xbf16>, vector<16x128xf32> -> vector<16x128xf32>
    %c0_4 = arith.constant 0 : index
    %c0_5 = arith.constant 0 : index
    %c0_6 = arith.constant 0 : index
    %5 = vector.load %arg3[%c0_4, %c0_5, %c0_6] : memref<1x1x128xf32, #tpu.memory_space<vmem>>, vector<1x1x128xf32>
    %6 = vector.shape_cast %5 : vector<1x1x128xf32> to vector<1x128xf32>
    %7 = vector.broadcast %6 : vector<1x128xf32> to vector<16x128xf32>
    %8 = arith.addf %4, %7 : vector<16x128xf32>
    %cst_7 = arith.constant 0.000000e+00 : f32
    %9 = vector.broadcast %cst_7 : f32 to vector<16x128xf32>
    %10 = arith.maximumf %8, %9 : vector<16x128xf32>
    %11 = arith.truncf %10 : vector<16x128xf32> to vector<16x128xbf16>
    %c0_8 = arith.constant 0 : index
    %c0_9 = arith.constant 0 : index
    %c0_10 = arith.constant 0 : index
    %12 = vector.load %arg4[%c0_8, %c0_9, %c0_10] : memref<1x128x128xbf16, #tpu.memory_space<vmem>>, vector<1x128x128xbf16>
    %13 = vector.shape_cast %12 : vector<1x128x128xbf16> to vector<128x128xbf16>
    %cst_11 = arith.constant dense<0.000000e+00> : vector<16x128xf32>
    %14 = tpu.matmul %11, %13, %cst_11 {dimension_numbers = #tpu.dot_dimension_numbers<[1], [0], [0], [1], [0, 0, 1, 1], [], []>} : vector<16x128xbf16>, vector<128x128xbf16>, vector<16x128xf32> -> vector<16x128xf32>
    %c0_12 = arith.constant 0 : index
    %c0_13 = arith.constant 0 : index
    %c0_14 = arith.constant 0 : index
    %15 = vector.load %arg5[%c0_12, %c0_13, %c0_14] : memref<1x1x128xf32, #tpu.memory_space<vmem>>, vector<1x1x128xf32>
    %16 = vector.shape_cast %15 : vector<1x1x128xf32> to vector<1x128xf32>
    %17 = vector.broadcast %16 : vector<1x128xf32> to vector<16x128xf32>
    %18 = arith.addf %14, %17 : vector<16x128xf32>
    %c0_15 = arith.constant 0 : index
    %c0_16 = arith.constant 0 : index
    %c0_17 = arith.constant 0 : index
    %19 = vector.load %arg6[%c0_15, %c0_16, %c0_17] : memref<1x16x128xf32, #tpu.memory_space<vmem>>, vector<1x16x128xf32>
    %20 = vector.shape_cast %19 : vector<1x16x128xf32> to vector<16x128xf32>
    %21 = vector.shape_cast %18 : vector<16x128xf32> to vector<1x16x128xf32>
    tpu.vector_store %arg6[%c0_15, %c0_16, %c0_17], %21 {strides = array<i32>} : memref<1x16x128xf32, #tpu.memory_space<vmem>>, vector<1x16x128xf32>,
    return
  }
  func.func @transform_0(%arg0: i32) -> (i32, i32) {
    %c0_i32 = arith.constant 0 : i32
    %c0_i32_0 = arith.constant 0 : i32
    %c0_i32_1 = arith.constant 0 : i32
    return %c0_i32, %c0_i32_0 : i32, i32
  }
  func.func @transform_1(%arg0: i32) -> (i32, i32, i32) {
    %c0_i32 = arith.constant 0 : i32
    %c0_i32_0 = arith.constant 0 : i32
    %c0_i32_1 = arith.constant 0 : i32
    return %arg0, %c0_i32, %c0_i32_0 : i32, i32, i32
  }
  func.func @transform_2(%arg0: i32) -> (i32, i32, i32) {
    %c0_i32 = arith.constant 0 : i32
    %c0_i32_0 = arith.constant 0 : i32
    %c0_i32_1 = arith.constant 0 : i32
    return %arg0, %c0_i32, %c0_i32_0 : i32, i32, i32
  }
  func.func @transform_3(%arg0: i32) -> (i32, i32, i32) {
    %c0_i32 = arith.constant 0 : i32
    %c0_i32_0 = arith.constant 0 : i32
    %c0_i32_1 = arith.constant 0 : i32
    return %arg0, %c0_i32, %c0_i32_0 : i32, i32, i32
  }
  func.func @transform_4(%arg0: i32) -> (i32, i32, i32) {
    %c0_i32 = arith.constant 0 : i32
    %c0_i32_0 = arith.constant 0 : i32
    %c0_i32_1 = arith.constant 0 : i32
    return %arg0, %c0_i32, %c0_i32_0 : i32, i32, i32
  }
  func.func @transform_5(%arg0: i32) -> (i32, i32, i32) {
    %c0_i32 = arith.constant 0 : i32
    %c0_i32_0 = arith.constant 0 : i32
    %c0_i32_1 = arith.constant 0 : i32
    return %arg0, %c0_i32, %c0_i32_0 : i32, i32, i32
  }
}

module attributes {stable_mosaic.version = 11 : i64} {
  func.func @_layers_kernel(%arg0: i32, %arg1: i32, %arg2: memref<1x16x128xf32, #tpu.memory_space<vmem>>, %arg3: memref<128x8xf32, #tpu.memory_space<vmem>>, %arg4: memref<8x128xf32, #tpu.memory_space<vmem>>, %arg5: memref<1x1x128x128xbf16, #tpu.memory_space<vmem>>, %arg6: memref<1x1x1x128xf32, #tpu.memory_space<vmem>>, %arg7: memref<1x1x128x128xbf16, #tpu.memory_space<vmem>>, %arg8: memref<1x1x1x128xf32, #tpu.memory_space<vmem>>, %arg9: memref<1x1x128x128xbf16, #tpu.memory_space<vmem>>, %arg10: memref<1x1x1x128xf32, #tpu.memory_space<vmem>>, %arg11: memref<1x1x128x128xbf16, #tpu.memory_space<vmem>>, %arg12: memref<1x1x1x128xf32, #tpu.memory_space<vmem>>, %arg13: memref<1x1x1x128xf32, #tpu.memory_space<vmem>>, %arg14: memref<1x1x1x128xf32, #tpu.memory_space<vmem>>, %arg15: memref<1x1x128x2048xbf16, #tpu.memory_space<vmem>>, %arg16: memref<1x1x1x2048xf32, #tpu.memory_space<vmem>>, %arg17: memref<1x1x2048x128xbf16, #tpu.memory_space<vmem>>, %arg18: memref<1x1x1x128xf32, #tpu.memory_space<vmem>>, %arg19: memref<1x1x1x128xf32, #tpu.memory_space<vmem>>, %arg20: memref<1x1x1x128xf32, #tpu.memory_space<vmem>>, %arg21: memref<1x16x128xf32, #tpu.memory_space<vmem>>, %arg22: memref<16x128xf32, #tpu.memory_space<vmem>>) attributes {dimension_semantics = [#tpu.dimension_semantics<parallel>, #tpu.dimension_semantics<arbitrary>], iteration_bounds = array<i64: 2, 2>, scalar_prefetch = 0 : i64, scratch_operands = 1 : i64, tpu.core_type = #tpu.core_type<tc>, window_params = [{transform_indices = @transform_0, window_bounds = array<i64: 1, 16, 128>}, {pipeline_mode = #tpu.pipeline_mode<synchronous>, transform_indices = @transform_1, window_bounds = array<i64: 128, 8>}, {pipeline_mode = #tpu.pipeline_mode<synchronous>, transform_indices = @transform_2, window_bounds = array<i64: 8, 128>}, {transform_indices = @transform_3, window_bounds = array<i64: 1, 1, 128, 128>}, {transform_indices = @transform_4, window_bounds = array<i64: 1, 1, 1, 128>}, {transform_indices = @transform_5, window_bounds = array<i64: 1, 1, 128, 128>}, {transform_indices = @transform_6, window_bounds = array<i64: 1, 1, 1, 128>}, {transform_indices = @transform_7, window_bounds = array<i64: 1, 1, 128, 128>}, {transform_indices = @transform_8, window_bounds = array<i64: 1, 1, 1, 128>}, {transform_indices = @transform_9, window_bounds = array<i64: 1, 1, 128, 128>}, {transform_indices = @transform_10, window_bounds = array<i64: 1, 1, 1, 128>}, {transform_indices = @transform_11, window_bounds = array<i64: 1, 1, 1, 128>}, {transform_indices = @transform_12, window_bounds = array<i64: 1, 1, 1, 128>}, {transform_indices = @transform_13, window_bounds = array<i64: 1, 1, 128, 2048>}, {transform_indices = @transform_14, window_bounds = array<i64: 1, 1, 1, 2048>}, {transform_indices = @transform_15, window_bounds = array<i64: 1, 1, 2048, 128>}, {transform_indices = @transform_16, window_bounds = array<i64: 1, 1, 1, 128>}, {transform_indices = @transform_17, window_bounds = array<i64: 1, 1, 1, 128>}, {transform_indices = @transform_18, window_bounds = array<i64: 1, 1, 1, 128>}, {transform_indices = @transform_19, window_bounds = array<i64: 1, 16, 128>}]} {
    %c0_i32 = arith.constant 0 : i32
    %0 = arith.cmpi eq, %arg1, %c0_i32 : i32
    %1 = arith.extui %0 : i1 to i32
    %c0_i32_0 = arith.constant 0 : i32
    %2 = arith.cmpi ne, %1, %c0_i32_0 : i32
    scf.if %2 {
      %c0_109 = arith.constant 0 : index
      %c0_110 = arith.constant 0 : index
      %c0_111 = arith.constant 0 : index
      %191 = vector.load %arg2[%c0_109, %c0_110, %c0_111] : memref<1x16x128xf32, #tpu.memory_space<vmem>>, vector<1x16x128xf32>
      %192 = vector.shape_cast %191 : vector<1x16x128xf32> to vector<16x128xf32>
      %c0_112 = arith.constant 0 : index
      %c0_113 = arith.constant 0 : index
      %193 = vector.load %arg22[%c0_112, %c0_113] : memref<16x128xf32, #tpu.memory_space<vmem>>, vector<16x128xf32>
      tpu.vector_store %arg22[%c0_112, %c0_113], %192 {strides = array<i32>} : memref<16x128xf32, #tpu.memory_space<vmem>>, vector<16x128xf32>,
    } else {
    }
    %c0 = arith.constant 0 : index
    %c0_1 = arith.constant 0 : index
    %3 = vector.load %arg22[%c0, %c0_1] : memref<16x128xf32, #tpu.memory_space<vmem>>, vector<16x128xf32>
    %4 = arith.truncf %3 : vector<16x128xf32> to vector<16x128xbf16>
    %c0_2 = arith.constant 0 : index
    %c0_3 = arith.constant 0 : index
    %c0_4 = arith.constant 0 : index
    %c0_5 = arith.constant 0 : index
    %5 = vector.load %arg5[%c0_2, %c0_3, %c0_4, %c0_5] : memref<1x1x128x128xbf16, #tpu.memory_space<vmem>>, vector<1x1x128x128xbf16>
    %6 = vector.shape_cast %5 : vector<1x1x128x128xbf16> to vector<128x128xbf16>
    %cst = arith.constant dense<0.000000e+00> : vector<16x128xf32>
    %7 = tpu.matmul %4, %6, %cst {dimension_numbers = #tpu.dot_dimension_numbers<[1], [0], [0], [1], [0, 0, 1, 1], [], []>} : vector<16x128xbf16>, vector<128x128xbf16>, vector<16x128xf32> -> vector<16x128xf32>
    %c0_6 = arith.constant 0 : index
    %c0_7 = arith.constant 0 : index
    %c0_8 = arith.constant 0 : index
    %c0_9 = arith.constant 0 : index
    %8 = vector.load %arg6[%c0_6, %c0_7, %c0_8, %c0_9] : memref<1x1x1x128xf32, #tpu.memory_space<vmem>>, vector<1x1x1x128xf32>
    %9 = vector.shape_cast %8 : vector<1x1x1x128xf32> to vector<1x128xf32>
    %10 = vector.broadcast %9 : vector<1x128xf32> to vector<16x128xf32>
    %11 = arith.addf %7, %10 : vector<16x128xf32>
    %c0_10 = arith.constant 0 : index
    %c0_11 = arith.constant 0 : index
    %c0_12 = arith.constant 0 : index
    %c0_13 = arith.constant 0 : index
    %12 = vector.load %arg7[%c0_10, %c0_11, %c0_12, %c0_13] : memref<1x1x128x128xbf16, #tpu.memory_space<vmem>>, vector<1x1x128x128xbf16>
    %13 = vector.shape_cast %12 : vector<1x1x128x128xbf16> to vector<128x128xbf16>
    %cst_14 = arith.constant dense<0.000000e+00> : vector<16x128xf32>
    %14 = tpu.matmul %4, %13, %cst_14 {dimension_numbers = #tpu.dot_dimension_numbers<[1], [0], [0], [1], [0, 0, 1, 1], [], []>} : vector<16x128xbf16>, vector<128x128xbf16>, vector<16x128xf32> -> vector<16x128xf32>
    %c0_15 = arith.constant 0 : index
    %c0_16 = arith.constant 0 : index
    %c0_17 = arith.constant 0 : index
    %c0_18 = arith.constant 0 : index
    %15 = vector.load %arg8[%c0_15, %c0_16, %c0_17, %c0_18] : memref<1x1x1x128xf32, #tpu.memory_space<vmem>>, vector<1x1x1x128xf32>
    %16 = vector.shape_cast %15 : vector<1x1x1x128xf32> to vector<1x128xf32>
    %17 = vector.broadcast %16 : vector<1x128xf32> to vector<16x128xf32>
    %18 = arith.addf %14, %17 : vector<16x128xf32>
    %c0_19 = arith.constant 0 : index
    %c0_20 = arith.constant 0 : index
    %c0_21 = arith.constant 0 : index
    %c0_22 = arith.constant 0 : index
    %19 = vector.load %arg9[%c0_19, %c0_20, %c0_21, %c0_22] : memref<1x1x128x128xbf16, #tpu.memory_space<vmem>>, vector<1x1x128x128xbf16>
    %20 = vector.shape_cast %19 : vector<1x1x128x128xbf16> to vector<128x128xbf16>
    %cst_23 = arith.constant dense<0.000000e+00> : vector<16x128xf32>
    %21 = tpu.matmul %4, %20, %cst_23 {dimension_numbers = #tpu.dot_dimension_numbers<[1], [0], [0], [1], [0, 0, 1, 1], [], []>} : vector<16x128xbf16>, vector<128x128xbf16>, vector<16x128xf32> -> vector<16x128xf32>
    %c0_24 = arith.constant 0 : index
    %c0_25 = arith.constant 0 : index
    %c0_26 = arith.constant 0 : index
    %c0_27 = arith.constant 0 : index
    %22 = vector.load %arg10[%c0_24, %c0_25, %c0_26, %c0_27] : memref<1x1x1x128xf32, #tpu.memory_space<vmem>>, vector<1x1x1x128xf32>
    %23 = vector.shape_cast %22 : vector<1x1x1x128xf32> to vector<1x128xf32>
    %24 = vector.broadcast %23 : vector<1x128xf32> to vector<16x128xf32>
    %25 = arith.addf %21, %24 : vector<16x128xf32>
    %c0_28 = arith.constant 0 : index
    %c0_29 = arith.constant 0 : index
    %26 = vector.load %arg3[%c0_28, %c0_29] : memref<128x8xf32, #tpu.memory_space<vmem>>, vector<128x8xf32>
    %c0_30 = arith.constant 0 : index
    %c0_31 = arith.constant 0 : index
    %27 = vector.load %arg4[%c0_30, %c0_31] : memref<8x128xf32, #tpu.memory_space<vmem>>, vector<8x128xf32>
    %28 = vector.extract_strided_slice %11 {offsets = [0, 0], sizes = [8, 128], strides = [1, 1]} : vector<16x128xf32> to vector<8x128xf32>
    %cst_32 = arith.constant -1.000000e+30 : f32
    %29 = vector.broadcast %cst_32 : f32 to vector<8x8xf32>
    %cst_33 = arith.constant 0.000000e+00 : f32
    %30 = vector.broadcast %cst_33 : f32 to vector<8x8xf32>
    %cst_34 = arith.constant 0.000000e+00 : f32
    %31 = vector.broadcast %cst_34 : f32 to vector<8x128xf32>
    %32 = vector.extract_strided_slice %18 {offsets = [0, 0], sizes = [8, 128], strides = [1, 1]} : vector<16x128xf32> to vector<8x128xf32>
    %33 = vector.extract_strided_slice %25 {offsets = [0, 0], sizes = [8, 128], strides = [1, 1]} : vector<16x128xf32> to vector<8x128xf32>
    %34 = arith.mulf %28, %32 : vector<8x128xf32>
    %cst_35 = arith.constant dense<0.000000e+00> : vector<8x8xf32>
    %35 = tpu.matmul %34, %26, %cst_35 {dimension_numbers = #tpu.dot_dimension_numbers<[1], [0], [0], [1], [0, 0, 1, 1], [], []>} : vector<8x128xf32>, vector<128x8xf32>, vector<8x8xf32> -> vector<8x8xf32>
    %36 = arith.maximumf %29, %35 : vector<8x8xf32>
    %37 = arith.subf %29, %36 : vector<8x8xf32>
    %38 = math.exp %37 : vector<8x8xf32>
    %39 = arith.subf %35, %36 : vector<8x8xf32>
    %40 = math.exp %39 : vector<8x8xf32>
    %41 = arith.mulf %38, %30 : vector<8x8xf32>
    %42 = arith.addf %41, %40 : vector<8x8xf32>
    %cst_36 = arith.constant dense<0.000000e+00> : vector<8x128xf32>
    %43 = tpu.matmul %38, %27, %cst_36 {dimension_numbers = #tpu.dot_dimension_numbers<[1], [0], [0], [1], [0, 0, 1, 1], [], []>} : vector<8x8xf32>, vector<8x128xf32>, vector<8x128xf32> -> vector<8x128xf32>
    %cst_37 = arith.constant dense<0.000000e+00> : vector<8x128xf32>
    %44 = tpu.matmul %40, %27, %cst_37 {dimension_numbers = #tpu.dot_dimension_numbers<[1], [0], [0], [1], [0, 0, 1, 1], [], []>} : vector<8x8xf32>, vector<8x128xf32>, vector<8x128xf32> -> vector<8x128xf32>
    %45 = arith.mulf %43, %31 : vector<8x128xf32>
    %46 = arith.mulf %44, %33 : vector<8x128xf32>
    %47 = arith.addf %45, %46 : vector<8x128xf32>
    %48 = vector.extract_strided_slice %18 {offsets = [8, 0], sizes = [8, 128], strides = [1, 1]} : vector<16x128xf32> to vector<8x128xf32>
    %49 = vector.extract_strided_slice %25 {offsets = [8, 0], sizes = [8, 128], strides = [1, 1]} : vector<16x128xf32> to vector<8x128xf32>
    %50 = arith.mulf %28, %48 : vector<8x128xf32>
    %cst_38 = arith.constant dense<0.000000e+00> : vector<8x8xf32>
    %51 = tpu.matmul %50, %26, %cst_38 {dimension_numbers = #tpu.dot_dimension_numbers<[1], [0], [0], [1], [0, 0, 1, 1], [], []>} : vector<8x128xf32>, vector<128x8xf32>, vector<8x8xf32> -> vector<8x8xf32>
    %52 = arith.maximumf %36, %51 : vector<8x8xf32>
    %53 = arith.subf %36, %52 : vector<8x8xf32>
    %54 = math.exp %53 : vector<8x8xf32>
    %55 = arith.subf %51, %52 : vector<8x8xf32>
    %56 = math.exp %55 : vector<8x8xf32>
    %57 = arith.mulf %54, %42 : vector<8x8xf32>
    %58 = arith.addf %57, %56 : vector<8x8xf32>
    %cst_39 = arith.constant dense<0.000000e+00> : vector<8x128xf32>
    %59 = tpu.matmul %54, %27, %cst_39 {dimension_numbers = #tpu.dot_dimension_numbers<[1], [0], [0], [1], [0, 0, 1, 1], [], []>} : vector<8x8xf32>, vector<8x128xf32>, vector<8x128xf32> -> vector<8x128xf32>
    %cst_40 = arith.constant dense<0.000000e+00> : vector<8x128xf32>
    %60 = tpu.matmul %56, %27, %cst_40 {dimension_numbers = #tpu.dot_dimension_numbers<[1], [0], [0], [1], [0, 0, 1, 1], [], []>} : vector<8x8xf32>, vector<8x128xf32>, vector<8x128xf32> -> vector<8x128xf32>
    %61 = arith.mulf %59, %47 : vector<8x128xf32>
    %62 = arith.mulf %60, %49 : vector<8x128xf32>
    %63 = arith.addf %61, %62 : vector<8x128xf32>
    %64 = tpu.reciprocal %58 {approx = true} : vector<8x8xf32> -> vector<8x8xf32>
    %cst_41 = arith.constant dense<0.000000e+00> : vector<8x128xf32>
    %65 = tpu.matmul %64, %27, %cst_41 {dimension_numbers = #tpu.dot_dimension_numbers<[1], [0], [0], [1], [0, 0, 1, 1], [], []>} : vector<8x8xf32>, vector<8x128xf32>, vector<8x128xf32> -> vector<8x128xf32>
    %66 = arith.mulf %63, %65 : vector<8x128xf32>
    %67 = vector.extract_strided_slice %11 {offsets = [8, 0], sizes = [8, 128], strides = [1, 1]} : vector<16x128xf32> to vector<8x128xf32>
    %cst_42 = arith.constant -1.000000e+30 : f32
    %68 = vector.broadcast %cst_42 : f32 to vector<8x8xf32>
    %cst_43 = arith.constant 0.000000e+00 : f32
    %69 = vector.broadcast %cst_43 : f32 to vector<8x8xf32>
    %cst_44 = arith.constant 0.000000e+00 : f32
    %70 = vector.broadcast %cst_44 : f32 to vector<8x128xf32>
    %71 = vector.extract_strided_slice %18 {offsets = [0, 0], sizes = [8, 128], strides = [1, 1]} : vector<16x128xf32> to vector<8x128xf32>
    %72 = vector.extract_strided_slice %25 {offsets = [0, 0], sizes = [8, 128], strides = [1, 1]} : vector<16x128xf32> to vector<8x128xf32>
    %73 = arith.mulf %67, %71 : vector<8x128xf32>
    %cst_45 = arith.constant dense<0.000000e+00> : vector<8x8xf32>
    %74 = tpu.matmul %73, %26, %cst_45 {dimension_numbers = #tpu.dot_dimension_numbers<[1], [0], [0], [1], [0, 0, 1, 1], [], []>} : vector<8x128xf32>, vector<128x8xf32>, vector<8x8xf32> -> vector<8x8xf32>
    %75 = arith.maximumf %68, %74 : vector<8x8xf32>
    %76 = arith.subf %68, %75 : vector<8x8xf32>
    %77 = math.exp %76 : vector<8x8xf32>
    %78 = arith.subf %74, %75 : vector<8x8xf32>
    %79 = math.exp %78 : vector<8x8xf32>
    %80 = arith.mulf %77, %69 : vector<8x8xf32>
    %81 = arith.addf %80, %79 : vector<8x8xf32>
    %cst_46 = arith.constant dense<0.000000e+00> : vector<8x128xf32>
    %82 = tpu.matmul %77, %27, %cst_46 {dimension_numbers = #tpu.dot_dimension_numbers<[1], [0], [0], [1], [0, 0, 1, 1], [], []>} : vector<8x8xf32>, vector<8x128xf32>, vector<8x128xf32> -> vector<8x128xf32>
    %cst_47 = arith.constant dense<0.000000e+00> : vector<8x128xf32>
    %83 = tpu.matmul %79, %27, %cst_47 {dimension_numbers = #tpu.dot_dimension_numbers<[1], [0], [0], [1], [0, 0, 1, 1], [], []>} : vector<8x8xf32>, vector<8x128xf32>, vector<8x128xf32> -> vector<8x128xf32>
    %84 = arith.mulf %82, %70 : vector<8x128xf32>
    %85 = arith.mulf %83, %72 : vector<8x128xf32>
    %86 = arith.addf %84, %85 : vector<8x128xf32>
    %87 = vector.extract_strided_slice %18 {offsets = [8, 0], sizes = [8, 128], strides = [1, 1]} : vector<16x128xf32> to vector<8x128xf32>
    %88 = vector.extract_strided_slice %25 {offsets = [8, 0], sizes = [8, 128], strides = [1, 1]} : vector<16x128xf32> to vector<8x128xf32>
    %89 = arith.mulf %67, %87 : vector<8x128xf32>
    %cst_48 = arith.constant dense<0.000000e+00> : vector<8x8xf32>
    %90 = tpu.matmul %89, %26, %cst_48 {dimension_numbers = #tpu.dot_dimension_numbers<[1], [0], [0], [1], [0, 0, 1, 1], [], []>} : vector<8x128xf32>, vector<128x8xf32>, vector<8x8xf32> -> vector<8x8xf32>
    %91 = arith.maximumf %75, %90 : vector<8x8xf32>
    %92 = arith.subf %75, %91 : vector<8x8xf32>
    %93 = math.exp %92 : vector<8x8xf32>
    %94 = arith.subf %90, %91 : vector<8x8xf32>
    %95 = math.exp %94 : vector<8x8xf32>
    %96 = arith.mulf %93, %81 : vector<8x8xf32>
    %97 = arith.addf %96, %95 : vector<8x8xf32>
    %cst_49 = arith.constant dense<0.000000e+00> : vector<8x128xf32>
    %98 = tpu.matmul %93, %27, %cst_49 {dimension_numbers = #tpu.dot_dimension_numbers<[1], [0], [0], [1], [0, 0, 1, 1], [], []>} : vector<8x8xf32>, vector<8x128xf32>, vector<8x128xf32> -> vector<8x128xf32>
    %cst_50 = arith.constant dense<0.000000e+00> : vector<8x128xf32>
    %99 = tpu.matmul %95, %27, %cst_50 {dimension_numbers = #tpu.dot_dimension_numbers<[1], [0], [0], [1], [0, 0, 1, 1], [], []>} : vector<8x8xf32>, vector<8x128xf32>, vector<8x128xf32> -> vector<8x128xf32>
    %100 = arith.mulf %98, %86 : vector<8x128xf32>
    %101 = arith.mulf %99, %88 : vector<8x128xf32>
    %102 = arith.addf %100, %101 : vector<8x128xf32>
    %103 = tpu.reciprocal %97 {approx = true} : vector<8x8xf32> -> vector<8x8xf32>
    %cst_51 = arith.constant dense<0.000000e+00> : vector<8x128xf32>
    %104 = tpu.matmul %103, %27, %cst_51 {dimension_numbers = #tpu.dot_dimension_numbers<[1], [0], [0], [1], [0, 0, 1, 1], [], []>} : vector<8x8xf32>, vector<8x128xf32>, vector<8x128xf32> -> vector<8x128xf32>
    %105 = arith.mulf %102, %104 : vector<8x128xf32>
    %106 = tpu.concatenate %66, %105 in 0 : vector<8x128xf32>, vector<8x128xf32> -> vector<16x128xf32>
    %107 = arith.truncf %106 : vector<16x128xf32> to vector<16x128xbf16>
    %c0_52 = arith.constant 0 : index
    %c0_53 = arith.constant 0 : index
    %c0_54 = arith.constant 0 : index
    %c0_55 = arith.constant 0 : index
    %108 = vector.load %arg11[%c0_52, %c0_53, %c0_54, %c0_55] : memref<1x1x128x128xbf16, #tpu.memory_space<vmem>>, vector<1x1x128x128xbf16>
    %109 = vector.shape_cast %108 : vector<1x1x128x128xbf16> to vector<128x128xbf16>
    %cst_56 = arith.constant dense<0.000000e+00> : vector<16x128xf32>
    %110 = tpu.matmul %107, %109, %cst_56 {dimension_numbers = #tpu.dot_dimension_numbers<[1], [0], [0], [1], [0, 0, 1, 1], [], []>} : vector<16x128xbf16>, vector<128x128xbf16>, vector<16x128xf32> -> vector<16x128xf32>
    %c0_57 = arith.constant 0 : index
    %c0_58 = arith.constant 0 : index
    %c0_59 = arith.constant 0 : index
    %c0_60 = arith.constant 0 : index
    %111 = vector.load %arg12[%c0_57, %c0_58, %c0_59, %c0_60] : memref<1x1x1x128xf32, #tpu.memory_space<vmem>>, vector<1x1x1x128xf32>
    %112 = vector.shape_cast %111 : vector<1x1x1x128xf32> to vector<1x128xf32>
    %113 = vector.broadcast %112 : vector<1x128xf32> to vector<16x128xf32>
    %114 = arith.addf %110, %113 : vector<16x128xf32>
    %115 = arith.addf %3, %114 : vector<16x128xf32>
    %cst_61 = arith.constant dense<0.000000e+00> : vector<16xf32>
    %116 = vector.multi_reduction <add>, %115, %cst_61 [1] : vector<16x128xf32> to vector<16xf32>
    %117 = vector.shape_cast %116 : vector<16xf32> to vector<16x1xf32>
    %cst_62 = arith.constant 1.280000e+02 : f32
    %118 = vector.broadcast %cst_62 : f32 to vector<16x1xf32>
    %119 = arith.divf %117, %118 : vector<16x1xf32>
    %120 = arith.mulf %115, %115 : vector<16x128xf32>
    %cst_63 = arith.constant dense<0.000000e+00> : vector<16xf32>
    %121 = vector.multi_reduction <add>, %120, %cst_63 [1] : vector<16x128xf32> to vector<16xf32>
    %122 = vector.shape_cast %121 : vector<16xf32> to vector<16x1xf32>
    %cst_64 = arith.constant 1.280000e+02 : f32
    %123 = vector.broadcast %cst_64 : f32 to vector<16x1xf32>
    %124 = arith.divf %122, %123 : vector<16x1xf32>
    %125 = arith.mulf %119, %119 : vector<16x1xf32>
    %126 = arith.subf %124, %125 : vector<16x1xf32>
    %127 = vector.broadcast %119 : vector<16x1xf32> to vector<16x128xf32>
    %128 = arith.subf %115, %127 : vector<16x128xf32>
    %cst_65 = arith.constant 9.99999974E-6 : f32
    %129 = vector.broadcast %cst_65 : f32 to vector<16x1xf32>
    %130 = arith.addf %126, %129 : vector<16x1xf32>
    %131 = math.rsqrt %130 : vector<16x1xf32>
    %132 = vector.broadcast %131 : vector<16x1xf32> to vector<16x128xf32>
    %133 = arith.mulf %128, %132 : vector<16x128xf32>
    %c0_66 = arith.constant 0 : index
    %c0_67 = arith.constant 0 : index
    %c0_68 = arith.constant 0 : index
    %c0_69 = arith.constant 0 : index
    %134 = vector.load %arg13[%c0_66, %c0_67, %c0_68, %c0_69] : memref<1x1x1x128xf32, #tpu.memory_space<vmem>>, vector<1x1x1x128xf32>
    %135 = vector.shape_cast %134 : vector<1x1x1x128xf32> to vector<1x128xf32>
    %136 = vector.broadcast %135 : vector<1x128xf32> to vector<16x128xf32>
    %137 = arith.mulf %133, %136 : vector<16x128xf32>
    %c0_70 = arith.constant 0 : index
    %c0_71 = arith.constant 0 : index
    %c0_72 = arith.constant 0 : index
    %c0_73 = arith.constant 0 : index
    %138 = vector.load %arg14[%c0_70, %c0_71, %c0_72, %c0_73] : memref<1x1x1x128xf32, #tpu.memory_space<vmem>>, vector<1x1x1x128xf32>
    %139 = vector.shape_cast %138 : vector<1x1x1x128xf32> to vector<1x128xf32>
    %140 = vector.broadcast %139 : vector<1x128xf32> to vector<16x128xf32>
    %141 = arith.addf %137, %140 : vector<16x128xf32>
    %142 = arith.truncf %141 : vector<16x128xf32> to vector<16x128xbf16>
    %c0_74 = arith.constant 0 : index
    %c0_75 = arith.constant 0 : index
    %c0_76 = arith.constant 0 : index
    %c0_77 = arith.constant 0 : index
    %143 = vector.load %arg15[%c0_74, %c0_75, %c0_76, %c0_77] : memref<1x1x128x2048xbf16, #tpu.memory_space<vmem>>, vector<1x1x128x2048xbf16>
    %144 = vector.shape_cast %143 : vector<1x1x128x2048xbf16> to vector<128x2048xbf16>
    %cst_78 = arith.constant dense<0.000000e+00> : vector<16x2048xf32>
    %145 = tpu.matmul %142, %144, %cst_78 {dimension_numbers = #tpu.dot_dimension_numbers<[1], [0], [0], [1], [0, 0, 1, 1], [], []>} : vector<16x128xbf16>, vector<128x2048xbf16>, vector<16x2048xf32> -> vector<16x2048xf32>
    %c0_79 = arith.constant 0 : index
    %c0_80 = arith.constant 0 : index
    %c0_81 = arith.constant 0 : index
    %c0_82 = arith.constant 0 : index
    %146 = vector.load %arg16[%c0_79, %c0_80, %c0_81, %c0_82] : memref<1x1x1x2048xf32, #tpu.memory_space<vmem>>, vector<1x1x1x2048xf32>
    %147 = vector.shape_cast %146 : vector<1x1x1x2048xf32> to vector<1x2048xf32>
    %148 = vector.broadcast %147 : vector<1x2048xf32> to vector<16x2048xf32>
    %149 = arith.addf %145, %148 : vector<16x2048xf32>
    %cst_83 = arith.constant 0.000000e+00 : f32
    %150 = vector.broadcast %cst_83 : f32 to vector<16x2048xf32>
    %151 = arith.maximumf %149, %150 : vector<16x2048xf32>
    %152 = arith.truncf %151 : vector<16x2048xf32> to vector<16x2048xbf16>
    %c0_84 = arith.constant 0 : index
    %c0_85 = arith.constant 0 : index
    %c0_86 = arith.constant 0 : index
    %c0_87 = arith.constant 0 : index
    %153 = vector.load %arg17[%c0_84, %c0_85, %c0_86, %c0_87] : memref<1x1x2048x128xbf16, #tpu.memory_space<vmem>>, vector<1x1x2048x128xbf16>
    %154 = vector.shape_cast %153 : vector<1x1x2048x128xbf16> to vector<2048x128xbf16>
    %cst_88 = arith.constant dense<0.000000e+00> : vector<16x128xf32>
    %155 = tpu.matmul %152, %154, %cst_88 {dimension_numbers = #tpu.dot_dimension_numbers<[1], [0], [0], [1], [0, 0, 1, 1], [], []>} : vector<16x2048xbf16>, vector<2048x128xbf16>, vector<16x128xf32> -> vector<16x128xf32>
    %c0_89 = arith.constant 0 : index
    %c0_90 = arith.constant 0 : index
    %c0_91 = arith.constant 0 : index
    %c0_92 = arith.constant 0 : index
    %156 = vector.load %arg18[%c0_89, %c0_90, %c0_91, %c0_92] : memref<1x1x1x128xf32, #tpu.memory_space<vmem>>, vector<1x1x1x128xf32>
    %157 = vector.shape_cast %156 : vector<1x1x1x128xf32> to vector<1x128xf32>
    %158 = vector.broadcast %157 : vector<1x128xf32> to vector<16x128xf32>
    %159 = arith.addf %155, %158 : vector<16x128xf32>
    %160 = arith.addf %141, %159 : vector<16x128xf32>
    %cst_93 = arith.constant dense<0.000000e+00> : vector<16xf32>
    %161 = vector.multi_reduction <add>, %160, %cst_93 [1] : vector<16x128xf32> to vector<16xf32>
    %162 = vector.shape_cast %161 : vector<16xf32> to vector<16x1xf32>
    %cst_94 = arith.constant 1.280000e+02 : f32
    %163 = vector.broadcast %cst_94 : f32 to vector<16x1xf32>
    %164 = arith.divf %162, %163 : vector<16x1xf32>
    %165 = arith.mulf %160, %160 : vector<16x128xf32>
    %cst_95 = arith.constant dense<0.000000e+00> : vector<16xf32>
    %166 = vector.multi_reduction <add>, %165, %cst_95 [1] : vector<16x128xf32> to vector<16xf32>
    %167 = vector.shape_cast %166 : vector<16xf32> to vector<16x1xf32>
    %cst_96 = arith.constant 1.280000e+02 : f32
    %168 = vector.broadcast %cst_96 : f32 to vector<16x1xf32>
    %169 = arith.divf %167, %168 : vector<16x1xf32>
    %170 = arith.mulf %164, %164 : vector<16x1xf32>
    %171 = arith.subf %169, %170 : vector<16x1xf32>
    %172 = vector.broadcast %164 : vector<16x1xf32> to vector<16x128xf32>
    %173 = arith.subf %160, %172 : vector<16x128xf32>
    %cst_97 = arith.constant 9.99999974E-6 : f32
    %174 = vector.broadcast %cst_97 : f32 to vector<16x1xf32>
    %175 = arith.addf %171, %174 : vector<16x1xf32>
    %176 = math.rsqrt %175 : vector<16x1xf32>
    %177 = vector.broadcast %176 : vector<16x1xf32> to vector<16x128xf32>
    %178 = arith.mulf %173, %177 : vector<16x128xf32>
    %c0_98 = arith.constant 0 : index
    %c0_99 = arith.constant 0 : index
    %c0_100 = arith.constant 0 : index
    %c0_101 = arith.constant 0 : index
    %179 = vector.load %arg19[%c0_98, %c0_99, %c0_100, %c0_101] : memref<1x1x1x128xf32, #tpu.memory_space<vmem>>, vector<1x1x1x128xf32>
    %180 = vector.shape_cast %179 : vector<1x1x1x128xf32> to vector<1x128xf32>
    %181 = vector.broadcast %180 : vector<1x128xf32> to vector<16x128xf32>
    %182 = arith.mulf %178, %181 : vector<16x128xf32>
    %c0_102 = arith.constant 0 : index
    %c0_103 = arith.constant 0 : index
    %c0_104 = arith.constant 0 : index
    %c0_105 = arith.constant 0 : index
    %183 = vector.load %arg20[%c0_102, %c0_103, %c0_104, %c0_105] : memref<1x1x1x128xf32, #tpu.memory_space<vmem>>, vector<1x1x1x128xf32>
    %184 = vector.shape_cast %183 : vector<1x1x1x128xf32> to vector<1x128xf32>
    %185 = vector.broadcast %184 : vector<1x128xf32> to vector<16x128xf32>
    %186 = arith.addf %182, %185 : vector<16x128xf32>
    %c0_106 = arith.constant 0 : index
    %c0_107 = arith.constant 0 : index
    %187 = vector.load %arg22[%c0_106, %c0_107] : memref<16x128xf32, #tpu.memory_space<vmem>>, vector<16x128xf32>
    tpu.vector_store %arg22[%c0_106, %c0_107], %186 {strides = array<i32>} : memref<16x128xf32, #tpu.memory_space<vmem>>, vector<16x128xf32>,
    %c1_i32 = arith.constant 1 : i32
    %188 = arith.cmpi eq, %arg1, %c1_i32 : i32
    %189 = arith.extui %188 : i1 to i32
    %c0_i32_108 = arith.constant 0 : i32
    %190 = arith.cmpi ne, %189, %c0_i32_108 : i32
    scf.if %190 {
      %c0_109 = arith.constant 0 : index
      %c0_110 = arith.constant 0 : index
      %c0_111 = arith.constant 0 : index
      %191 = vector.load %arg21[%c0_109, %c0_110, %c0_111] : memref<1x16x128xf32, #tpu.memory_space<vmem>>, vector<1x16x128xf32>
      %192 = vector.shape_cast %191 : vector<1x16x128xf32> to vector<16x128xf32>
      %193 = vector.shape_cast %186 : vector<16x128xf32> to vector<1x16x128xf32>
      tpu.vector_store %arg21[%c0_109, %c0_110, %c0_111], %193 {strides = array<i32>} : memref<1x16x128xf32, #tpu.memory_space<vmem>>, vector<1x16x128xf32>,
    } else {
    }
    return
  }
  func.func @transform_0(%arg0: i32, %arg1: i32) -> (i32, i32, i32) {
    %c0_i32 = arith.constant 0 : i32
    %c0_i32_0 = arith.constant 0 : i32
    %c0_i32_1 = arith.constant 0 : i32
    return %arg0, %c0_i32, %c0_i32_0 : i32, i32, i32
  }
  func.func @transform_1(%arg0: i32, %arg1: i32) -> (i32, i32) {
    %c0_i32 = arith.constant 0 : i32
    %c0_i32_0 = arith.constant 0 : i32
    %c0_i32_1 = arith.constant 0 : i32
    return %c0_i32, %c0_i32_0 : i32, i32
  }
  func.func @transform_2(%arg0: i32, %arg1: i32) -> (i32, i32) {
    %c0_i32 = arith.constant 0 : i32
    %c0_i32_0 = arith.constant 0 : i32
    %c0_i32_1 = arith.constant 0 : i32
    return %c0_i32, %c0_i32_0 : i32, i32
  }
  func.func @transform_3(%arg0: i32, %arg1: i32) -> (i32, i32, i32, i32) {
    %c0_i32 = arith.constant 0 : i32
    %c0_i32_0 = arith.constant 0 : i32
    %c0_i32_1 = arith.constant 0 : i32
    return %arg1, %arg0, %c0_i32, %c0_i32_0 : i32, i32, i32, i32
  }
  func.func @transform_4(%arg0: i32, %arg1: i32) -> (i32, i32, i32, i32) {
    %c0_i32 = arith.constant 0 : i32
    %c0_i32_0 = arith.constant 0 : i32
    %c0_i32_1 = arith.constant 0 : i32
    return %arg1, %arg0, %c0_i32, %c0_i32_0 : i32, i32, i32, i32
  }
  func.func @transform_5(%arg0: i32, %arg1: i32) -> (i32, i32, i32, i32) {
    %c0_i32 = arith.constant 0 : i32
    %c0_i32_0 = arith.constant 0 : i32
    %c0_i32_1 = arith.constant 0 : i32
    return %arg1, %arg0, %c0_i32, %c0_i32_0 : i32, i32, i32, i32
  }
  func.func @transform_6(%arg0: i32, %arg1: i32) -> (i32, i32, i32, i32) {
    %c0_i32 = arith.constant 0 : i32
    %c0_i32_0 = arith.constant 0 : i32
    %c0_i32_1 = arith.constant 0 : i32
    return %arg1, %arg0, %c0_i32, %c0_i32_0 : i32, i32, i32, i32
  }
  func.func @transform_7(%arg0: i32, %arg1: i32) -> (i32, i32, i32, i32) {
    %c0_i32 = arith.constant 0 : i32
    %c0_i32_0 = arith.constant 0 : i32
    %c0_i32_1 = arith.constant 0 : i32
    return %arg1, %arg0, %c0_i32, %c0_i32_0 : i32, i32, i32, i32
  }
  func.func @transform_8(%arg0: i32, %arg1: i32) -> (i32, i32, i32, i32) {
    %c0_i32 = arith.constant 0 : i32
    %c0_i32_0 = arith.constant 0 : i32
    %c0_i32_1 = arith.constant 0 : i32
    return %arg1, %arg0, %c0_i32, %c0_i32_0 : i32, i32, i32, i32
  }
  func.func @transform_9(%arg0: i32, %arg1: i32) -> (i32, i32, i32, i32) {
    %c0_i32 = arith.constant 0 : i32
    %c0_i32_0 = arith.constant 0 : i32
    %c0_i32_1 = arith.constant 0 : i32
    return %arg1, %arg0, %c0_i32, %c0_i32_0 : i32, i32, i32, i32
  }
  func.func @transform_10(%arg0: i32, %arg1: i32) -> (i32, i32, i32, i32) {
    %c0_i32 = arith.constant 0 : i32
    %c0_i32_0 = arith.constant 0 : i32
    %c0_i32_1 = arith.constant 0 : i32
    return %arg1, %arg0, %c0_i32, %c0_i32_0 : i32, i32, i32, i32
  }
  func.func @transform_11(%arg0: i32, %arg1: i32) -> (i32, i32, i32, i32) {
    %c0_i32 = arith.constant 0 : i32
    %c0_i32_0 = arith.constant 0 : i32
    %c0_i32_1 = arith.constant 0 : i32
    return %arg1, %arg0, %c0_i32, %c0_i32_0 : i32, i32, i32, i32
  }
  func.func @transform_12(%arg0: i32, %arg1: i32) -> (i32, i32, i32, i32) {
    %c0_i32 = arith.constant 0 : i32
    %c0_i32_0 = arith.constant 0 : i32
    %c0_i32_1 = arith.constant 0 : i32
    return %arg1, %arg0, %c0_i32, %c0_i32_0 : i32, i32, i32, i32
  }
  func.func @transform_13(%arg0: i32, %arg1: i32) -> (i32, i32, i32, i32) {
    %c0_i32 = arith.constant 0 : i32
    %c0_i32_0 = arith.constant 0 : i32
    %c0_i32_1 = arith.constant 0 : i32
    return %arg1, %arg0, %c0_i32, %c0_i32_0 : i32, i32, i32, i32
  }
  func.func @transform_14(%arg0: i32, %arg1: i32) -> (i32, i32, i32, i32) {
    %c0_i32 = arith.constant 0 : i32
    %c0_i32_0 = arith.constant 0 : i32
    %c0_i32_1 = arith.constant 0 : i32
    return %arg1, %arg0, %c0_i32, %c0_i32_0 : i32, i32, i32, i32
  }
  func.func @transform_15(%arg0: i32, %arg1: i32) -> (i32, i32, i32, i32) {
    %c0_i32 = arith.constant 0 : i32
    %c0_i32_0 = arith.constant 0 : i32
    %c0_i32_1 = arith.constant 0 : i32
    return %arg1, %arg0, %c0_i32, %c0_i32_0 : i32, i32, i32, i32
  }
  func.func @transform_16(%arg0: i32, %arg1: i32) -> (i32, i32, i32, i32) {
    %c0_i32 = arith.constant 0 : i32
    %c0_i32_0 = arith.constant 0 : i32
    %c0_i32_1 = arith.constant 0 : i32
    return %arg1, %arg0, %c0_i32, %c0_i32_0 : i32, i32, i32, i32
  }
  func.func @transform_17(%arg0: i32, %arg1: i32) -> (i32, i32, i32, i32) {
    %c0_i32 = arith.constant 0 : i32
    %c0_i32_0 = arith.constant 0 : i32
    %c0_i32_1 = arith.constant 0 : i32
    return %arg1, %arg0, %c0_i32, %c0_i32_0 : i32, i32, i32, i32
  }
  func.func @transform_18(%arg0: i32, %arg1: i32) -> (i32, i32, i32, i32) {
    %c0_i32 = arith.constant 0 : i32
    %c0_i32_0 = arith.constant 0 : i32
    %c0_i32_1 = arith.constant 0 : i32
    return %arg1, %arg0, %c0_i32, %c0_i32_0 : i32, i32, i32, i32
  }
  func.func @transform_19(%arg0: i32, %arg1: i32) -> (i32, i32, i32) {
    %c0_i32 = arith.constant 0 : i32
    %c0_i32_0 = arith.constant 0 : i32
    %c0_i32_1 = arith.constant 0 : i32
    return %arg0, %c0_i32, %c0_i32_0 : i32, i32, i32
  }
}

module attributes {stable_mosaic.version = 11 : i64} {
  func.func @_classifier_kernel(%arg0: i32, %arg1: memref<1x16x128xf32, #tpu.memory_space<vmem>>, %arg2: memref<128x128xbf16, #tpu.memory_space<vmem>>, %arg3: memref<1x128xf32, #tpu.memory_space<vmem>>, %arg4: memref<128x8xbf16, #tpu.memory_space<vmem>>, %arg5: memref<1x8xf32, #tpu.memory_space<vmem>>, %arg6: memref<1x8x4xf32, #tpu.memory_space<vmem>>, %arg7: memref<1x2x4xf32, #tpu.memory_space<vmem>>) attributes {dimension_semantics = [#tpu.dimension_semantics<parallel>], iteration_bounds = array<i64: 2>, scalar_prefetch = 0 : i64, scratch_operands = 0 : i64, tpu.core_type = #tpu.core_type<tc>, window_params = [{transform_indices = @transform_0, window_bounds = array<i64: 1, 16, 128>}, {pipeline_mode = #tpu.pipeline_mode<synchronous>, transform_indices = @transform_1, window_bounds = array<i64: 128, 128>}, {pipeline_mode = #tpu.pipeline_mode<synchronous>, transform_indices = @transform_2, window_bounds = array<i64: 1, 128>}, {pipeline_mode = #tpu.pipeline_mode<synchronous>, transform_indices = @transform_3, window_bounds = array<i64: 128, 8>}, {pipeline_mode = #tpu.pipeline_mode<synchronous>, transform_indices = @transform_4, window_bounds = array<i64: 1, 8>}, {transform_indices = @transform_5, window_bounds = array<i64: 1, 8, 4>}, {transform_indices = @transform_6, window_bounds = array<i64: 1, 2, 4>}]} {
    %c0 = arith.constant 0 : index
    %c0_0 = arith.constant 0 : index
    %c0_1 = arith.constant 0 : index
    %0 = vector.load %arg1[%c0, %c0_0, %c0_1] : memref<1x16x128xf32, #tpu.memory_space<vmem>>, vector<1x16x128xf32>
    %1 = vector.shape_cast %0 : vector<1x16x128xf32> to vector<16x128xf32>
    %2 = tpu.iota {dimensions = array<i32: 0>} : vector<16x128xi32>
    %c8_i32 = arith.constant 8 : i32
    %c0_i32 = arith.constant 0 : i32
    %3 = arith.cmpi eq, %c8_i32, %c0_i32 : i32
    %c1_i32 = arith.constant 1 : i32
    %4 = arith.select %3, %c1_i32, %c8_i32 : i32
    %5 = vector.broadcast %4 : i32 to vector<16x128xi32>
    %6 = arith.remsi %2, %5 : vector<16x128xi32>
    %c0_i32_2 = arith.constant 0 : i32
    %7 = vector.broadcast %c0_i32_2 : i32 to vector<16x128xi32>
    %8 = arith.cmpi ne, %6, %7 : vector<16x128xi32>
    %c0_i32_3 = arith.constant 0 : i32
    %9 = vector.broadcast %c0_i32_3 : i32 to vector<16x128xi32>
    %10 = arith.cmpi slt, %6, %9 : vector<16x128xi32>
    %c0_i32_4 = arith.constant 0 : i32
    %11 = arith.cmpi slt, %4, %c0_i32_4 : i32
    %12 = vector.broadcast %11 : i1 to vector<16x128xi1>
    %13 = vector.broadcast %12 : vector<16x128xi1> to vector<16x128xi1>
    %14 = arith.xori %10, %13 : vector<16x128xi1>
    %15 = arith.andi %14, %8 : vector<16x128xi1>
    %16 = vector.broadcast %4 : i32 to vector<16x128xi32>
    %17 = arith.addi %6, %16 : vector<16x128xi32>
    %18 = arith.select %15, %17, %6 : vector<16x128xi1>, vector<16x128xi32>
    %c3_i32 = arith.constant 3 : i32
    %19 = vector.broadcast %c3_i32 : i32 to vector<16x128xi32>
    %20 = arith.cmpi slt, %18, %19 : vector<16x128xi32>
    %cst = arith.constant -1.000000e+30 : f32
    %21 = vector.broadcast %cst : f32 to vector<16x128xf32>
    %22 = arith.select %20, %1, %21 : vector<16x128xi1>, vector<16x128xf32>
    %23 = vector.extract_strided_slice %22 {offsets = [0, 0], sizes = [8, 128], strides = [1, 1]} : vector<16x128xf32> to vector<8x128xf32>
    %cst_5 = arith.constant dense<0xFF800000> : vector<128xf32>
    %24 = vector.multi_reduction <maximumf>, %23, %cst_5 [0] : vector<8x128xf32> to vector<128xf32>
    %25 = vector.shape_cast %24 : vector<128xf32> to vector<1x128xf32>
    %26 = vector.extract_strided_slice %22 {offsets = [8, 0], sizes = [8, 128], strides = [1, 1]} : vector<16x128xf32> to vector<8x128xf32>
    %cst_6 = arith.constant dense<0xFF800000> : vector<128xf32>
    %27 = vector.multi_reduction <maximumf>, %26, %cst_6 [0] : vector<8x128xf32> to vector<128xf32>
    %28 = vector.shape_cast %27 : vector<128xf32> to vector<1x128xf32>
    %29 = tpu.concatenate %25, %28 in 0 : vector<1x128xf32>, vector<1x128xf32> -> vector<2x128xf32>
    %30 = arith.truncf %29 : vector<2x128xf32> to vector<2x128xbf16>
    %c0_7 = arith.constant 0 : index
    %c0_8 = arith.constant 0 : index
    %31 = vector.load %arg2[%c0_7, %c0_8] : memref<128x128xbf16, #tpu.memory_space<vmem>>, vector<128x128xbf16>
    %cst_9 = arith.constant dense<0.000000e+00> : vector<2x128xf32>
    %32 = tpu.matmul %30, %31, %cst_9 {dimension_numbers = #tpu.dot_dimension_numbers<[1], [0], [0], [1], [0, 0, 1, 1], [], []>} : vector<2x128xbf16>, vector<128x128xbf16>, vector<2x128xf32> -> vector<2x128xf32>
    %c0_10 = arith.constant 0 : index
    %c0_11 = arith.constant 0 : index
    %33 = vector.load %arg3[%c0_10, %c0_11] : memref<1x128xf32, #tpu.memory_space<vmem>>, vector<1x128xf32>
    %34 = vector.broadcast %33 : vector<1x128xf32> to vector<2x128xf32>
    %35 = arith.addf %32, %34 : vector<2x128xf32>
    %cst_12 = arith.constant 0.000000e+00 : f32
    %36 = vector.broadcast %cst_12 : f32 to vector<2x128xf32>
    %37 = arith.maximumf %35, %36 : vector<2x128xf32>
    %38 = arith.truncf %37 : vector<2x128xf32> to vector<2x128xbf16>
    %c0_13 = arith.constant 0 : index
    %c0_14 = arith.constant 0 : index
    %39 = vector.load %arg4[%c0_13, %c0_14] : memref<128x8xbf16, #tpu.memory_space<vmem>>, vector<128x8xbf16>
    %cst_15 = arith.constant dense<0.000000e+00> : vector<2x8xf32>
    %40 = tpu.matmul %38, %39, %cst_15 {dimension_numbers = #tpu.dot_dimension_numbers<[1], [0], [0], [1], [0, 0, 1, 1], [], []>} : vector<2x128xbf16>, vector<128x8xbf16>, vector<2x8xf32> -> vector<2x8xf32>
    %c0_16 = arith.constant 0 : index
    %c0_17 = arith.constant 0 : index
    %41 = vector.load %arg5[%c0_16, %c0_17] : memref<1x8xf32, #tpu.memory_space<vmem>>, vector<1x8xf32>
    %42 = vector.broadcast %41 : vector<1x8xf32> to vector<2x8xf32>
    %43 = arith.addf %40, %42 : vector<2x8xf32>
    %c0_18 = arith.constant 0 : index
    %c0_19 = arith.constant 0 : index
    %c0_20 = arith.constant 0 : index
    %44 = vector.load %arg6[%c0_18, %c0_19, %c0_20] : memref<1x8x4xf32, #tpu.memory_space<vmem>>, vector<1x8x4xf32>
    %45 = vector.shape_cast %44 : vector<1x8x4xf32> to vector<8x4xf32>
    %cst_21 = arith.constant dense<0.000000e+00> : vector<2x4xf32>
    %46 = tpu.matmul %43, %45, %cst_21 {dimension_numbers = #tpu.dot_dimension_numbers<[1], [0], [0], [1], [0, 0, 1, 1], [], []>} : vector<2x8xf32>, vector<8x4xf32>, vector<2x4xf32> -> vector<2x4xf32>
    %c0_22 = arith.constant 0 : index
    %c0_23 = arith.constant 0 : index
    %c0_24 = arith.constant 0 : index
    %47 = vector.load %arg7[%c0_22, %c0_23, %c0_24] : memref<1x2x4xf32, #tpu.memory_space<vmem>>, vector<1x2x4xf32>
    %48 = vector.shape_cast %47 : vector<1x2x4xf32> to vector<2x4xf32>
    %49 = vector.shape_cast %46 : vector<2x4xf32> to vector<1x2x4xf32>
    tpu.vector_store %arg7[%c0_22, %c0_23, %c0_24], %49 {strides = array<i32>} : memref<1x2x4xf32, #tpu.memory_space<vmem>>, vector<1x2x4xf32>,
    return
  }
  func.func @transform_0(%arg0: i32) -> (i32, i32, i32) {
    %c0_i32 = arith.constant 0 : i32
    %c0_i32_0 = arith.constant 0 : i32
    %c0_i32_1 = arith.constant 0 : i32
    return %arg0, %c0_i32, %c0_i32_0 : i32, i32, i32
  }
  func.func @transform_1(%arg0: i32) -> (i32, i32) {
    %c0_i32 = arith.constant 0 : i32
    %c0_i32_0 = arith.constant 0 : i32
    %c0_i32_1 = arith.constant 0 : i32
    return %c0_i32, %c0_i32_0 : i32, i32
  }
  func.func @transform_2(%arg0: i32) -> (i32, i32) {
    %c0_i32 = arith.constant 0 : i32
    %c0_i32_0 = arith.constant 0 : i32
    %c0_i32_1 = arith.constant 0 : i32
    return %c0_i32, %c0_i32_0 : i32, i32
  }
  func.func @transform_3(%arg0: i32) -> (i32, i32) {
    %c0_i32 = arith.constant 0 : i32
    %c0_i32_0 = arith.constant 0 : i32
    %c0_i32_1 = arith.constant 0 : i32
    return %c0_i32, %c0_i32_0 : i32, i32
  }
  func.func @transform_4(%arg0: i32) -> (i32, i32) {
    %c0_i32 = arith.constant 0 : i32
    %c0_i32_0 = arith.constant 0 : i32
    %c0_i32_1 = arith.constant 0 : i32
    return %c0_i32, %c0_i32_0 : i32, i32
  }
  func.func @transform_5(%arg0: i32) -> (i32, i32, i32) {
    %c0_i32 = arith.constant 0 : i32
    %c0_i32_0 = arith.constant 0 : i32
    %c0_i32_1 = arith.constant 0 : i32
    return %arg0, %c0_i32, %c0_i32_0 : i32, i32, i32
  }
  func.func @transform_6(%arg0: i32) -> (i32, i32, i32) {
    %c0_i32 = arith.constant 0 : i32
    %c0_i32_0 = arith.constant 0 : i32
    %c0_i32_1 = arith.constant 0 : i32
    return %arg0, %c0_i32, %c0_i32_0 : i32, i32, i32
  }
}

</mosaic_0001>

<llo_original>
// kernel: _rem_forward.3
$region0: #{_rem_forward.3}
  #allocation0 [shape = 'u32[]', space=smem, size = 0x4, offset = 0x4, fixed_abs, tag = 'smem constant byte address 0x4 - core index']
  #allocation1 [shape = 'u32[72,128]{1,0:T(1,128)}', space=vmem, size = 0x9000, scoped, tag = 'internal scratch']
  %s0 = inlined_call_operand.vmem [shape: f32[16,64], index: 0, kind: input, shape index: {}]
  %s1 = inlined_call_operand.hbm [shape: bf16[2,64,128], index: 1, kind: input, shape index: {}]
  %s2 = inlined_call_operand.hbm [shape: f32[2,1,128], index: 2, kind: input, shape index: {}]
  %s3 = inlined_call_operand.hbm [shape: bf16[2,128,128], index: 3, kind: input, shape index: {}]
  %s4 = inlined_call_operand.hbm [shape: f32[2,1,128], index: 4, kind: input, shape index: {}]
  %s5 = inlined_call_operand.vmem [shape: f32[2,16,128], index: 5, kind: output, shape index: {}]
  %s6 = sld [smem:[#allocation0]]
  $region69: #{_rem_forward.3} parent=0
    _
  %s8 = ssub.s32 1, %s6
  %s9 = scalar_select 0, %s8, %s6
  $region1: #{_rem_forward.3} parent=0
    #allocation2 [shape = 'u8[32768]{0}', space=vmem, size = 0x8000, scoped, tag = 'input window, operand 1']
    #allocation3 [shape = 's32[2]{0}', space=sflag, size = 0x8, scoped, tag = 'scoped memory for _rem_forward.3']
    #allocation4 [shape = 'u8[1024]{0}', space=vmem, size = 0x400, scoped, tag = 'input window, operand 2']
    #allocation5 [shape = 's32[2]{0}', space=sflag, size = 0x8, scoped, tag = 'scoped memory for _rem_forward.3']
    #allocation6 [shape = 'u8[65536]{0}', space=vmem, size = 0x10000, scoped, tag = 'input window, operand 3']
    #allocation7 [shape = 'u8[1024]{0}', space=vmem, size = 0x400, scoped, tag = 'input window, operand 4']
    #allocation8 [shape = 's32[2]{0}', space=sflag, size = 0x8, scoped, tag = 'scoped memory for _rem_forward.3']
    %10 = vsyncpa [#allocation3], 0
    %s11 = scalar_lea.sflag [#allocation3], 1
    %12 = vsyncpa %s11, 0
    %13 = vsyncpa [#allocation5], 0
    %s14 = scalar_lea.sflag [#allocation5], 1
    %15 = vsyncpa %s14, 0
    %16 = vsyncpa [#allocation8], 0
    %s17 = scalar_lea.sflag [#allocation8], 1
    %18 = vsyncpa %s17, 0
    loop: start=0, step=1, limit=4
    $region2: #{_rem_forward.3} parent=1 // loop_pre_header
      _
    $region3: #{_rem_forward.3} parent=1 // loop_header
      %s20 = sphi 0, %s24
      %p21 = scmp.ge.s32.totalorder %s20, 4
      %s28 = sphi 0, %s28
      %s30 = sphi 0, %s28
      %s31 = sphi 0, %s30
      %s45 = sphi 0, %s31
      %s51 = sphi 0, %s53
      %s54 = sphi 0, %s51
      %s55 = sphi 0, %s54
      %s71 = sphi 0, %s55
      %s77 = sphi 0, %s79
      %s80 = sphi 0, %s77
      %s81 = sphi 0, %s80
      %s97 = sphi 0, %s81
      %s103 = sphi 0, %s105
      %s106 = sphi 0, %s103
      %s107 = sphi 0, %s106
      %s123 = sphi 0, %s107
      %s129 = sphi 0, %s131
      %s132 = sphi 0, %s129
      %s133 = sphi 0, %s132
      %s149 = sphi 0, %s133
      %s155 = sphi 0, %s157
      %s158 = sphi 0, %s155
      %s159 = sphi 0, %s158
      %s175 = sphi 0, %s159
    $region4: #{_rem_forward.3} parent=1 // loop_header_branch
      %23 = sbr.rel (%p21) target = $region8
    $region5: #{_rem_forward.3} parent=1 // loop_body
      %s25 = ssub.s32 %s20, 1
      %s26 = ssub.s32 %s20, 2
      %s27 = sadd.s32 %s20, 1
      %s29 = sadd.s32 %s28, 1
      %p32 = scmp.eq.s32.totalorder %s20, 1
      %p33 = scmp.ne.s32.totalorder %s28, %s30
      %p34 = scmp.eq.s32.totalorder %s20, 0
      %p35 = por %p33, %p34
      %p36 = scmp.ne.s32.totalorder %s28, %s30
      %p37 = scmp.eq.s32.totalorder %s25, 1
      %p38 = por %p36, %p37
      %p39 = scmp.ne.s32.totalorder %s30, %s31
      %p40 = scmp.eq.s32.totalorder %s25, 0
      %p41 = por %p39, %p40
      %p42 = scmp.ne.s32.totalorder %s30, %s31
      %p43 = scmp.eq.s32.totalorder %s26, 1
      %p44 = por %p42, %p43
      %p46 = scmp.ne.s32.totalorder %s31, %s45
      %p47 = scmp.eq.s32.totalorder %s26, 0
      %p48 = por %p46, %p47
      %s49 = ssub.s32 %s20, %s27
      %p50 = scmp.eq.s32.totalorder %s49, 0
      %s52 = sadd.s32 %s51, 1
      %s53 = scalar_select %p50, %s51, %s52
      %p56 = pneg %p50
      %p57 = scmp.eq.s32.totalorder %s20, 1
      %p58 = por %p56, %p57
      %p59 = scmp.ne.s32.totalorder %s51, %s54
      %p60 = scmp.eq.s32.totalorder %s20, 0
      %p61 = por %p59, %p60
      %p62 = scmp.ne.s32.totalorder %s51, %s54
      %p63 = scmp.eq.s32.totalorder %s25, 1
      %p64 = por %p62, %p63
      %p65 = scmp.ne.s32.totalorder %s54, %s55
      %p66 = scmp.eq.s32.totalorder %s25, 0
      %p67 = por %p65, %p66
      %p68 = scmp.ne.s32.totalorder %s54, %s55
      %p69 = scmp.eq.s32.totalorder %s26, 1
      %p70 = por %p68, %p69
      %p72 = scmp.ne.s32.totalorder %s55, %s71
      %p73 = scmp.eq.s32.totalorder %s26, 0
      %p74 = por %p72, %p73
      %s75 = ssub.s32 %s20, %s27
      %p76 = scmp.eq.s32.totalorder %s75, 0
      %s78 = sadd.s32 %s77, 1
      %s79 = scalar_select %p76, %s77, %s78
      %p82 = pneg %p76
      %p83 = scmp.eq.s32.totalorder %s20, 1
      %p84 = por %p82, %p83
      %p85 = scmp.ne.s32.totalorder %s77, %s80
      %p86 = scmp.eq.s32.totalorder %s20, 0
      %p87 = por %p85, %p86
      %p88 = scmp.ne.s32.totalorder %s77, %s80
      %p89 = scmp.eq.s32.totalorder %s25, 1
      %p90 = por %p88, %p89
      %p91 = scmp.ne.s32.totalorder %s80, %s81
      %p92 = scmp.eq.s32.totalorder %s25, 0
      %p93 = por %p91, %p92
      %p94 = scmp.ne.s32.totalorder %s80, %s81
      %p95 = scmp.eq.s32.totalorder %s26, 1
      %p96 = por %p94, %p95
      %p98 = scmp.ne.s32.totalorder %s81, %s97
      %p99 = scmp.eq.s32.totalorder %s26, 0
      %p100 = por %p98, %p99
      %s101 = ssub.s32 %s20, %s27
      %p102 = scmp.eq.s32.totalorder %s101, 0
      %s104 = sadd.s32 %s103, 1
      %s105 = scalar_select %p102, %s103, %s104
      %p108 = pneg %p102
      %p109 = scmp.eq.s32.totalorder %s20, 1
      %p110 = por %p108, %p109
      %p111 = scmp.ne.s32.totalorder %s103, %s106
      %p112 = scmp.eq.s32.totalorder %s20, 0
      %p113 = por %p111, %p112
      %p114 = scmp.ne.s32.totalorder %s103, %s106
      %p115 = scmp.eq.s32.totalorder %s25, 1
      %p116 = por %p114, %p115
      %p117 = scmp.ne.s32.totalorder %s106, %s107
      %p118 = scmp.eq.s32.totalorder %s25, 0
      %p119 = por %p117, %p118
      %p120 = scmp.ne.s32.totalorder %s106, %s107
      %p121 = scmp.eq.s32.totalorder %s26, 1
      %p122 = por %p120, %p121
      %p124 = scmp.ne.s32.totalorder %s107, %s123
      %p125 = scmp.eq.s32.totalorder %s26, 0
      %p126 = por %p124, %p125
      %s127 = ssub.s32 %s20, %s27
      %p128 = scmp.eq.s32.totalorder %s127, 0
      %s130 = sadd.s32 %s129, 1
      %s131 = scalar_select %p128, %s129, %s130
      %p134 = pneg %p128
      %p135 = scmp.eq.s32.totalorder %s20, 1
      %p136 = por %p134, %p135
      %p137 = scmp.ne.s32.totalorder %s129, %s132
      %p138 = scmp.eq.s32.totalorder %s20, 0
      %p139 = por %p137, %p138
      %p140 = scmp.ne.s32.totalorder %s129, %s132
      %p141 = scmp.eq.s32.totalorder %s25, 1
      %p142 = por %p140, %p141
      %p143 = scmp.ne.s32.totalorder %s132, %s133
      %p144 = scmp.eq.s32.totalorder %s25, 0
      %p145 = por %p143, %p144
      %p146 = scmp.ne.s32.totalorder %s132, %s133
      %p147 = scmp.eq.s32.totalorder %s26, 1
      %p148 = por %p146, %p147
      %p150 = scmp.ne.s32.totalorder %s133, %s149
      %p151 = scmp.eq.s32.totalorder %s26, 0
      %p152 = por %p150, %p151
      %s153 = ssub.s32 %s20, %s27
      %p154 = scmp.eq.s32.totalorder %s153, 0
      %s156 = sadd.s32 %s155, 1
      %s157 = scalar_select %p154, %s155, %s156
      %p160 = pneg %p154
      %p161 = scmp.eq.s32.totalorder %s20, 1
      %p162 = por %p160, %p161
      %p163 = scmp.ne.s32.totalorder %s155, %s158
      %p164 = scmp.eq.s32.totalorder %s20, 0
      %p165 = por %p163, %p164
      %p166 = scmp.ne.s32.totalorder %s155, %s158
      %p167 = scmp.eq.s32.totalorder %s25, 1
      %p168 = por %p166, %p167
      %p169 = scmp.ne.s32.totalorder %s158, %s159
      %p170 = scmp.eq.s32.totalorder %s25, 0
      %p171 = por %p169, %p170
      %p172 = scmp.ne.s32.totalorder %s158, %s159
      %p173 = scmp.eq.s32.totalorder %s26, 1
      %p174 = por %p172, %p173
      %p176 = scmp.ne.s32.totalorder %s159, %s175
      %p177 = scmp.eq.s32.totalorder %s26, 0
      %p178 = por %p176, %p177
      %p179 = scmp.le.s32.totalorder 1, %s20
      %p180 = scmp.lt.s32.totalorder %s20, 3
      %p181 = pnand %p179, %p180
      %p182 = pneg %p181
      // Predicated region
      $region9: #{_rem_forward.3} parent=5 // pred_check
        _
      $region10: #{_rem_forward.3} parent=5 // pred_check_branch
        %184 = sbr.rel (%p181) target = $region12
      $region11: #{_rem_forward.3} parent=5 // pred_region
        %s185 = ssub.s32 %s20, 1
        // Predicated region
        $region13: #{_rem_forward.3} parent=11 // pred_check
          %p186 = pneg %p41
        $region14: #{_rem_forward.3} parent=11 // pred_check_branch
          %188 = sbr.rel (%p186) target = $region16
        $region15: #{_rem_forward.3} parent=11 // pred_region
          _
        $region16: #{_rem_forward.3} parent=11 // pred_fallthru
          _
      $region12: #{_rem_forward.3} parent=5 // pred_fallthru
        _
      %p189 = scmp.lt.s32.totalorder %s20, 2
      // Predicated region
      $region17: #{_rem_forward.3} parent=5 // pred_check
        %p190 = pneg %p189
      $region18: #{_rem_forward.3} parent=5 // pred_check_branch
        %192 = sbr.rel (%p190) target = $region20
      $region19: #{_rem_forward.3} parent=5 // pred_region
        // Predicated region
        $region21: #{_rem_forward.3} parent=19 // pred_check
          %p193 = pneg %p61
        $region22: #{_rem_forward.3} parent=19 // pred_check_branch
          %195 = sbr.rel (%p193) target = $region24
        $region23: #{_rem_forward.3} parent=19 // pred_region
          %s196 = sand.u32 %s51, 1
          %s197 = scalar_lea.sflag [#allocation3], %s196
          %s198 = sand.u32 %s51, 1
          %s199 = smul.addr %s198, 32
          %s200 = scalar_lea.vmem [#allocation2], %s199
          %202 = vsyncadd %s197, 0
          %s203 = smul.addr %s20, 8
          %s204 = smul.addr %s203, 4
          %s205 = scalar_lea.hbm %s1, %s204
          %s206 = sshll.u32 %s205, 4
          %s207 = int_to_ptr.hbm [resolvable:$true] %s206
          %s208 = sshll.u32 %s200, 4
          %s209 = int_to_ptr.vmem [resolvable:$true] %s208
          %214 = dma.hbm_to_vmem [thread:$0]  %s207, 512, %s209, %s197, 64, 64, 4
        $region24: #{_rem_forward.3} parent=19 // pred_fallthru
          _
        // Predicated region
        $region25: #{_rem_forward.3} parent=19 // pred_check
          %p215 = pneg %p87
        $region26: #{_rem_forward.3} parent=19 // pred_check_branch
          %217 = sbr.rel (%p215) target = $region28
        $region27: #{_rem_forward.3} parent=19 // pred_region
          %s218 = sand.u32 %s20, 1
          %s219 = scalar_lea.sflag [#allocation5], %s218
          %s220 = sand.u32 %s77, 1
          %s221 = scalar_lea.vmem [#allocation4], %s220
          %223 = vsyncadd %s219, 0
          %s224 = scalar_lea.hbm %s2, %s20
          %s226 = sshll.u32 %s224, 4
          %s227 = int_to_ptr.hbm [resolvable:$true] %s226
          %s228 = sshll.u32 %s221, 4
          %s229 = int_to_ptr.vmem [resolvable:$true] %s228
          %231 = dma.hbm_to_vmem [thread:$0]  %s227, 16, %s229, %s219
        $region28: #{_rem_forward.3} parent=19 // pred_fallthru
          _
        // Predicated region
        $region29: #{_rem_forward.3} parent=19 // pred_check
          %p232 = pneg %p113
        $region30: #{_rem_forward.3} parent=19 // pred_check_branch
          %234 = sbr.rel (%p232) target = $region32
        $region31: #{_rem_forward.3} parent=19 // pred_region
          %s235 = sand.u32 %s20, 1
          %s236 = scalar_lea.sflag [#allocation5], %s235
          %s237 = sand.u32 %s103, 1
          %s238 = smul.addr %s237, 64
          %s239 = scalar_lea.vmem [#allocation6], %s238
          %241 = vsyncadd %s236, 0
          %s242 = smul.addr %s20, 16
          %s243 = smul.addr %s242, 4
          %s244 = scalar_lea.hbm %s3, %s243
          %s245 = sshll.u32 %s244, 4
          %s246 = int_to_ptr.hbm [resolvable:$true] %s245
          %s247 = sshll.u32 %s239, 4
          %s248 = int_to_ptr.vmem [resolvable:$true] %s247
          %253 = dma.hbm_to_vmem [thread:$0]  %s246, 1024, %s248, %s236, 64, 64, 4
        $region32: #{_rem_forward.3} parent=19 // pred_fallthru
          _
        // Predicated region
        $region33: #{_rem_forward.3} parent=19 // pred_check
          %p254 = pneg %p139
        $region34: #{_rem_forward.3} parent=19 // pred_check_branch
          %256 = sbr.rel (%p254) target = $region36
        $region35: #{_rem_forward.3} parent=19 // pred_region
          %s257 = sand.u32 %s129, 1
          %s258 = scalar_lea.sflag [#allocation8], %s257
          %s259 = sand.u32 %s129, 1
          %s260 = scalar_lea.vmem [#allocation7], %s259
          %262 = vsyncadd %s258, 0
          %s263 = scalar_lea.hbm %s4, %s20
          %s265 = sshll.u32 %s263, 4
          %s266 = int_to_ptr.hbm [resolvable:$true] %s265
          %s267 = sshll.u32 %s260, 4
          %s268 = int_to_ptr.vmem [resolvable:$true] %s267
          %270 = dma.hbm_to_vmem [thread:$0]  %s266, 16, %s268, %s258
        $region36: #{_rem_forward.3} parent=19 // pred_fallthru
          _
      $region20: #{_rem_forward.3} parent=5 // pred_fallthru
        _
      %p271 = scmp.le.s32.totalorder 1, %s20
      %p272 = scmp.lt.s32.totalorder %s20, 3
      %p273 = pnand %p271, %p272
      %p274 = pneg %p273
      // Predicated region
      $region37: #{_rem_forward.3} parent=5 // pred_check
        _
      $region38: #{_rem_forward.3} parent=5 // pred_check_branch
        %276 = sbr.rel (%p273) target = $region40
      $region39: #{_rem_forward.3} parent=5 // pred_region
        %s277 = ssub.s32 %s20, 1
        %s278 = sand.u32 %s54, 1
        %s279 = scalar_lea.sflag [#allocation3], %s278
        %s280 = sand.u32 %s54, 1
        %s281 = smul.addr %s280, 32
        %s282 = scalar_lea.vmem [#allocation2], %s281
        // Predicated region
        $region41: #{_rem_forward.3} parent=39 // pred_check
          %p283 = pneg %p67
        $region42: #{_rem_forward.3} parent=39 // pred_check_branch
          %285 = sbr.rel (%p283) target = $region44
        $region43: #{_rem_forward.3} parent=39 // pred_region
          %287 = dma.done %s279, 512
        $region44: #{_rem_forward.3} parent=39 // pred_fallthru
          _
        %s288 = sand.u32 %s25, 1
        %s289 = scalar_lea.sflag [#allocation5], %s288
        %s290 = sand.u32 %s80, 1
        %s291 = scalar_lea.vmem [#allocation4], %s290
        // Predicated region
        $region45: #{_rem_forward.3} parent=39 // pred_check
          %p292 = pneg %p93
        $region46: #{_rem_forward.3} parent=39 // pred_check_branch
          %294 = sbr.rel (%p292) target = $region48
        $region47: #{_rem_forward.3} parent=39 // pred_region
          %296 = dma.done %s289, 16
        $region48: #{_rem_forward.3} parent=39 // pred_fallthru
          _
        %s297 = sand.u32 %s25, 1
        %s298 = scalar_lea.sflag [#allocation5], %s297
        %s299 = sand.u32 %s106, 1
        %s300 = smul.addr %s299, 64
        %s301 = scalar_lea.vmem [#allocation6], %s300
        // Predicated region
        $region49: #{_rem_forward.3} parent=39 // pred_check
          %p302 = pneg %p119
        $region50: #{_rem_forward.3} parent=39 // pred_check_branch
          %304 = sbr.rel (%p302) target = $region52
        $region51: #{_rem_forward.3} parent=39 // pred_region
          %306 = dma.done %s298, 1024
        $region52: #{_rem_forward.3} parent=39 // pred_fallthru
          _
        %s307 = sand.u32 %s132, 1
        %s308 = scalar_lea.sflag [#allocation8], %s307
        %s309 = sand.u32 %s132, 1
        %s310 = scalar_lea.vmem [#allocation7], %s309
        // Predicated region
        $region53: #{_rem_forward.3} parent=39 // pred_check
          %p311 = pneg %p145
        $region54: #{_rem_forward.3} parent=39 // pred_check_branch
          %313 = sbr.rel (%p311) target = $region56
        $region55: #{_rem_forward.3} parent=39 // pred_region
          %315 = dma.done %s308, 16
        $region56: #{_rem_forward.3} parent=39 // pred_fallthru
          _
        %p316 = pneg %p41
        %p317 = pneg %p38
        %s318 = sand.u32 %s54, 1
        %s319 = scalar_lea.sflag [#allocation3], %s318
        %s320 = sand.u32 %s54, 1
        %s321 = smul.addr %s320, 32
        %s322 = scalar_lea.vmem [#allocation2], %s321
        %p323 = pneg %p67
        %p324 = pneg %p64
        %s325 = sand.u32 %s25, 1
        %s326 = scalar_lea.sflag [#allocation5], %s325
        %s327 = sand.u32 %s80, 1
        %s328 = scalar_lea.vmem [#allocation4], %s327
        %p329 = pneg %p93
        %p330 = pneg %p90
        %s331 = sand.u32 %s25, 1
        %s332 = scalar_lea.sflag [#allocation5], %s331
        %s333 = sand.u32 %s106, 1
        %s334 = smul.addr %s333, 64
        %s335 = scalar_lea.vmem [#allocation6], %s334
        %p336 = pneg %p119
        %p337 = pneg %p116
        %s338 = sand.u32 %s132, 1
        %s339 = scalar_lea.sflag [#allocation8], %s338
        %s340 = sand.u32 %s132, 1
        %s341 = scalar_lea.vmem [#allocation7], %s340
        %p342 = pneg %p145
        %p343 = pneg %p142
        %p344 = pneg %p171
        %p345 = pneg %p168
        %p346 = scmp.lt.s32.totalorder %s25, 1
        %s347 = scalar_select %p346, %s25, 1
        %s348 = smul.addr %s347, 2
        %s349 = smul.addr %s348, 8
        %s350 = scalar_lea.vmem %s5, %s349
        %p351 = scmp.lt.s32.totalorder %s25, 1
        %s352 = scalar_select %p351, %s25, 1
        %s353 = smul.addr %s352, 2
        %s354 = smul.addr %s353, 8
        %s355 = scalar_lea.vmem %s5, %s354
        %v357 = vld [vmem:[%s0] sm:$0xff]
        %v358 = vld [vmem:[%s0 + $0x8] sm:$0xff]
        %v359 = vpack.c.bf16 %v358, %v357
        %v360 = vld [vmem:[%s282] sm:$0xf]
        %v361 = vld [vmem:[%s282 + $0x4] sm:$0xf]
        %v362 = vld [vmem:[%s282 + $0x8] sm:$0xf]
        %v363 = vld [vmem:[%s282 + $0xc] sm:$0xf]
        %v364 = vld [vmem:[%s282 + $0x10] sm:$0xf]
        %v365 = vld [vmem:[%s282 + $0x14] sm:$0xf]
        %v366 = vld [vmem:[%s282 + $0x18] sm:$0xf]
        %v367 = vld [vmem:[%s282 + $0x1c] sm:$0xf]
        %v368 = vld [vmem:[%s291] sm:$0x1]
        %v370 = vperm.slane %v368, 0
        %v380 = vunpack.c.l.b16 %v360
        %v381 = vunpack.c.l.b16 %v361
        %v382 = vunpack.c.l.b16 %v362
        %v383 = vunpack.c.l.b16 %v363
        %v384 = vunpack.c.l.b16 %v364
        %v385 = vunpack.c.l.b16 %v365
        %v386 = vunpack.c.l.b16 %v366
        %v387 = vunpack.c.l.b16 %v367
        %v388 = vpack.c.b16 %v381, %v380
        %v389 = vpack.c.b16 %v383, %v382
        %v390 = vpack.c.b16 %v385, %v384
        %v391 = vpack.c.b16 %v387, %v386
        %vm396 = vcmask 523264
        %v398 = vsel %vm396, %v359, 0
        %400 = vmatpush.bf16.msra.mxu0 0
        %401 = vmatpush.bf16.msra.mxu0 0
        %402 = vmatpush.bf16.msra.mxu0 0
        %403 = vmatpush.bf16.msra.mxu0 0
        %404 = vmatpush.bf16.msra.mxu0 %v391
        %405 = vmatpush.bf16.msra.mxu0 %v390
        %406 = vmatpush.bf16.msra.mxu0 %v389
        %407 = vmatpush.bf16.msra.mxu0 %v388
        %408 = vmatmul.bf16.gmra.mxu0 %v398
        %v409 = vpop.f32.mrf.mxu0
        %v410 = vadd.f32 %v370, %v409
        %v411 = vpop.f32.mrf.mxu0
        %v412 = vadd.f32 %v370, %v411
        %413 = vdwg.mxu0
        %v414 = vmax.f32 %v410, 0.0
        %v415 = vmax.f32 %v412, 0.0
        %v416 = vpack.c.bf16 %v415, %v414
        %v417 = vld [vmem:[%s301] sm:$0xf]
        %v418 = vld [vmem:[%s301 + $0x4] sm:$0xf]
        %v419 = vld [vmem:[%s301 + $0x8] sm:$0xf]
        %v420 = vld [vmem:[%s301 + $0xc] sm:$0xf]
        %v421 = vld [vmem:[%s301 + $0x10] sm:$0xf]
        %v422 = vld [vmem:[%s301 + $0x14] sm:$0xf]
        %v423 = vld [vmem:[%s301 + $0x18] sm:$0xf]
        %v424 = vld [vmem:[%s301 + $0x1c] sm:$0xf]
        %v425 = vld [vmem:[%s301 + $0x20] sm:$0xf]
        %v426 = vld [vmem:[%s301 + $0x24] sm:$0xf]
        %v427 = vld [vmem:[%s301 + $0x28] sm:$0xf]
        %v428 = vld [vmem:[%s301 + $0x2c] sm:$0xf]
        %v429 = vld [vmem:[%s301 + $0x30] sm:$0xf]
        %v430 = vld [vmem:[%s301 + $0x34] sm:$0xf]
        %v431 = vld [vmem:[%s301 + $0x38] sm:$0xf]
        %v432 = vld [vmem:[%s301 + $0x3c] sm:$0xf]
        %v433 = vld [vmem:[%s310] sm:$0x1]
        %v435 = vperm.slane %v433, 0
        %v453 = vunpack.c.l.b16 %v417
        %v454 = vunpack.c.l.b16 %v418
        %v455 = vunpack.c.l.b16 %v419
        %v456 = vunpack.c.l.b16 %v420
        %v457 = vunpack.c.l.b16 %v421
        %v458 = vunpack.c.l.b16 %v422
        %v459 = vunpack.c.l.b16 %v423
        %v460 = vunpack.c.l.b16 %v424
        %v461 = vunpack.c.l.b16 %v425
        %v462 = vunpack.c.l.b16 %v426
        %v463 = vunpack.c.l.b16 %v427
        %v464 = vunpack.c.l.b16 %v428
        %v465 = vunpack.c.l.b16 %v429
        %v466 = vunpack.c.l.b16 %v430
        %v467 = vunpack.c.l.b16 %v431
        %v468 = vunpack.c.l.b16 %v432
        %v469 = vpack.c.b16 %v454, %v453
        %v470 = vpack.c.b16 %v456, %v455
        %v471 = vpack.c.b16 %v458, %v457
        %v472 = vpack.c.b16 %v460, %v459
        %v473 = vpack.c.b16 %v462, %v461
        %v474 = vpack.c.b16 %v464, %v463
        %v475 = vpack.c.b16 %v466, %v465
        %v476 = vpack.c.b16 %v468, %v467
        %485 = vmatpush.bf16.msra.mxu0 %v476
        %486 = vmatpush.bf16.msra.mxu0 %v475
        %487 = vmatpush.bf16.msra.mxu0 %v474
        %488 = vmatpush.bf16.msra.mxu0 %v473
        %489 = vmatpush.bf16.msra.mxu0 %v472
        %490 = vmatpush.bf16.msra.mxu0 %v471
        %491 = vmatpush.bf16.msra.mxu0 %v470
        %492 = vmatpush.bf16.msra.mxu0 %v469
        %493 = vmatmul.bf16.gmra.mxu0 %v416
        %v494 = vpop.f32.mrf.mxu0
        %v495 = vadd.f32 %v435, %v494
        %v496 = vpop.f32.mrf.mxu0
        %v497 = vadd.f32 %v435, %v496
        %498 = vdwg.mxu0
        %499 = vst [vmem:[%s355] sm:$0xff] %v495
        %500 = vst [vmem:[%s355 + $0x8] sm:$0xff] %v497
        %p501 = scmp.lt.s32.totalorder %s25, 1
        %s502 = scalar_select %p501, %s25, 1
        %s503 = smul.addr %s502, 2
        %s504 = smul.addr %s503, 8
        %s505 = scalar_lea.vmem %s5, %s504
        // Predicated region
        $region57: #{_rem_forward.3} parent=39 // pred_check
          %p506 = pneg %p168
        $region58: #{_rem_forward.3} parent=39 // pred_check_branch
          %508 = sbr.rel (%p506) target = $region60
        $region59: #{_rem_forward.3} parent=39 // pred_region
          _
        $region60: #{_rem_forward.3} parent=39 // pred_fallthru
          _
      $region40: #{_rem_forward.3} parent=5 // pred_fallthru
        _
      %p509 = scmp.le.s32.totalorder 2, %s20
      // Predicated region
      $region61: #{_rem_forward.3} parent=5 // pred_check
        %p510 = pneg %p509
      $region62: #{_rem_forward.3} parent=5 // pred_check_branch
        %512 = sbr.rel (%p510) target = $region64
      $region63: #{_rem_forward.3} parent=5 // pred_region
        %s513 = ssub.s32 %s20, 2
        // Predicated region
        $region65: #{_rem_forward.3} parent=63 // pred_check
          %p514 = pneg %p174
        $region66: #{_rem_forward.3} parent=63 // pred_check_branch
          %516 = sbr.rel (%p514) target = $region68
        $region67: #{_rem_forward.3} parent=63 // pred_region
          %p517 = scmp.lt.s32.totalorder %s26, 1
          %s518 = scalar_select %p517, %s26, 1
          %s519 = smul.addr %s518, 2
          %s520 = smul.addr %s519, 8
          %s521 = scalar_lea.vmem %s5, %s520
        $region68: #{_rem_forward.3} parent=63 // pred_fallthru
          _
      $region64: #{_rem_forward.3} parent=5 // pred_fallthru
        _
    $region6: #{_rem_forward.3} parent=1 // loop_footer
      %s24 = sadd.s32 1, %s20
    $region7: #{_rem_forward.3} parent=1 // loop_footer_branch
      %19 = sbr.rel target = $region3
    $region8: #{_rem_forward.3} parent=1 // loop_exit
      _
    %522 = vsyncpa [#allocation3], 1
    %s523 = scalar_lea.sflag [#allocation3], 1
    %524 = vsyncpa %s523, 1
    %525 = vsyncpa [#allocation5], 1
    %s526 = scalar_lea.sflag [#allocation5], 1
    %527 = vsyncpa %s526, 1
    %528 = vsyncpa [#allocation8], 1
    %s529 = scalar_lea.sflag [#allocation8], 1
    %530 = vsyncpa %s529, 1

// kernel: _rem_forward.5
$region0: #{_rem_forward.5}
  #allocation0 [shape = 'u32[]', space=smem, size = 0x4, offset = 0x4, fixed_abs, tag = 'smem constant byte address 0x4 - core index']
  #allocation1 [shape = 'u32[72,128]{1,0:T(1,128)}', space=vmem, size = 0x9000, scoped, tag = 'internal scratch']
  %s0 = inlined_call_operand.vmem [shape: f32[2,16,128], index: 0, kind: input, shape index: {}]
  %s1 = inlined_call_operand.hbm [shape: bf16[128,128], index: 1, kind: input, shape index: {}]
  %s2 = inlined_call_operand.hbm [shape: f32[1,128], index: 2, kind: input, shape index: {}]
  %s3 = inlined_call_operand.vmem [shape: bf16[128,8], index: 3, kind: input, shape index: {}]
  %s4 = inlined_call_operand.hbm [shape: f32[1,8], index: 4, kind: input, shape index: {}]
  %s5 = inlined_call_operand.vmem [shape: f32[2,8,4], index: 5, kind: input, shape index: {}]
  %s6 = inlined_call_operand.vmem [shape: f32[2,2,4], index: 6, kind: output, shape index: {}]
  %s7 = sld [smem:[#allocation0]]
  $region69: #{_rem_forward.5} parent=0
    _
  %s9 = ssub.s32 1, %s7
  %s10 = scalar_select 0, %s9, %s7
  $region1: #{_rem_forward.5} parent=0
    #allocation2 [shape = 'u8[32768]{0}', space=vmem, size = 0x8000, scoped, tag = 'input window, operand 1, single buffered']
    #allocation3 [shape = 's32[2]{0}', space=sflag, size = 0x8, scoped, tag = 'scoped memory for _rem_forward.5']
    #allocation4 [shape = 'u8[512]{0}', space=vmem, size = 0x400, scoped, tag = 'input window, operand 2, single buffered']
    #allocation5 [shape = 's32[1]{0}', space=sflag, size = 0x4, scoped, tag = 'scoped memory for _rem_forward.5']
    #allocation6 [shape = 'u8[512]{0}', space=vmem, size = 0x400, scoped, tag = 'input window, operand 4, single buffered']
    %11 = vsyncpa [#allocation3], 0
    %12 = vsyncpa [#allocation5], 0
    loop: start=0, step=1, limit=4
    $region2: #{_rem_forward.5} parent=1 // loop_pre_header
      _
    $region3: #{_rem_forward.5} parent=1 // loop_header
      %s14 = sphi 0, %s18
      %p15 = scmp.ge.s32.totalorder %s14, 4
      %s24 = sphi 0, %s26
      %s27 = sphi 0, %s24
      %s28 = sphi 0, %s27
      %s44 = sphi 0, %s28
      %s48 = sphi 0, %s48
      %s50 = sphi 0, %s48
      %s51 = sphi 0, %s50
      %s65 = sphi 0, %s51
      %s69 = sphi 0, %s69
      %s71 = sphi 0, %s69
      %s72 = sphi 0, %s71
      %s86 = sphi 0, %s72
      %s90 = sphi 0, %s90
      %s92 = sphi 0, %s90
      %s93 = sphi 0, %s92
      %s107 = sphi 0, %s93
      %s111 = sphi 0, %s111
      %s113 = sphi 0, %s111
      %s114 = sphi 0, %s113
      %s128 = sphi 0, %s114
      %s134 = sphi 0, %s136
      %s137 = sphi 0, %s134
      %s138 = sphi 0, %s137
      %s154 = sphi 0, %s138
      %s160 = sphi 0, %s162
      %s163 = sphi 0, %s160
      %s164 = sphi 0, %s163
      %s180 = sphi 0, %s164
    $region4: #{_rem_forward.5} parent=1 // loop_header_branch
      %17 = sbr.rel (%p15) target = $region8
    $region5: #{_rem_forward.5} parent=1 // loop_body
      %s19 = ssub.s32 %s14, 1
      %s20 = ssub.s32 %s14, 2
      %s21 = sadd.s32 %s14, 1
      %s22 = ssub.s32 %s14, %s21
      %p23 = scmp.eq.s32.totalorder %s22, 0
      %s25 = sadd.s32 %s24, 1
      %s26 = scalar_select %p23, %s24, %s25
      %p29 = pneg %p23
      %p30 = scmp.eq.s32.totalorder %s14, 1
      %p31 = por %p29, %p30
      %p32 = scmp.ne.s32.totalorder %s24, %s27
      %p33 = scmp.eq.s32.totalorder %s14, 0
      %p34 = por %p32, %p33
      %p35 = scmp.ne.s32.totalorder %s24, %s27
      %p36 = scmp.eq.s32.totalorder %s19, 1
      %p37 = por %p35, %p36
      %p38 = scmp.ne.s32.totalorder %s27, %s28
      %p39 = scmp.eq.s32.totalorder %s19, 0
      %p40 = por %p38, %p39
      %p41 = scmp.ne.s32.totalorder %s27, %s28
      %p42 = scmp.eq.s32.totalorder %s20, 1
      %p43 = por %p41, %p42
      %p45 = scmp.ne.s32.totalorder %s28, %s44
      %p46 = scmp.eq.s32.totalorder %s20, 0
      %p47 = por %p45, %p46
      %s49 = sadd.s32 %s48, 1
      %p52 = scmp.eq.s32.totalorder %s14, 1
      %p53 = scmp.ne.s32.totalorder %s48, %s50
      %p54 = scmp.eq.s32.totalorder %s14, 0
      %p55 = por %p53, %p54
      %p56 = scmp.ne.s32.totalorder %s48, %s50
      %p57 = scmp.eq.s32.totalorder %s19, 1
      %p58 = por %p56, %p57
      %p59 = scmp.ne.s32.totalorder %s50, %s51
      %p60 = scmp.eq.s32.totalorder %s19, 0
      %p61 = por %p59, %p60
      %p62 = scmp.ne.s32.totalorder %s50, %s51
      %p63 = scmp.eq.s32.totalorder %s20, 1
      %p64 = por %p62, %p63
      %p66 = scmp.ne.s32.totalorder %s51, %s65
      %p67 = scmp.eq.s32.totalorder %s20, 0
      %p68 = por %p66, %p67
      %s70 = sadd.s32 %s69, 1
      %p73 = scmp.eq.s32.totalorder %s14, 1
      %p74 = scmp.ne.s32.totalorder %s69, %s71
      %p75 = scmp.eq.s32.totalorder %s14, 0
      %p76 = por %p74, %p75
      %p77 = scmp.ne.s32.totalorder %s69, %s71
      %p78 = scmp.eq.s32.totalorder %s19, 1
      %p79 = por %p77, %p78
      %p80 = scmp.ne.s32.totalorder %s71, %s72
      %p81 = scmp.eq.s32.totalorder %s19, 0
      %p82 = por %p80, %p81
      %p83 = scmp.ne.s32.totalorder %s71, %s72
      %p84 = scmp.eq.s32.totalorder %s20, 1
      %p85 = por %p83, %p84
      %p87 = scmp.ne.s32.totalorder %s72, %s86
      %p88 = scmp.eq.s32.totalorder %s20, 0
      %p89 = por %p87, %p88
      %s91 = sadd.s32 %s90, 1
      %p94 = scmp.eq.s32.totalorder %s14, 1
      %p95 = scmp.ne.s32.totalorder %s90, %s92
      %p96 = scmp.eq.s32.totalorder %s14, 0
      %p97 = por %p95, %p96
      %p98 = scmp.ne.s32.totalorder %s90, %s92
      %p99 = scmp.eq.s32.totalorder %s19, 1
      %p100 = por %p98, %p99
      %p101 = scmp.ne.s32.totalorder %s92, %s93
      %p102 = scmp.eq.s32.totalorder %s19, 0
      %p103 = por %p101, %p102
      %p104 = scmp.ne.s32.totalorder %s92, %s93
      %p105 = scmp.eq.s32.totalorder %s20, 1
      %p106 = por %p104, %p105
      %p108 = scmp.ne.s32.totalorder %s93, %s107
      %p109 = scmp.eq.s32.totalorder %s20, 0
      %p110 = por %p108, %p109
      %s112 = sadd.s32 %s111, 1
      %p115 = scmp.eq.s32.totalorder %s14, 1
      %p116 = scmp.ne.s32.totalorder %s111, %s113
      %p117 = scmp.eq.s32.totalorder %s14, 0
      %p118 = por %p116, %p117
      %p119 = scmp.ne.s32.totalorder %s111, %s113
      %p120 = scmp.eq.s32.totalorder %s19, 1
      %p121 = por %p119, %p120
      %p122 = scmp.ne.s32.totalorder %s113, %s114
      %p123 = scmp.eq.s32.totalorder %s19, 0
      %p124 = por %p122, %p123
      %p125 = scmp.ne.s32.totalorder %s113, %s114
      %p126 = scmp.eq.s32.totalorder %s20, 1
      %p127 = por %p125, %p126
      %p129 = scmp.ne.s32.totalorder %s114, %s128
      %p130 = scmp.eq.s32.totalorder %s20, 0
      %p131 = por %p129, %p130
      %s132 = ssub.s32 %s14, %s21
      %p133 = scmp.eq.s32.totalorder %s132, 0
      %s135 = sadd.s32 %s134, 1
      %s136 = scalar_select %p133, %s134, %s135
      %p139 = pneg %p133
      %p140 = scmp.eq.s32.totalorder %s14, 1
      %p141 = por %p139, %p140
      %p142 = scmp.ne.s32.totalorder %s134, %s137
      %p143 = scmp.eq.s32.totalorder %s14, 0
      %p144 = por %p142, %p143
      %p145 = scmp.ne.s32.totalorder %s134, %s137
      %p146 = scmp.eq.s32.totalorder %s19, 1
      %p147 = por %p145, %p146
      %p148 = scmp.ne.s32.totalorder %s137, %s138
      %p149 = scmp.eq.s32.totalorder %s19, 0
      %p150 = por %p148, %p149
      %p151 = scmp.ne.s32.totalorder %s137, %s138
      %p152 = scmp.eq.s32.totalorder %s20, 1
      %p153 = por %p151, %p152
      %p155 = scmp.ne.s32.totalorder %s138, %s154
      %p156 = scmp.eq.s32.totalorder %s20, 0
      %p157 = por %p155, %p156
      %s158 = ssub.s32 %s14, %s21
      %p159 = scmp.eq.s32.totalorder %s158, 0
      %s161 = sadd.s32 %s160, 1
      %s162 = scalar_select %p159, %s160, %s161
      %p165 = pneg %p159
      %p166 = scmp.eq.s32.totalorder %s14, 1
      %p167 = por %p165, %p166
      %p168 = scmp.ne.s32.totalorder %s160, %s163
      %p169 = scmp.eq.s32.totalorder %s14, 0
      %p170 = por %p168, %p169
      %p171 = scmp.ne.s32.totalorder %s160, %s163
      %p172 = scmp.eq.s32.totalorder %s19, 1
      %p173 = por %p171, %p172
      %p174 = scmp.ne.s32.totalorder %s163, %s164
      %p175 = scmp.eq.s32.totalorder %s19, 0
      %p176 = por %p174, %p175
      %p177 = scmp.ne.s32.totalorder %s163, %s164
      %p178 = scmp.eq.s32.totalorder %s20, 1
      %p179 = por %p177, %p178
      %p181 = scmp.ne.s32.totalorder %s164, %s180
      %p182 = scmp.eq.s32.totalorder %s20, 0
      %p183 = por %p181, %p182
      %p184 = scmp.le.s32.totalorder 1, %s14
      %p185 = scmp.lt.s32.totalorder %s14, 3
      %p186 = pnand %p184, %p185
      %p187 = pneg %p186
      // Predicated region
      $region9: #{_rem_forward.5} parent=5 // pred_check
        _
      $region10: #{_rem_forward.5} parent=5 // pred_check_branch
        %189 = sbr.rel (%p186) target = $region12
      $region11: #{_rem_forward.5} parent=5 // pred_region
        %s190 = ssub.s32 %s14, 1
        // Predicated region
        $region13: #{_rem_forward.5} parent=11 // pred_check
          %p191 = pneg %p61
        $region14: #{_rem_forward.5} parent=11 // pred_check_branch
          %193 = sbr.rel (%p191) target = $region16
        $region15: #{_rem_forward.5} parent=11 // pred_region
          %195 = vsyncadd [#allocation3], 0
          %s196 = sshll.u32 %s1, 4
          %s197 = int_to_ptr.hbm [resolvable:$true] %s196
          %s198 = sshll.u32 [#allocation2], 4
          %s199 = int_to_ptr.vmem [resolvable:$true] %s198
          %204 = dma.hbm_to_vmem [thread:$0]  %s197, 1024, %s199, [#allocation3], 64, 64, 4
        $region16: #{_rem_forward.5} parent=11 // pred_fallthru
          _
        // Predicated region
        $region17: #{_rem_forward.5} parent=11 // pred_check
          %p205 = pneg %p82
        $region18: #{_rem_forward.5} parent=11 // pred_check_branch
          %207 = sbr.rel (%p205) target = $region20
        $region19: #{_rem_forward.5} parent=11 // pred_region
          %209 = vsyncadd [#allocation5], 0
          %s211 = sshll.u32 %s2, 4
          %s212 = int_to_ptr.hbm [resolvable:$true] %s211
          %s213 = sshll.u32 [#allocation4], 4
          %s214 = int_to_ptr.vmem [resolvable:$true] %s213
          %216 = dma.hbm_to_vmem [thread:$0]  %s212, 16, %s214, [#allocation5]
        $region20: #{_rem_forward.5} parent=11 // pred_fallthru
          _
        // Predicated region
        $region21: #{_rem_forward.5} parent=11 // pred_check
          %p217 = pneg %p103
        $region22: #{_rem_forward.5} parent=11 // pred_check_branch
          %219 = sbr.rel (%p217) target = $region24
        $region23: #{_rem_forward.5} parent=11 // pred_region
          _
        $region24: #{_rem_forward.5} parent=11 // pred_fallthru
          _
        // Predicated region
        $region25: #{_rem_forward.5} parent=11 // pred_check
          %p220 = pneg %p124
        $region26: #{_rem_forward.5} parent=11 // pred_check_branch
          %222 = sbr.rel (%p220) target = $region28
        $region27: #{_rem_forward.5} parent=11 // pred_region
          %224 = vsyncadd [#allocation5], 0
          %s226 = sshll.u32 %s4, 4
          %s227 = int_to_ptr.hbm [resolvable:$true] %s226
          %s228 = sshll.u32 [#allocation6], 4
          %s229 = int_to_ptr.vmem [resolvable:$true] %s228
          %231 = dma.hbm_to_vmem [thread:$0]  %s227, 16, %s229, [#allocation5]
        $region28: #{_rem_forward.5} parent=11 // pred_fallthru
          _
      $region12: #{_rem_forward.5} parent=5 // pred_fallthru
        _
      %p232 = scmp.lt.s32.totalorder %s14, 2
      // Predicated region
      $region29: #{_rem_forward.5} parent=5 // pred_check
        %p233 = pneg %p232
      $region30: #{_rem_forward.5} parent=5 // pred_check_branch
        %235 = sbr.rel (%p233) target = $region32
      $region31: #{_rem_forward.5} parent=5 // pred_region
        // Predicated region
        $region33: #{_rem_forward.5} parent=31 // pred_check
          %p236 = pneg %p34
        $region34: #{_rem_forward.5} parent=31 // pred_check_branch
          %238 = sbr.rel (%p236) target = $region36
        $region35: #{_rem_forward.5} parent=31 // pred_region
          %p239 = scmp.lt.s32.totalorder %s14, 1
          %s240 = scalar_select %p239, %s14, 1
          %s241 = smul.addr %s240, 2
          %s242 = smul.addr %s241, 8
          %s243 = scalar_lea.vmem %s0, %s242
        $region36: #{_rem_forward.5} parent=31 // pred_fallthru
          _
        // Predicated region
        $region37: #{_rem_forward.5} parent=31 // pred_check
          %p244 = pneg %p144
        $region38: #{_rem_forward.5} parent=31 // pred_check_branch
          %246 = sbr.rel (%p244) target = $region40
        $region39: #{_rem_forward.5} parent=31 // pred_region
          %p247 = scmp.lt.s32.totalorder %s14, 1
          %s248 = scalar_select %p247, %s14, 1
          %s249 = smul.addr %s248, 8
          %s250 = scalar_lea.vmem %s5, %s249
        $region40: #{_rem_forward.5} parent=31 // pred_fallthru
          _
      $region32: #{_rem_forward.5} parent=5 // pred_fallthru
        _
      %p251 = scmp.le.s32.totalorder 1, %s14
      %p252 = scmp.lt.s32.totalorder %s14, 3
      %p253 = pnand %p251, %p252
      %p254 = pneg %p253
      // Predicated region
      $region41: #{_rem_forward.5} parent=5 // pred_check
        _
      $region42: #{_rem_forward.5} parent=5 // pred_check_branch
        %256 = sbr.rel (%p253) target = $region44
      $region43: #{_rem_forward.5} parent=5 // pred_region
        %s257 = ssub.s32 %s14, 1
        // Predicated region
        $region45: #{_rem_forward.5} parent=43 // pred_check
          %p258 = pneg %p61
        $region46: #{_rem_forward.5} parent=43 // pred_check_branch
          %260 = sbr.rel (%p258) target = $region48
        $region47: #{_rem_forward.5} parent=43 // pred_region
          %262 = dma.done [#allocation3], 1024
        $region48: #{_rem_forward.5} parent=43 // pred_fallthru
          _
        // Predicated region
        $region49: #{_rem_forward.5} parent=43 // pred_check
          %p263 = pneg %p82
        $region50: #{_rem_forward.5} parent=43 // pred_check_branch
          %265 = sbr.rel (%p263) target = $region52
        $region51: #{_rem_forward.5} parent=43 // pred_region
          %267 = dma.done [#allocation5], 16
        $region52: #{_rem_forward.5} parent=43 // pred_fallthru
          _
        // Predicated region
        $region53: #{_rem_forward.5} parent=43 // pred_check
          %p268 = pneg %p124
        $region54: #{_rem_forward.5} parent=43 // pred_check_branch
          %270 = sbr.rel (%p268) target = $region56
        $region55: #{_rem_forward.5} parent=43 // pred_region
          %272 = dma.done [#allocation5], 16
        $region56: #{_rem_forward.5} parent=43 // pred_fallthru
          _
        %p273 = scmp.lt.s32.totalorder %s19, 1
        %s274 = scalar_select %p273, %s19, 1
        %s275 = smul.addr %s274, 2
        %s276 = smul.addr %s275, 8
        %s277 = scalar_lea.vmem %s0, %s276
        %p278 = pneg %p40
        %p279 = pneg %p37
        %p280 = pneg %p61
        %p281 = pneg %p58
        %p282 = pneg %p82
        %p283 = pneg %p79
        %p284 = pneg %p103
        %p285 = pneg %p100
        %p286 = pneg %p124
        %p287 = pneg %p121
        %p288 = scmp.lt.s32.totalorder %s19, 1
        %s289 = scalar_select %p288, %s19, 1
        %s290 = smul.addr %s289, 8
        %s291 = scalar_lea.vmem %s5, %s290
        %p292 = pneg %p150
        %p293 = pneg %p147
        %p294 = pneg %p176
        %p295 = pneg %p173
        %p296 = scmp.lt.s32.totalorder %s19, 1
        %s297 = scalar_select %p296, %s19, 1
        %s298 = smul.addr %s297, 2
        %s299 = scalar_lea.vmem %s6, %s298
        %p300 = scmp.lt.s32.totalorder %s19, 1
        %s301 = scalar_select %p300, %s19, 1
        %s302 = smul.addr %s301, 2
        %s303 = smul.addr %s302, 8
        %s304 = scalar_lea.vmem %s0, %s303
        %p305 = scmp.lt.s32.totalorder %s19, 1
        %s306 = scalar_select %p305, %s19, 1
        %s307 = smul.addr %s306, 8
        %s308 = scalar_lea.vmem %s5, %s307
        %p309 = scmp.lt.s32.totalorder %s19, 1
        %s310 = scalar_select %p309, %s19, 1
        %s311 = smul.addr %s310, 2
        %s312 = scalar_lea.vmem %s6, %s311
        %v313 = vld [vmem:[%s304] sm:$0xff]
        %v314 = vld [vmem:[%s304 + $0x8] sm:$0xff]
        %v315 = vlaneseq
        %v316 = vshrl.u32 %v315, 7
        %v317 = vadd.s32 %v316, 8
        %vm318 = vcmp.lt.s32.totalorder %v316, 0
        %v319 = vsub.s32 0, %v316
        %v320 = vsel %vm318, %v319, %v316
        %v321 = vshrl.u32 %v320, 3
        %v322 = vand.u32 %v320, 7
        %v323 = vsub.s32 0, %v322
        %v324 = vsel %vm318, %v323, %v322
        %vm325 = vcmp.lt.s32.totalorder %v317, 0
        %v326 = vsub.s32 0, %v317
        %v327 = vsel %vm325, %v326, %v317
        %v328 = vshrl.u32 %v327, 3
        %v329 = vand.u32 %v327, 7
        %v330 = vsub.s32 0, %v329
        %v331 = vsel %vm325, %v330, %v329
        %vm332 = vcmp.ne.s32.totalorder %v324, 0
        %vm333 = vcmp.ne.s32.totalorder %v331, 0
        %vm334 = vcmp.lt.s32.totalorder %v324, 0
        %vm335 = vcmp.lt.s32.totalorder %v331, 0
        %vm336 = vmand %vm334, %vm332
        %vm337 = vmand %vm335, %vm333
        %v338 = vadd.s32 %v324, 8
        %v339 = vadd.s32 %v331, 8
        %v340 = vsel %vm336, %v338, %v324
        %v341 = vsel %vm337, %v339, %v331
        %vm342 = vcmp.lt.s32.totalorder %v340, 3
        %vm343 = vcmp.lt.s32.totalorder %v341, 3
        %v344 = vsel %vm342, %v313, -1e+30
        %v345 = vsel %vm343, %v314, -1e+30
        %v346 = vrot.slane %v344, 4
        %v347 = vmax.f32 %v344, %v346
        %v348 = vrot.slane %v347, 2
        %v349 = vmax.f32 %v347, %v348
        %v350 = vrot.slane %v349, 1
        %v351 = vmax.f32 %v349, %v350
        %v352 = vrot.slane %v345, 4
        %v353 = vmax.f32 %v345, %v352
        %v354 = vrot.slane %v353, 2
        %v355 = vmax.f32 %v353, %v354
        %v356 = vrot.slane %v355, 1
        %v357 = vmax.f32 %v355, %v356
        %vm358 = vcmask 1040384
        %v359 = vsel %vm358, %v351, %v357
        %v360 = vpack.c.bf16 %v359, %v359
        %v361 = vld [vmem:[#allocation2] sm:$0xf]
        %v362 = vld [vmem:[#allocation2 + $0x4] sm:$0xf]
        %v363 = vld [vmem:[#allocation2 + $0x8] sm:$0xf]
        %v364 = vld [vmem:[#allocation2 + $0xc] sm:$0xf]
        %v365 = vld [vmem:[#allocation2 + $0x10] sm:$0xf]
        %v366 = vld [vmem:[#allocation2 + $0x14] sm:$0xf]
        %v367 = vld [vmem:[#allocation2 + $0x18] sm:$0xf]
        %v368 = vld [vmem:[#allocation2 + $0x1c] sm:$0xf]
        %v369 = vld [vmem:[#allocation2 + $0x20] sm:$0xf]
        %v370 = vld [vmem:[#allocation2 + $0x24] sm:$0xf]
        %v371 = vld [vmem:[#allocation2 + $0x28] sm:$0xf]
        %v372 = vld [vmem:[#allocation2 + $0x2c] sm:$0xf]
        %v373 = vld [vmem:[#allocation2 + $0x30] sm:$0xf]
        %v374 = vld [vmem:[#allocation2 + $0x34] sm:$0xf]
        %v375 = vld [vmem:[#allocation2 + $0x38] sm:$0xf]
        %v376 = vld [vmem:[#allocation2 + $0x3c] sm:$0xf]
        %v377 = vld [vmem:[#allocation4] sm:$0x1]
        %v379 = vperm.slane %v377, 0
        %v397 = vunpack.c.l.b16 %v361
        %v398 = vunpack.c.l.b16 %v362
        %v399 = vunpack.c.l.b16 %v363
        %v400 = vunpack.c.l.b16 %v364
        %v401 = vunpack.c.l.b16 %v365
        %v402 = vunpack.c.l.b16 %v366
        %v403 = vunpack.c.l.b16 %v367
        %v404 = vunpack.c.l.b16 %v368
        %v405 = vunpack.c.l.b16 %v369
        %v406 = vunpack.c.l.b16 %v370
        %v407 = vunpack.c.l.b16 %v371
        %v408 = vunpack.c.l.b16 %v372
        %v409 = vunpack.c.l.b16 %v373
        %v410 = vunpack.c.l.b16 %v374
        %v411 = vunpack.c.l.b16 %v375
        %v412 = vunpack.c.l.b16 %v376
        %v413 = vpack.c.b16 %v398, %v397
        %v414 = vpack.c.b16 %v400, %v399
        %v415 = vpack.c.b16 %v402, %v401
        %v416 = vpack.c.b16 %v404, %v403
        %v417 = vpack.c.b16 %v406, %v405
        %v418 = vpack.c.b16 %v408, %v407
        %v419 = vpack.c.b16 %v410, %v409
        %v420 = vpack.c.b16 %v412, %v411
        %429 = vmatpush.bf16.msra.mxu0 %v420
        %430 = vmatpush.bf16.msra.mxu0 %v419
        %431 = vmatpush.bf16.msra.mxu0 %v418
        %432 = vmatpush.bf16.msra.mxu0 %v417
        %433 = vmatpush.bf16.msra.mxu0 %v416
        %434 = vmatpush.bf16.msra.mxu0 %v415
        %435 = vmatpush.bf16.msra.mxu0 %v414
        %436 = vmatpush.bf16.msra.mxu0 %v413
        %437 = vmatmul.bf16.gmra.mxu0 %v360
        %v438 = vpop.f32.mrf.mxu0
        %v439 = vadd.f32 %v379, %v438
        %v440 = vpop.f32.mrf.mxu0
        %441 = vdwg.mxu0
        %v442 = vmax.f32 %v439, 0.0
        %v443 = vpack.c.bf16 %v442, %v442
        %v444 = vld [vmem:[%s3] sm:$0xf]
        %v445 = vld [vmem:[%s3 + $0x4] sm:$0xf]
        %v446 = vld [vmem:[%s3 + $0x8] sm:$0xf]
        %v447 = vld [vmem:[%s3 + $0xc] sm:$0xf]
        %v448 = vld [vmem:[%s3 + $0x10] sm:$0xf]
        %v449 = vld [vmem:[%s3 + $0x14] sm:$0xf]
        %v450 = vld [vmem:[%s3 + $0x18] sm:$0xf]
        %v451 = vld [vmem:[%s3 + $0x1c] sm:$0xf]
        %v452 = vld [vmem:[%s3 + $0x20] sm:$0xf]
        %v453 = vld [vmem:[%s3 + $0x24] sm:$0xf]
        %v454 = vld [vmem:[%s3 + $0x28] sm:$0xf]
        %v455 = vld [vmem:[%s3 + $0x2c] sm:$0xf]
        %v456 = vld [vmem:[%s3 + $0x30] sm:$0xf]
        %v457 = vld [vmem:[%s3 + $0x34] sm:$0xf]
        %v458 = vld [vmem:[%s3 + $0x38] sm:$0xf]
        %v459 = vld [vmem:[%s3 + $0x3c] sm:$0xf]
        %v460 = vld [vmem:[#allocation6] sm:$0x1]
        %v462 = vperm.slane %v460, 0
        %v480 = vunpack.c.l.b16 %v444
        %v481 = vunpack.c.l.b16 %v445
        %v482 = vunpack.c.l.b16 %v446
        %v483 = vunpack.c.l.b16 %v447
        %v484 = vunpack.c.l.b16 %v448
        %v485 = vunpack.c.l.b16 %v449
        %v486 = vunpack.c.l.b16 %v450
        %v487 = vunpack.c.l.b16 %v451
        %v488 = vunpack.c.l.b16 %v452
        %v489 = vunpack.c.l.b16 %v453
        %v490 = vunpack.c.l.b16 %v454
        %v491 = vunpack.c.l.b16 %v455
        %v492 = vunpack.c.l.b16 %v456
        %v493 = vunpack.c.l.b16 %v457
        %v494 = vunpack.c.l.b16 %v458
        %v495 = vunpack.c.l.b16 %v459
        %v496 = vpack.c.b16 %v481, %v480
        %v497 = vpack.c.b16 %v483, %v482
        %v498 = vpack.c.b16 %v485, %v484
        %v499 = vpack.c.b16 %v487, %v486
        %v500 = vpack.c.b16 %v489, %v488
        %v501 = vpack.c.b16 %v491, %v490
        %v502 = vpack.c.b16 %v493, %v492
        %v503 = vpack.c.b16 %v495, %v494
        %512 = vmatpush.bf16.msra.mxu0 %v503
        %513 = vmatpush.bf16.msra.mxu0 %v502
        %514 = vmatpush.bf16.msra.mxu0 %v501
        %515 = vmatpush.bf16.msra.mxu0 %v500
        %516 = vmatpush.bf16.msra.mxu0 %v499
        %517 = vmatpush.bf16.msra.mxu0 %v498
        %518 = vmatpush.bf16.msra.mxu0 %v497
        %519 = vmatpush.bf16.msra.mxu0 %v496
        %520 = vmatmul.bf16.gmra.mxu0 %v443
        %v521 = vpop.f32.mrf.mxu0
        %v522 = vadd.f32 %v462, %v521
        %v523 = vpop.f32.mrf.mxu0
        %524 = vdwg.mxu0
        %v525 = vld [vmem:[%s308] sm:$0xff]
        %vm526 = vcmask 64512
        %v528 = vsel %vm526, %v522, 0
        %530 = vmatpush.msra.mxu0 0.0
        %531 = vmatpush.msra.mxu0 0.0
        %532 = vmatpush.msra.mxu0 0.0
        %533 = vmatpush.msra.mxu0 0.0
        %534 = vmatpush.msra.mxu0 0.0
        %535 = vmatpush.msra.mxu0 0.0
        %536 = vmatpush.msra.mxu0 0.0
        %537 = vmatpush.msra.mxu0 0.0
        %538 = vmatpush.msra.mxu0 0.0
        %539 = vmatpush.msra.mxu0 0.0
        %540 = vmatpush.msra.mxu0 0.0
        %541 = vmatpush.msra.mxu0 0.0
        %542 = vmatpush.msra.mxu0 0.0
        %543 = vmatpush.msra.mxu0 0.0
        %544 = vmatpush.msra.mxu0 0.0
        %545 = vmatpush.msra.mxu0 %v525
        %546 = vmatmul.f32.gmra.mxu0 %v528
        %v547 = vpop.f32.mrf.mxu0
        %v548 = vadd.f32 0.0, %v547
        %549 = vdwg.mxu0
        %vm550 = vcmask 25600
        %551 = vst.msk [vmem:[%s312] sm:$0x3] %vm550, %v548
        %p552 = scmp.lt.s32.totalorder %s19, 1
        %s553 = scalar_select %p552, %s19, 1
        %s554 = smul.addr %s553, 2
        %s555 = scalar_lea.vmem %s6, %s554
        // Predicated region
        $region57: #{_rem_forward.5} parent=43 // pred_check
          %p556 = pneg %p173
        $region58: #{_rem_forward.5} parent=43 // pred_check_branch
          %558 = sbr.rel (%p556) target = $region60
        $region59: #{_rem_forward.5} parent=43 // pred_region
          _
        $region60: #{_rem_forward.5} parent=43 // pred_fallthru
          _
      $region44: #{_rem_forward.5} parent=5 // pred_fallthru
        _
      %p559 = scmp.le.s32.totalorder 2, %s14
      // Predicated region
      $region61: #{_rem_forward.5} parent=5 // pred_check
        %p560 = pneg %p559
      $region62: #{_rem_forward.5} parent=5 // pred_check_branch
        %562 = sbr.rel (%p560) target = $region64
      $region63: #{_rem_forward.5} parent=5 // pred_region
        %s563 = ssub.s32 %s14, 2
        // Predicated region
        $region65: #{_rem_forward.5} parent=63 // pred_check
          %p564 = pneg %p179
        $region66: #{_rem_forward.5} parent=63 // pred_check_branch
          %566 = sbr.rel (%p564) target = $region68
        $region67: #{_rem_forward.5} parent=63 // pred_region
          %p567 = scmp.lt.s32.totalorder %s20, 1
          %s568 = scalar_select %p567, %s20, 1
          %s569 = smul.addr %s568, 2
          %s570 = scalar_lea.vmem %s6, %s569
        $region68: #{_rem_forward.5} parent=63 // pred_fallthru
          _
      $region64: #{_rem_forward.5} parent=5 // pred_fallthru
        _
    $region6: #{_rem_forward.5} parent=1 // loop_footer
      %s18 = sadd.s32 1, %s14
    $region7: #{_rem_forward.5} parent=1 // loop_footer_branch
      %13 = sbr.rel target = $region3
    $region8: #{_rem_forward.5} parent=1 // loop_exit
      _
    %571 = vsyncpa [#allocation3], 1
    %s572 = scalar_lea.sflag [#allocation3], 1
    %573 = vsyncpa %s572, 1
    %574 = vsyncpa [#allocation5], 1

// kernel: _rem_forward.4
$region0: #{_rem_forward.4}
  #allocation0 [shape = 'u32[]', space=smem, size = 0x4, offset = 0x4, fixed_abs, tag = 'smem constant byte address 0x4 - core index']
  #allocation1 [shape = 'u32[72,128]{1,0:T(1,128)}', space=vmem, size = 0x9000, scoped, tag = 'internal scratch']
  #allocation2 [shape = 'f32[16,128]{1,0:T(8,128)}', space=vmem, size = 0x2000, scoped, tag = 'scratch operand']
  %s0 = inlined_call_operand.vmem [shape: f32[2,16,128], index: 0, kind: input, shape index: {}]
  %s1 = inlined_call_operand.vmem [shape: f32[128,8], index: 1, kind: input, shape index: {}]
  %s2 = inlined_call_operand.hbm [shape: f32[8,128], index: 2, kind: input, shape index: {}]
  %s3 = inlined_call_operand.hbm [shape: bf16[2,2,128,128], index: 3, kind: input, shape index: {}]
  %s4 = inlined_call_operand.hbm [shape: f32[2,2,1,128], index: 4, kind: input, shape index: {}]
  %s5 = inlined_call_operand.hbm [shape: bf16[2,2,128,128], index: 5, kind: input, shape index: {}]
  %s6 = inlined_call_operand.hbm [shape: f32[2,2,1,128], index: 6, kind: input, shape index: {}]
  %s7 = inlined_call_operand.hbm [shape: bf16[2,2,128,128], index: 7, kind: input, shape index: {}]
  %s8 = inlined_call_operand.hbm [shape: f32[2,2,1,128], index: 8, kind: input, shape index: {}]
  %s9 = inlined_call_operand.hbm [shape: bf16[2,2,128,128], index: 9, kind: input, shape index: {}]
  %s10 = inlined_call_operand.hbm [shape: f32[2,2,1,128], index: 10, kind: input, shape index: {}]
  %s11 = inlined_call_operand.hbm [shape: f32[2,2,1,128], index: 11, kind: input, shape index: {}]
  %s12 = inlined_call_operand.hbm [shape: f32[2,2,1,128], index: 12, kind: input, shape index: {}]
  %s13 = inlined_call_operand.hbm [shape: bf16[2,2,128,2048], index: 13, kind: input, shape index: {}]
  %s14 = inlined_call_operand.hbm [shape: f32[2,2,1,2048], index: 14, kind: input, shape index: {}]
  %s15 = inlined_call_operand.hbm [shape: bf16[2,2,2048,128], index: 15, kind: input, shape index: {}]
  %s16 = inlined_call_operand.hbm [shape: f32[2,2,1,128], index: 16, kind: input, shape index: {}]
  %s17 = inlined_call_operand.hbm [shape: f32[2,2,1,128], index: 17, kind: input, shape index: {}]
  %s18 = inlined_call_operand.hbm [shape: f32[2,2,1,128], index: 18, kind: input, shape index: {}]
  %s19 = inlined_call_operand.vmem [shape: f32[2,16,128], index: 19, kind: output, shape index: {}]
  %s20 = sld [smem:[#allocation0]]
  $region185: #{_rem_forward.4} parent=0
    _
  %s22 = ssub.s32 1, %s20
  %s23 = scalar_select 0, %s22, %s20
  $region1: #{_rem_forward.4} parent=0
    #allocation3 [shape = 'u8[4096]{0}', space=vmem, size = 0x1000, scoped, tag = 'input window, operand 2, single buffered']
    #allocation4 [shape = 's32[2]{0}', space=sflag, size = 0x8, scoped, tag = 'scoped memory for _rem_forward.4']
    #allocation5 [shape = 'u8[65536]{0}', space=vmem, size = 0x10000, scoped, tag = 'input window, operand 3']
    #allocation6 [shape = 's32[2]{0}', space=sflag, size = 0x8, scoped, tag = 'scoped memory for _rem_forward.4']
    #allocation7 [shape = 'u8[1024]{0}', space=vmem, size = 0x400, scoped, tag = 'input window, operand 4']
    #allocation8 [shape = 'u8[65536]{0}', space=vmem, size = 0x10000, scoped, tag = 'input window, operand 5']
    #allocation9 [shape = 's32[2]{0}', space=sflag, size = 0x8, scoped, tag = 'scoped memory for _rem_forward.4']
    #allocation10 [shape = 'u8[1024]{0}', space=vmem, size = 0x400, scoped, tag = 'input window, operand 6']
    #allocation11 [shape = 'u8[65536]{0}', space=vmem, size = 0x10000, scoped, tag = 'input window, operand 7']
    #allocation12 [shape = 's32[2]{0}', space=sflag, size = 0x8, scoped, tag = 'scoped memory for _rem_forward.4']
    #allocation13 [shape = 'u8[1024]{0}', space=vmem, size = 0x400, scoped, tag = 'input window, operand 8']
    #allocation14 [shape = 'u8[65536]{0}', space=vmem, size = 0x10000, scoped, tag = 'input window, operand 9']
    #allocation15 [shape = 's32[2]{0}', space=sflag, size = 0x8, scoped, tag = 'scoped memory for _rem_forward.4']
    #allocation16 [shape = 'u8[1024]{0}', space=vmem, size = 0x400, scoped, tag = 'input window, operand 10']
    #allocation17 [shape = 'u8[1024]{0}', space=vmem, size = 0x400, scoped, tag = 'input window, operand 11']
    #allocation18 [shape = 's32[2]{0}', space=sflag, size = 0x8, scoped, tag = 'scoped memory for _rem_forward.4']
    #allocation19 [shape = 'u8[1024]{0}', space=vmem, size = 0x400, scoped, tag = 'input window, operand 12']
    #allocation20 [shape = 'u8[1048576]{0}', space=vmem, size = 0x100000, scoped, tag = 'input window, operand 13']
    #allocation21 [shape = 's32[2]{0}', space=sflag, size = 0x8, scoped, tag = 'scoped memory for _rem_forward.4']
    #allocation22 [shape = 'u8[16384]{0}', space=vmem, size = 0x4000, scoped, tag = 'input window, operand 14']
    #allocation23 [shape = 'u8[1048576]{0}', space=vmem, size = 0x100000, scoped, tag = 'input window, operand 15']
    #allocation24 [shape = 's32[2]{0}', space=sflag, size = 0x8, scoped, tag = 'scoped memory for _rem_forward.4']
    #allocation25 [shape = 'u8[1024]{0}', space=vmem, size = 0x400, scoped, tag = 'input window, operand 16']
    #allocation26 [shape = 'u8[1024]{0}', space=vmem, size = 0x400, scoped, tag = 'input window, operand 17']
    #allocation27 [shape = 's32[2]{0}', space=sflag, size = 0x8, scoped, tag = 'scoped memory for _rem_forward.4']
    #allocation28 [shape = 'u8[1024]{0}', space=vmem, size = 0x400, scoped, tag = 'input window, operand 18']
    %24 = vsyncpa [#allocation4], 0
    %25 = vsyncpa [#allocation6], 0
    %s26 = scalar_lea.sflag [#allocation6], 1
    %27 = vsyncpa %s26, 0
    %28 = vsyncpa [#allocation9], 0
    %s29 = scalar_lea.sflag [#allocation9], 1
    %30 = vsyncpa %s29, 0
    %31 = vsyncpa [#allocation12], 0
    %s32 = scalar_lea.sflag [#allocation12], 1
    %33 = vsyncpa %s32, 0
    %34 = vsyncpa [#allocation15], 0
    %s35 = scalar_lea.sflag [#allocation15], 1
    %36 = vsyncpa %s35, 0
    %37 = vsyncpa [#allocation18], 0
    %s38 = scalar_lea.sflag [#allocation18], 1
    %39 = vsyncpa %s38, 0
    %40 = vsyncpa [#allocation21], 0
    %s41 = scalar_lea.sflag [#allocation21], 1
    %42 = vsyncpa %s41, 0
    %43 = vsyncpa [#allocation24], 0
    %s44 = scalar_lea.sflag [#allocation24], 1
    %45 = vsyncpa %s44, 0
    %46 = vsyncpa [#allocation27], 0
    %s47 = scalar_lea.sflag [#allocation27], 1
    %48 = vsyncpa %s47, 0
    loop: start=0, step=1, limit=6
    $region2: #{_rem_forward.4} parent=1 // loop_pre_header
      _
    $region3: #{_rem_forward.4} parent=1 // loop_header
      %s50 = sphi 0, %s54
      %p51 = scmp.ge.s32.totalorder %s50, 6
      %s57 = sphi 0, %s69
      %s58 = sphi 0, %s65
      %s59 = sphi 0, %s57
      %s60 = sphi 0, %s58
      %s61 = sphi 0, %s59
      %s62 = sphi 0, %s60
      %s72 = sphi 0, %s74
      %s75 = sphi 0, %s72
      %s76 = sphi 0, %s75
      %s92 = sphi 0, %s76
      %s96 = sphi 0, %s96
      %s98 = sphi 0, %s96
      %s99 = sphi 0, %s98
      %s113 = sphi 0, %s99
      %s117 = sphi 0, %s117
      %s119 = sphi 0, %s117
      %s120 = sphi 0, %s119
      %s134 = sphi 0, %s120
      %s142 = sphi 0, %s144
      %s145 = sphi 0, %s142
      %s146 = sphi 0, %s145
      %s162 = sphi 0, %s146
      %s170 = sphi 0, %s172
      %s173 = sphi 0, %s170
      %s174 = sphi 0, %s173
      %s190 = sphi 0, %s174
      %s198 = sphi 0, %s200
      %s201 = sphi 0, %s198
      %s202 = sphi 0, %s201
      %s218 = sphi 0, %s202
      %s226 = sphi 0, %s228
      %s229 = sphi 0, %s226
      %s230 = sphi 0, %s229
      %s246 = sphi 0, %s230
      %s254 = sphi 0, %s256
      %s257 = sphi 0, %s254
      %s258 = sphi 0, %s257
      %s274 = sphi 0, %s258
      %s282 = sphi 0, %s284
      %s285 = sphi 0, %s282
      %s286 = sphi 0, %s285
      %s302 = sphi 0, %s286
      %s310 = sphi 0, %s312
      %s313 = sphi 0, %s310
      %s314 = sphi 0, %s313
      %s330 = sphi 0, %s314
      %s338 = sphi 0, %s340
      %s341 = sphi 0, %s338
      %s342 = sphi 0, %s341
      %s358 = sphi 0, %s342
      %s366 = sphi 0, %s368
      %s369 = sphi 0, %s366
      %s370 = sphi 0, %s369
      %s386 = sphi 0, %s370
      %s394 = sphi 0, %s396
      %s397 = sphi 0, %s394
      %s398 = sphi 0, %s397
      %s414 = sphi 0, %s398
      %s422 = sphi 0, %s424
      %s425 = sphi 0, %s422
      %s426 = sphi 0, %s425
      %s442 = sphi 0, %s426
      %s450 = sphi 0, %s452
      %s453 = sphi 0, %s450
      %s454 = sphi 0, %s453
      %s470 = sphi 0, %s454
      %s478 = sphi 0, %s480
      %s481 = sphi 0, %s478
      %s482 = sphi 0, %s481
      %s498 = sphi 0, %s482
      %s506 = sphi 0, %s508
      %s509 = sphi 0, %s506
      %s510 = sphi 0, %s509
      %s526 = sphi 0, %s510
      %s534 = sphi 0, %s536
      %s537 = sphi 0, %s534
      %s538 = sphi 0, %s537
      %s554 = sphi 0, %s538
      %s562 = sphi 0, %s564
      %s565 = sphi 0, %s562
      %s566 = sphi 0, %s565
      %s582 = sphi 0, %s566
      %s588 = sphi 0, %s590
      %s591 = sphi 0, %s588
      %s592 = sphi 0, %s591
      %s608 = sphi 0, %s592
    $region4: #{_rem_forward.4} parent=1 // loop_header_branch
      %53 = sbr.rel (%p51) target = $region8
    $region5: #{_rem_forward.4} parent=1 // loop_body
      %s55 = ssub.s32 %s50, 1
      %s56 = ssub.s32 %s50, 2
      %s63 = sadd.s32 1, %s58
      %p64 = scmp.ge.s32.totalorder %s63, 2
      %s65 = scalar_select %p64, 0, %s63
      %s66 = sadd.s32 1, %s57
      %s67 = scalar_select %p64, %s66, %s57
      %p68 = scmp.ge.s32.totalorder %s67, 2
      %s69 = scalar_select %p68, 0, %s67
      %s70 = ssub.s32 %s57, %s69
      %p71 = scmp.eq.s32.totalorder %s70, 0
      %s73 = sadd.s32 %s72, 1
      %s74 = scalar_select %p71, %s72, %s73
      %p77 = pneg %p71
      %p78 = scmp.eq.s32.totalorder %s50, 3
      %p79 = por %p77, %p78
      %p80 = scmp.ne.s32.totalorder %s72, %s75
      %p81 = scmp.eq.s32.totalorder %s50, 0
      %p82 = por %p80, %p81
      %p83 = scmp.ne.s32.totalorder %s72, %s75
      %p84 = scmp.eq.s32.totalorder %s55, 3
      %p85 = por %p83, %p84
      %p86 = scmp.ne.s32.totalorder %s75, %s76
      %p87 = scmp.eq.s32.totalorder %s55, 0
      %p88 = por %p86, %p87
      %p89 = scmp.ne.s32.totalorder %s75, %s76
      %p90 = scmp.eq.s32.totalorder %s56, 3
      %p91 = por %p89, %p90
      %p93 = scmp.ne.s32.totalorder %s76, %s92
      %p94 = scmp.eq.s32.totalorder %s56, 0
      %p95 = por %p93, %p94
      %s97 = sadd.s32 %s96, 1
      %p100 = scmp.eq.s32.totalorder %s50, 3
      %p101 = scmp.ne.s32.totalorder %s96, %s98
      %p102 = scmp.eq.s32.totalorder %s50, 0
      %p103 = por %p101, %p102
      %p104 = scmp.ne.s32.totalorder %s96, %s98
      %p105 = scmp.eq.s32.totalorder %s55, 3
      %p106 = por %p104, %p105
      %p107 = scmp.ne.s32.totalorder %s98, %s99
      %p108 = scmp.eq.s32.totalorder %s55, 0
      %p109 = por %p107, %p108
      %p110 = scmp.ne.s32.totalorder %s98, %s99
      %p111 = scmp.eq.s32.totalorder %s56, 3
      %p112 = por %p110, %p111
      %p114 = scmp.ne.s32.totalorder %s99, %s113
      %p115 = scmp.eq.s32.totalorder %s56, 0
      %p116 = por %p114, %p115
      %s118 = sadd.s32 %s117, 1
      %p121 = scmp.eq.s32.totalorder %s50, 3
      %p122 = scmp.ne.s32.totalorder %s117, %s119
      %p123 = scmp.eq.s32.totalorder %s50, 0
      %p124 = por %p122, %p123
      %p125 = scmp.ne.s32.totalorder %s117, %s119
      %p126 = scmp.eq.s32.totalorder %s55, 3
      %p127 = por %p125, %p126
      %p128 = scmp.ne.s32.totalorder %s119, %s120
      %p129 = scmp.eq.s32.totalorder %s55, 0
      %p130 = por %p128, %p129
      %p131 = scmp.ne.s32.totalorder %s119, %s120
      %p132 = scmp.eq.s32.totalorder %s56, 3
      %p133 = por %p131, %p132
      %p135 = scmp.ne.s32.totalorder %s120, %s134
      %p136 = scmp.eq.s32.totalorder %s56, 0
      %p137 = por %p135, %p136
      %s138 = ssub.s32 %s58, %s65
      %s139 = ssub.s32 %s57, %s69
      %s140 = sor.u32 %s138, %s139
      %p141 = scmp.eq.s32.totalorder %s140, 0
      %s143 = sadd.s32 %s142, 1
      %s144 = scalar_select %p141, %s142, %s143
      %p147 = pneg %p141
      %p148 = scmp.eq.s32.totalorder %s50, 3
      %p149 = por %p147, %p148
      %p150 = scmp.ne.s32.totalorder %s142, %s145
      %p151 = scmp.eq.s32.totalorder %s50, 0
      %p152 = por %p150, %p151
      %p153 = scmp.ne.s32.totalorder %s142, %s145
      %p154 = scmp.eq.s32.totalorder %s55, 3
      %p155 = por %p153, %p154
      %p156 = scmp.ne.s32.totalorder %s145, %s146
      %p157 = scmp.eq.s32.totalorder %s55, 0
      %p158 = por %p156, %p157
      %p159 = scmp.ne.s32.totalorder %s145, %s146
      %p160 = scmp.eq.s32.totalorder %s56, 3
      %p161 = por %p159, %p160
      %p163 = scmp.ne.s32.totalorder %s146, %s162
      %p164 = scmp.eq.s32.totalorder %s56, 0
      %p165 = por %p163, %p164
      %s166 = ssub.s32 %s58, %s65
      %s167 = ssub.s32 %s57, %s69
      %s168 = sor.u32 %s166, %s167
      %p169 = scmp.eq.s32.totalorder %s168, 0
      %s171 = sadd.s32 %s170, 1
      %s172 = scalar_select %p169, %s170, %s171
      %p175 = pneg %p169
      %p176 = scmp.eq.s32.totalorder %s50, 3
      %p177 = por %p175, %p176
      %p178 = scmp.ne.s32.totalorder %s170, %s173
      %p179 = scmp.eq.s32.totalorder %s50, 0
      %p180 = por %p178, %p179
      %p181 = scmp.ne.s32.totalorder %s170, %s173
      %p182 = scmp.eq.s32.totalorder %s55, 3
      %p183 = por %p181, %p182
      %p184 = scmp.ne.s32.totalorder %s173, %s174
      %p185 = scmp.eq.s32.totalorder %s55, 0
      %p186 = por %p184, %p185
      %p187 = scmp.ne.s32.totalorder %s173, %s174
      %p188 = scmp.eq.s32.totalorder %s56, 3
      %p189 = por %p187, %p188
      %p191 = scmp.ne.s32.totalorder %s174, %s190
      %p192 = scmp.eq.s32.totalorder %s56, 0
      %p193 = por %p191, %p192
      %s194 = ssub.s32 %s58, %s65
      %s195 = ssub.s32 %s57, %s69
      %s196 = sor.u32 %s194, %s195
      %p197 = scmp.eq.s32.totalorder %s196, 0
      %s199 = sadd.s32 %s198, 1
      %s200 = scalar_select %p197, %s198, %s199
      %p203 = pneg %p197
      %p204 = scmp.eq.s32.totalorder %s50, 3
      %p205 = por %p203, %p204
      %p206 = scmp.ne.s32.totalorder %s198, %s201
      %p207 = scmp.eq.s32.totalorder %s50, 0
      %p208 = por %p206, %p207
      %p209 = scmp.ne.s32.totalorder %s198, %s201
      %p210 = scmp.eq.s32.totalorder %s55, 3
      %p211 = por %p209, %p210
      %p212 = scmp.ne.s32.totalorder %s201, %s202
      %p213 = scmp.eq.s32.totalorder %s55, 0
      %p214 = por %p212, %p213
      %p215 = scmp.ne.s32.totalorder %s201, %s202
      %p216 = scmp.eq.s32.totalorder %s56, 3
      %p217 = por %p215, %p216
      %p219 = scmp.ne.s32.totalorder %s202, %s218
      %p220 = scmp.eq.s32.totalorder %s56, 0
      %p221 = por %p219, %p220
      %s222 = ssub.s32 %s58, %s65
      %s223 = ssub.s32 %s57, %s69
      %s224 = sor.u32 %s222, %s223
      %p225 = scmp.eq.s32.totalorder %s224, 0
      %s227 = sadd.s32 %s226, 1
      %s228 = scalar_select %p225, %s226, %s227
      %p231 = pneg %p225
      %p232 = scmp.eq.s32.totalorder %s50, 3
      %p233 = por %p231, %p232
      %p234 = scmp.ne.s32.totalorder %s226, %s229
      %p235 = scmp.eq.s32.totalorder %s50, 0
      %p236 = por %p234, %p235
      %p237 = scmp.ne.s32.totalorder %s226, %s229
      %p238 = scmp.eq.s32.totalorder %s55, 3
      %p239 = por %p237, %p238
      %p240 = scmp.ne.s32.totalorder %s229, %s230
      %p241 = scmp.eq.s32.totalorder %s55, 0
      %p242 = por %p240, %p241
      %p243 = scmp.ne.s32.totalorder %s229, %s230
      %p244 = scmp.eq.s32.totalorder %s56, 3
      %p245 = por %p243, %p244
      %p247 = scmp.ne.s32.totalorder %s230, %s246
      %p248 = scmp.eq.s32.totalorder %s56, 0
      %p249 = por %p247, %p248
      %s250 = ssub.s32 %s58, %s65
      %s251 = ssub.s32 %s57, %s69
      %s252 = sor.u32 %s250, %s251
      %p253 = scmp.eq.s32.totalorder %s252, 0
      %s255 = sadd.s32 %s254, 1
      %s256 = scalar_select %p253, %s254, %s255
      %p259 = pneg %p253
      %p260 = scmp.eq.s32.totalorder %s50, 3
      %p261 = por %p259, %p260
      %p262 = scmp.ne.s32.totalorder %s254, %s257
      %p263 = scmp.eq.s32.totalorder %s50, 0
      %p264 = por %p262, %p263
      %p265 = scmp.ne.s32.totalorder %s254, %s257
      %p266 = scmp.eq.s32.totalorder %s55, 3
      %p267 = por %p265, %p266
      %p268 = scmp.ne.s32.totalorder %s257, %s258
      %p269 = scmp.eq.s32.totalorder %s55, 0
      %p270 = por %p268, %p269
      %p271 = scmp.ne.s32.totalorder %s257, %s258
      %p272 = scmp.eq.s32.totalorder %s56, 3
      %p273 = por %p271, %p272
      %p275 = scmp.ne.s32.totalorder %s258, %s274
      %p276 = scmp.eq.s32.totalorder %s56, 0
      %p277 = por %p275, %p276
      %s278 = ssub.s32 %s58, %s65
      %s279 = ssub.s32 %s57, %s69
      %s280 = sor.u32 %s278, %s279
      %p281 = scmp.eq.s32.totalorder %s280, 0
      %s283 = sadd.s32 %s282, 1
      %s284 = scalar_select %p281, %s282, %s283
      %p287 = pneg %p281
      %p288 = scmp.eq.s32.totalorder %s50, 3
      %p289 = por %p287, %p288
      %p290 = scmp.ne.s32.totalorder %s282, %s285
      %p291 = scmp.eq.s32.totalorder %s50, 0
      %p292 = por %p290, %p291
      %p293 = scmp.ne.s32.totalorder %s282, %s285
      %p294 = scmp.eq.s32.totalorder %s55, 3
      %p295 = por %p293, %p294
      %p296 = scmp.ne.s32.totalorder %s285, %s286
      %p297 = scmp.eq.s32.totalorder %s55, 0
      %p298 = por %p296, %p297
      %p299 = scmp.ne.s32.totalorder %s285, %s286
      %p300 = scmp.eq.s32.totalorder %s56, 3
      %p301 = por %p299, %p300
      %p303 = scmp.ne.s32.totalorder %s286, %s302
      %p304 = scmp.eq.s32.totalorder %s56, 0
      %p305 = por %p303, %p304
      %s306 = ssub.s32 %s58, %s65
      %s307 = ssub.s32 %s57, %s69
      %s308 = sor.u32 %s306, %s307
      %p309 = scmp.eq.s32.totalorder %s308, 0
      %s311 = sadd.s32 %s310, 1
      %s312 = scalar_select %p309, %s310, %s311
      %p315 = pneg %p309
      %p316 = scmp.eq.s32.totalorder %s50, 3
      %p317 = por %p315, %p316
      %p318 = scmp.ne.s32.totalorder %s310, %s313
      %p319 = scmp.eq.s32.totalorder %s50, 0
      %p320 = por %p318, %p319
      %p321 = scmp.ne.s32.totalorder %s310, %s313
      %p322 = scmp.eq.s32.totalorder %s55, 3
      %p323 = por %p321, %p322
      %p324 = scmp.ne.s32.totalorder %s313, %s314
      %p325 = scmp.eq.s32.totalorder %s55, 0
      %p326 = por %p324, %p325
      %p327 = scmp.ne.s32.totalorder %s313, %s314
      %p328 = scmp.eq.s32.totalorder %s56, 3
      %p329 = por %p327, %p328
      %p331 = scmp.ne.s32.totalorder %s314, %s330
      %p332 = scmp.eq.s32.totalorder %s56, 0
      %p333 = por %p331, %p332
      %s334 = ssub.s32 %s58, %s65
      %s335 = ssub.s32 %s57, %s69
      %s336 = sor.u32 %s334, %s335
      %p337 = scmp.eq.s32.totalorder %s336, 0
      %s339 = sadd.s32 %s338, 1
      %s340 = scalar_select %p337, %s338, %s339
      %p343 = pneg %p337
      %p344 = scmp.eq.s32.totalorder %s50, 3
      %p345 = por %p343, %p344
      %p346 = scmp.ne.s32.totalorder %s338, %s341
      %p347 = scmp.eq.s32.totalorder %s50, 0
      %p348 = por %p346, %p347
      %p349 = scmp.ne.s32.totalorder %s338, %s341
      %p350 = scmp.eq.s32.totalorder %s55, 3
      %p351 = por %p349, %p350
      %p352 = scmp.ne.s32.totalorder %s341, %s342
      %p353 = scmp.eq.s32.totalorder %s55, 0
      %p354 = por %p352, %p353
      %p355 = scmp.ne.s32.totalorder %s341, %s342
      %p356 = scmp.eq.s32.totalorder %s56, 3
      %p357 = por %p355, %p356
      %p359 = scmp.ne.s32.totalorder %s342, %s358
      %p360 = scmp.eq.s32.totalorder %s56, 0
      %p361 = por %p359, %p360
      %s362 = ssub.s32 %s58, %s65
      %s363 = ssub.s32 %s57, %s69
      %s364 = sor.u32 %s362, %s363
      %p365 = scmp.eq.s32.totalorder %s364, 0
      %s367 = sadd.s32 %s366, 1
      %s368 = scalar_select %p365, %s366, %s367
      %p371 = pneg %p365
      %p372 = scmp.eq.s32.totalorder %s50, 3
      %p373 = por %p371, %p372
      %p374 = scmp.ne.s32.totalorder %s366, %s369
      %p375 = scmp.eq.s32.totalorder %s50, 0
      %p376 = por %p374, %p375
      %p377 = scmp.ne.s32.totalorder %s366, %s369
      %p378 = scmp.eq.s32.totalorder %s55, 3
      %p379 = por %p377, %p378
      %p380 = scmp.ne.s32.totalorder %s369, %s370
      %p381 = scmp.eq.s32.totalorder %s55, 0
      %p382 = por %p380, %p381
      %p383 = scmp.ne.s32.totalorder %s369, %s370
      %p384 = scmp.eq.s32.totalorder %s56, 3
      %p385 = por %p383, %p384
      %p387 = scmp.ne.s32.totalorder %s370, %s386
      %p388 = scmp.eq.s32.totalorder %s56, 0
      %p389 = por %p387, %p388
      %s390 = ssub.s32 %s58, %s65
      %s391 = ssub.s32 %s57, %s69
      %s392 = sor.u32 %s390, %s391
      %p393 = scmp.eq.s32.totalorder %s392, 0
      %s395 = sadd.s32 %s394, 1
      %s396 = scalar_select %p393, %s394, %s395
      %p399 = pneg %p393
      %p400 = scmp.eq.s32.totalorder %s50, 3
      %p401 = por %p399, %p400
      %p402 = scmp.ne.s32.totalorder %s394, %s397
      %p403 = scmp.eq.s32.totalorder %s50, 0
      %p404 = por %p402, %p403
      %p405 = scmp.ne.s32.totalorder %s394, %s397
      %p406 = scmp.eq.s32.totalorder %s55, 3
      %p407 = por %p405, %p406
      %p408 = scmp.ne.s32.totalorder %s397, %s398
      %p409 = scmp.eq.s32.totalorder %s55, 0
      %p410 = por %p408, %p409
      %p411 = scmp.ne.s32.totalorder %s397, %s398
      %p412 = scmp.eq.s32.totalorder %s56, 3
      %p413 = por %p411, %p412
      %p415 = scmp.ne.s32.totalorder %s398, %s414
      %p416 = scmp.eq.s32.totalorder %s56, 0
      %p417 = por %p415, %p416
      %s418 = ssub.s32 %s58, %s65
      %s419 = ssub.s32 %s57, %s69
      %s420 = sor.u32 %s418, %s419
      %p421 = scmp.eq.s32.totalorder %s420, 0
      %s423 = sadd.s32 %s422, 1
      %s424 = scalar_select %p421, %s422, %s423
      %p427 = pneg %p421
      %p428 = scmp.eq.s32.totalorder %s50, 3
      %p429 = por %p427, %p428
      %p430 = scmp.ne.s32.totalorder %s422, %s425
      %p431 = scmp.eq.s32.totalorder %s50, 0
      %p432 = por %p430, %p431
      %p433 = scmp.ne.s32.totalorder %s422, %s425
      %p434 = scmp.eq.s32.totalorder %s55, 3
      %p435 = por %p433, %p434
      %p436 = scmp.ne.s32.totalorder %s425, %s426
      %p437 = scmp.eq.s32.totalorder %s55, 0
      %p438 = por %p436, %p437
      %p439 = scmp.ne.s32.totalorder %s425, %s426
      %p440 = scmp.eq.s32.totalorder %s56, 3
      %p441 = por %p439, %p440
      %p443 = scmp.ne.s32.totalorder %s426, %s442
      %p444 = scmp.eq.s32.totalorder %s56, 0
      %p445 = por %p443, %p444
      %s446 = ssub.s32 %s58, %s65
      %s447 = ssub.s32 %s57, %s69
      %s448 = sor.u32 %s446, %s447
      %p449 = scmp.eq.s32.totalorder %s448, 0
      %s451 = sadd.s32 %s450, 1
      %s452 = scalar_select %p449, %s450, %s451
      %p455 = pneg %p449
      %p456 = scmp.eq.s32.totalorder %s50, 3
      %p457 = por %p455, %p456
      %p458 = scmp.ne.s32.totalorder %s450, %s453
      %p459 = scmp.eq.s32.totalorder %s50, 0
      %p460 = por %p458, %p459
      %p461 = scmp.ne.s32.totalorder %s450, %s453
      %p462 = scmp.eq.s32.totalorder %s55, 3
      %p463 = por %p461, %p462
      %p464 = scmp.ne.s32.totalorder %s453, %s454
      %p465 = scmp.eq.s32.totalorder %s55, 0
      %p466 = por %p464, %p465
      %p467 = scmp.ne.s32.totalorder %s453, %s454
      %p468 = scmp.eq.s32.totalorder %s56, 3
      %p469 = por %p467, %p468
      %p471 = scmp.ne.s32.totalorder %s454, %s470
      %p472 = scmp.eq.s32.totalorder %s56, 0
      %p473 = por %p471, %p472
      %s474 = ssub.s32 %s58, %s65
      %s475 = ssub.s32 %s57, %s69
      %s476 = sor.u32 %s474, %s475
      %p477 = scmp.eq.s32.totalorder %s476, 0
      %s479 = sadd.s32 %s478, 1
      %s480 = scalar_select %p477, %s478, %s479
      %p483 = pneg %p477
      %p484 = scmp.eq.s32.totalorder %s50, 3
      %p485 = por %p483, %p484
      %p486 = scmp.ne.s32.totalorder %s478, %s481
      %p487 = scmp.eq.s32.totalorder %s50, 0
      %p488 = por %p486, %p487
      %p489 = scmp.ne.s32.totalorder %s478, %s481
      %p490 = scmp.eq.s32.totalorder %s55, 3
      %p491 = por %p489, %p490
      %p492 = scmp.ne.s32.totalorder %s481, %s482
      %p493 = scmp.eq.s32.totalorder %s55, 0
      %p494 = por %p492, %p493
      %p495 = scmp.ne.s32.totalorder %s481, %s482
      %p496 = scmp.eq.s32.totalorder %s56, 3
      %p497 = por %p495, %p496
      %p499 = scmp.ne.s32.totalorder %s482, %s498
      %p500 = scmp.eq.s32.totalorder %s56, 0
      %p501 = por %p499, %p500
      %s502 = ssub.s32 %s58, %s65
      %s503 = ssub.s32 %s57, %s69
      %s504 = sor.u32 %s502, %s503
      %p505 = scmp.eq.s32.totalorder %s504, 0
      %s507 = sadd.s32 %s506, 1
      %s508 = scalar_select %p505, %s506, %s507
      %p511 = pneg %p505
      %p512 = scmp.eq.s32.totalorder %s50, 3
      %p513 = por %p511, %p512
      %p514 = scmp.ne.s32.totalorder %s506, %s509
      %p515 = scmp.eq.s32.totalorder %s50, 0
      %p516 = por %p514, %p515
      %p517 = scmp.ne.s32.totalorder %s506, %s509
      %p518 = scmp.eq.s32.totalorder %s55, 3
      %p519 = por %p517, %p518
      %p520 = scmp.ne.s32.totalorder %s509, %s510
      %p521 = scmp.eq.s32.totalorder %s55, 0
      %p522 = por %p520, %p521
      %p523 = scmp.ne.s32.totalorder %s509, %s510
      %p524 = scmp.eq.s32.totalorder %s56, 3
      %p525 = por %p523, %p524
      %p527 = scmp.ne.s32.totalorder %s510, %s526
      %p528 = scmp.eq.s32.totalorder %s56, 0
      %p529 = por %p527, %p528
      %s530 = ssub.s32 %s58, %s65
      %s531 = ssub.s32 %s57, %s69
      %s532 = sor.u32 %s530, %s531
      %p533 = scmp.eq.s32.totalorder %s532, 0
      %s535 = sadd.s32 %s534, 1
      %s536 = scalar_select %p533, %s534, %s535
      %p539 = pneg %p533
      %p540 = scmp.eq.s32.totalorder %s50, 3
      %p541 = por %p539, %p540
      %p542 = scmp.ne.s32.totalorder %s534, %s537
      %p543 = scmp.eq.s32.totalorder %s50, 0
      %p544 = por %p542, %p543
      %p545 = scmp.ne.s32.totalorder %s534, %s537
      %p546 = scmp.eq.s32.totalorder %s55, 3
      %p547 = por %p545, %p546
      %p548 = scmp.ne.s32.totalorder %s537, %s538
      %p549 = scmp.eq.s32.totalorder %s55, 0
      %p550 = por %p548, %p549
      %p551 = scmp.ne.s32.totalorder %s537, %s538
      %p552 = scmp.eq.s32.totalorder %s56, 3
      %p553 = por %p551, %p552
      %p555 = scmp.ne.s32.totalorder %s538, %s554
      %p556 = scmp.eq.s32.totalorder %s56, 0
      %p557 = por %p555, %p556
      %s558 = ssub.s32 %s58, %s65
      %s559 = ssub.s32 %s57, %s69
      %s560 = sor.u32 %s558, %s559
      %p561 = scmp.eq.s32.totalorder %s560, 0
      %s563 = sadd.s32 %s562, 1
      %s564 = scalar_select %p561, %s562, %s563
      %p567 = pneg %p561
      %p568 = scmp.eq.s32.totalorder %s50, 3
      %p569 = por %p567, %p568
      %p570 = scmp.ne.s32.totalorder %s562, %s565
      %p571 = scmp.eq.s32.totalorder %s50, 0
      %p572 = por %p570, %p571
      %p573 = scmp.ne.s32.totalorder %s562, %s565
      %p574 = scmp.eq.s32.totalorder %s55, 3
      %p575 = por %p573, %p574
      %p576 = scmp.ne.s32.totalorder %s565, %s566
      %p577 = scmp.eq.s32.totalorder %s55, 0
      %p578 = por %p576, %p577
      %p579 = scmp.ne.s32.totalorder %s565, %s566
      %p580 = scmp.eq.s32.totalorder %s56, 3
      %p581 = por %p579, %p580
      %p583 = scmp.ne.s32.totalorder %s566, %s582
      %p584 = scmp.eq.s32.totalorder %s56, 0
      %p585 = por %p583, %p584
      %s586 = ssub.s32 %s57, %s69
      %p587 = scmp.eq.s32.totalorder %s586, 0
      %s589 = sadd.s32 %s588, 1
      %s590 = scalar_select %p587, %s588, %s589
      %p593 = pneg %p587
      %p594 = scmp.eq.s32.totalorder %s50, 3
      %p595 = por %p593, %p594
      %p596 = scmp.ne.s32.totalorder %s588, %s591
      %p597 = scmp.eq.s32.totalorder %s50, 0
      %p598 = por %p596, %p597
      %p599 = scmp.ne.s32.totalorder %s588, %s591
      %p600 = scmp.eq.s32.totalorder %s55, 3
      %p601 = por %p599, %p600
      %p602 = scmp.ne.s32.totalorder %s591, %s592
      %p603 = scmp.eq.s32.totalorder %s55, 0
      %p604 = por %p602, %p603
      %p605 = scmp.ne.s32.totalorder %s591, %s592
      %p606 = scmp.eq.s32.totalorder %s56, 3
      %p607 = por %p605, %p606
      %p609 = scmp.ne.s32.totalorder %s592, %s608
      %p610 = scmp.eq.s32.totalorder %s56, 0
      %p611 = por %p609, %p610
      %p612 = scmp.le.s32.totalorder 1, %s50
      %p613 = scmp.lt.s32.totalorder %s50, 5
      %p614 = pnand %p612, %p613
      %p615 = pneg %p614
      // Predicated region
      $region9: #{_rem_forward.4} parent=5 // pred_check
        _
      $region10: #{_rem_forward.4} parent=5 // pred_check_branch
        %617 = sbr.rel (%p614) target = $region12
      $region11: #{_rem_forward.4} parent=5 // pred_region
        %s618 = ssub.s32 %s50, 1
        // Predicated region
        $region13: #{_rem_forward.4} parent=11 // pred_check
          %p619 = pneg %p109
        $region14: #{_rem_forward.4} parent=11 // pred_check_branch
          %621 = sbr.rel (%p619) target = $region16
        $region15: #{_rem_forward.4} parent=11 // pred_region
          _
        $region16: #{_rem_forward.4} parent=11 // pred_fallthru
          _
        // Predicated region
        $region17: #{_rem_forward.4} parent=11 // pred_check
          %p622 = pneg %p130
        $region18: #{_rem_forward.4} parent=11 // pred_check_branch
          %624 = sbr.rel (%p622) target = $region20
        $region19: #{_rem_forward.4} parent=11 // pred_region
          %626 = vsyncadd [#allocation4], 0
          %s628 = sshll.u32 %s2, 4
          %s629 = int_to_ptr.hbm [resolvable:$true] %s628
          %s630 = sshll.u32 [#allocation3], 4
          %s631 = int_to_ptr.vmem [resolvable:$true] %s630
          %633 = dma.hbm_to_vmem [thread:$0]  %s629, 128, %s631, [#allocation4]
        $region20: #{_rem_forward.4} parent=11 // pred_fallthru
          _
      $region12: #{_rem_forward.4} parent=5 // pred_fallthru
        _
      %p634 = scmp.lt.s32.totalorder %s50, 4
      // Predicated region
      $region21: #{_rem_forward.4} parent=5 // pred_check
        %p635 = pneg %p634
      $region22: #{_rem_forward.4} parent=5 // pred_check_branch
        %637 = sbr.rel (%p635) target = $region24
      $region23: #{_rem_forward.4} parent=5 // pred_region
        // Predicated region
        $region25: #{_rem_forward.4} parent=23 // pred_check
          %p638 = pneg %p82
        $region26: #{_rem_forward.4} parent=23 // pred_check_branch
          %640 = sbr.rel (%p638) target = $region28
        $region27: #{_rem_forward.4} parent=23 // pred_region
          %p641 = scmp.lt.s32.totalorder %s57, 1
          %s642 = scalar_select %p641, %s57, 1
          %s643 = smul.addr %s642, 2
          %s644 = smul.addr %s643, 8
          %s645 = scalar_lea.vmem %s0, %s644
        $region28: #{_rem_forward.4} parent=23 // pred_fallthru
          _
        // Predicated region
        $region29: #{_rem_forward.4} parent=23 // pred_check
          %p646 = pneg %p152
        $region30: #{_rem_forward.4} parent=23 // pred_check_branch
          %648 = sbr.rel (%p646) target = $region32
        $region31: #{_rem_forward.4} parent=23 // pred_region
          %s649 = sand.u32 %s50, 1
          %s650 = scalar_lea.sflag [#allocation6], %s649
          %s651 = sand.u32 %s142, 1
          %s652 = smul.addr %s651, 64
          %s653 = scalar_lea.vmem [#allocation5], %s652
          %655 = vsyncadd %s650, 0
          %s656 = smul.addr %s57, 16
          %s657 = smul.addr %s58, 32
          %s658 = sadd.s32 %s656, %s657
          %s659 = smul.addr %s658, 4
          %s660 = scalar_lea.hbm %s3, %s659
          %s661 = sshll.u32 %s660, 4
          %s662 = int_to_ptr.hbm [resolvable:$true] %s661
          %s663 = sshll.u32 %s653, 4
          %s664 = int_to_ptr.vmem [resolvable:$true] %s663
          %669 = dma.hbm_to_vmem [thread:$0]  %s662, 1024, %s664, %s650, 64, 64, 4
        $region32: #{_rem_forward.4} parent=23 // pred_fallthru
          _
        // Predicated region
        $region33: #{_rem_forward.4} parent=23 // pred_check
          %p670 = pneg %p180
        $region34: #{_rem_forward.4} parent=23 // pred_check_branch
          %672 = sbr.rel (%p670) target = $region36
        $region35: #{_rem_forward.4} parent=23 // pred_region
          %s673 = sand.u32 %s50, 1
          %s674 = scalar_lea.sflag [#allocation6], %s673
          %s675 = sand.u32 %s170, 1
          %s676 = scalar_lea.vmem [#allocation7], %s675
          %678 = vsyncadd %s674, 0
          %s679 = smul.addr %s58, 2
          %s680 = sadd.s32 %s57, %s679
          %s681 = scalar_lea.hbm %s4, %s680
          %s683 = sshll.u32 %s681, 4
          %s684 = int_to_ptr.hbm [resolvable:$true] %s683
          %s685 = sshll.u32 %s676, 4
          %s686 = int_to_ptr.vmem [resolvable:$true] %s685
          %688 = dma.hbm_to_vmem [thread:$0]  %s684, 16, %s686, %s674
        $region36: #{_rem_forward.4} parent=23 // pred_fallthru
          _
        // Predicated region
        $region37: #{_rem_forward.4} parent=23 // pred_check
          %p689 = pneg %p208
        $region38: #{_rem_forward.4} parent=23 // pred_check_branch
          %691 = sbr.rel (%p689) target = $region40
        $region39: #{_rem_forward.4} parent=23 // pred_region
          %s692 = sand.u32 %s50, 1
          %s693 = scalar_lea.sflag [#allocation9], %s692
          %s694 = sand.u32 %s198, 1
          %s695 = smul.addr %s694, 64
          %s696 = scalar_lea.vmem [#allocation8], %s695
          %698 = vsyncadd %s693, 0
          %s699 = smul.addr %s57, 16
          %s700 = smul.addr %s58, 32
          %s701 = sadd.s32 %s699, %s700
          %s702 = smul.addr %s701, 4
          %s703 = scalar_lea.hbm %s5, %s702
          %s704 = sshll.u32 %s703, 4
          %s705 = int_to_ptr.hbm [resolvable:$true] %s704
          %s706 = sshll.u32 %s696, 4
          %s707 = int_to_ptr.vmem [resolvable:$true] %s706
          %712 = dma.hbm_to_vmem [thread:$0]  %s705, 1024, %s707, %s693, 64, 64, 4
        $region40: #{_rem_forward.4} parent=23 // pred_fallthru
          _
        // Predicated region
        $region41: #{_rem_forward.4} parent=23 // pred_check
          %p713 = pneg %p236
        $region42: #{_rem_forward.4} parent=23 // pred_check_branch
          %715 = sbr.rel (%p713) target = $region44
        $region43: #{_rem_forward.4} parent=23 // pred_region
          %s716 = sand.u32 %s50, 1
          %s717 = scalar_lea.sflag [#allocation9], %s716
          %s718 = sand.u32 %s226, 1
          %s719 = scalar_lea.vmem [#allocation10], %s718
          %721 = vsyncadd %s717, 0
          %s722 = smul.addr %s58, 2
          %s723 = sadd.s32 %s57, %s722
          %s724 = scalar_lea.hbm %s6, %s723
          %s726 = sshll.u32 %s724, 4
          %s727 = int_to_ptr.hbm [resolvable:$true] %s726
          %s728 = sshll.u32 %s719, 4
          %s729 = int_to_ptr.vmem [resolvable:$true] %s728
          %731 = dma.hbm_to_vmem [thread:$0]  %s727, 16, %s729, %s717
        $region44: #{_rem_forward.4} parent=23 // pred_fallthru
          _
        // Predicated region
        $region45: #{_rem_forward.4} parent=23 // pred_check
          %p732 = pneg %p264
        $region46: #{_rem_forward.4} parent=23 // pred_check_branch
          %734 = sbr.rel (%p732) target = $region48
        $region47: #{_rem_forward.4} parent=23 // pred_region
          %s735 = sand.u32 %s50, 1
          %s736 = scalar_lea.sflag [#allocation12], %s735
          %s737 = sand.u32 %s254, 1
          %s738 = smul.addr %s737, 64
          %s739 = scalar_lea.vmem [#allocation11], %s738
          %741 = vsyncadd %s736, 0
          %s742 = smul.addr %s57, 16
          %s743 = smul.addr %s58, 32
          %s744 = sadd.s32 %s742, %s743
          %s745 = smul.addr %s744, 4
          %s746 = scalar_lea.hbm %s7, %s745
          %s747 = sshll.u32 %s746, 4
          %s748 = int_to_ptr.hbm [resolvable:$true] %s747
          %s749 = sshll.u32 %s739, 4
          %s750 = int_to_ptr.vmem [resolvable:$true] %s749
          %755 = dma.hbm_to_vmem [thread:$0]  %s748, 1024, %s750, %s736, 64, 64, 4
        $region48: #{_rem_forward.4} parent=23 // pred_fallthru
          _
        // Predicated region
        $region49: #{_rem_forward.4} parent=23 // pred_check
          %p756 = pneg %p292
        $region50: #{_rem_forward.4} parent=23 // pred_check_branch
          %758 = sbr.rel (%p756) target = $region52
        $region51: #{_rem_forward.4} parent=23 // pred_region
          %s759 = sand.u32 %s50, 1
          %s760 = scalar_lea.sflag [#allocation12], %s759
          %s761 = sand.u32 %s282, 1
          %s762 = scalar_lea.vmem [#allocation13], %s761
          %764 = vsyncadd %s760, 0
          %s765 = smul.addr %s58, 2
          %s766 = sadd.s32 %s57, %s765
          %s767 = scalar_lea.hbm %s8, %s766
          %s769 = sshll.u32 %s767, 4
          %s770 = int_to_ptr.hbm [resolvable:$true] %s769
          %s771 = sshll.u32 %s762, 4
          %s772 = int_to_ptr.vmem [resolvable:$true] %s771
          %774 = dma.hbm_to_vmem [thread:$0]  %s770, 16, %s772, %s760
        $region52: #{_rem_forward.4} parent=23 // pred_fallthru
          _
        // Predicated region
        $region53: #{_rem_forward.4} parent=23 // pred_check
          %p775 = pneg %p320
        $region54: #{_rem_forward.4} parent=23 // pred_check_branch
          %777 = sbr.rel (%p775) target = $region56
        $region55: #{_rem_forward.4} parent=23 // pred_region
          %s778 = sand.u32 %s50, 1
          %s779 = scalar_lea.sflag [#allocation15], %s778
          %s780 = sand.u32 %s310, 1
          %s781 = smul.addr %s780, 64
          %s782 = scalar_lea.vmem [#allocation14], %s781
          %784 = vsyncadd %s779, 0
          %s785 = smul.addr %s57, 16
          %s786 = smul.addr %s58, 32
          %s787 = sadd.s32 %s785, %s786
          %s788 = smul.addr %s787, 4
          %s789 = scalar_lea.hbm %s9, %s788
          %s790 = sshll.u32 %s789, 4
          %s791 = int_to_ptr.hbm [resolvable:$true] %s790
          %s792 = sshll.u32 %s782, 4
          %s793 = int_to_ptr.vmem [resolvable:$true] %s792
          %798 = dma.hbm_to_vmem [thread:$0]  %s791, 1024, %s793, %s779, 64, 64, 4
        $region56: #{_rem_forward.4} parent=23 // pred_fallthru
          _
        // Predicated region
        $region57: #{_rem_forward.4} parent=23 // pred_check
          %p799 = pneg %p348
        $region58: #{_rem_forward.4} parent=23 // pred_check_branch
          %801 = sbr.rel (%p799) target = $region60
        $region59: #{_rem_forward.4} parent=23 // pred_region
          %s802 = sand.u32 %s50, 1
          %s803 = scalar_lea.sflag [#allocation15], %s802
          %s804 = sand.u32 %s338, 1
          %s805 = scalar_lea.vmem [#allocation16], %s804
          %807 = vsyncadd %s803, 0
          %s808 = smul.addr %s58, 2
          %s809 = sadd.s32 %s57, %s808
          %s810 = scalar_lea.hbm %s10, %s809
          %s812 = sshll.u32 %s810, 4
          %s813 = int_to_ptr.hbm [resolvable:$true] %s812
          %s814 = sshll.u32 %s805, 4
          %s815 = int_to_ptr.vmem [resolvable:$true] %s814
          %817 = dma.hbm_to_vmem [thread:$0]  %s813, 16, %s815, %s803
        $region60: #{_rem_forward.4} parent=23 // pred_fallthru
          _
        // Predicated region
        $region61: #{_rem_forward.4} parent=23 // pred_check
          %p818 = pneg %p376
        $region62: #{_rem_forward.4} parent=23 // pred_check_branch
          %820 = sbr.rel (%p818) target = $region64
        $region63: #{_rem_forward.4} parent=23 // pred_region
          %s821 = sand.u32 %s50, 1
          %s822 = scalar_lea.sflag [#allocation18], %s821
          %s823 = sand.u32 %s366, 1
          %s824 = scalar_lea.vmem [#allocation17], %s823
          %826 = vsyncadd %s822, 0
          %s827 = smul.addr %s58, 2
          %s828 = sadd.s32 %s57, %s827
          %s829 = scalar_lea.hbm %s11, %s828
          %s831 = sshll.u32 %s829, 4
          %s832 = int_to_ptr.hbm [resolvable:$true] %s831
          %s833 = sshll.u32 %s824, 4
          %s834 = int_to_ptr.vmem [resolvable:$true] %s833
          %836 = dma.hbm_to_vmem [thread:$0]  %s832, 16, %s834, %s822
        $region64: #{_rem_forward.4} parent=23 // pred_fallthru
          _
        // Predicated region
        $region65: #{_rem_forward.4} parent=23 // pred_check
          %p837 = pneg %p404
        $region66: #{_rem_forward.4} parent=23 // pred_check_branch
          %839 = sbr.rel (%p837) target = $region68
        $region67: #{_rem_forward.4} parent=23 // pred_region
          %s840 = sand.u32 %s50, 1
          %s841 = scalar_lea.sflag [#allocation18], %s840
          %s842 = sand.u32 %s394, 1
          %s843 = scalar_lea.vmem [#allocation19], %s842
          %845 = vsyncadd %s841, 0
          %s846 = smul.addr %s58, 2
          %s847 = sadd.s32 %s57, %s846
          %s848 = scalar_lea.hbm %s12, %s847
          %s850 = sshll.u32 %s848, 4
          %s851 = int_to_ptr.hbm [resolvable:$true] %s850
          %s852 = sshll.u32 %s843, 4
          %s853 = int_to_ptr.vmem [resolvable:$true] %s852
          %855 = dma.hbm_to_vmem [thread:$0]  %s851, 16, %s853, %s841
        $region68: #{_rem_forward.4} parent=23 // pred_fallthru
          _
        // Predicated region
        $region69: #{_rem_forward.4} parent=23 // pred_check
          %p856 = pneg %p432
        $region70: #{_rem_forward.4} parent=23 // pred_check_branch
          %858 = sbr.rel (%p856) target = $region72
        $region71: #{_rem_forward.4} parent=23 // pred_region
          %s859 = sand.u32 %s50, 1
          %s860 = scalar_lea.sflag [#allocation21], %s859
          %s861 = sand.u32 %s422, 1
          %s862 = smul.addr %s861, 1024
          %s863 = scalar_lea.vmem [#allocation20], %s862
          %865 = vsyncadd %s860, 0
          %s866 = smul.addr %s57, 256
          %s867 = smul.addr %s58, 512
          %s868 = sadd.s32 %s866, %s867
          %s869 = smul.addr %s868, 4
          %s870 = scalar_lea.hbm %s13, %s869
          %s871 = sshll.u32 %s870, 4
          %s872 = int_to_ptr.hbm [resolvable:$true] %s871
          %s873 = sshll.u32 %s863, 4
          %s874 = int_to_ptr.vmem [resolvable:$true] %s873
          %879 = dma.hbm_to_vmem [thread:$0]  %s872, 16384, %s874, %s860, 1024, 1024, 64
        $region72: #{_rem_forward.4} parent=23 // pred_fallthru
          _
        // Predicated region
        $region73: #{_rem_forward.4} parent=23 // pred_check
          %p880 = pneg %p460
        $region74: #{_rem_forward.4} parent=23 // pred_check_branch
          %882 = sbr.rel (%p880) target = $region76
        $region75: #{_rem_forward.4} parent=23 // pred_region
          %s883 = sand.u32 %s50, 1
          %s884 = scalar_lea.sflag [#allocation21], %s883
          %s885 = sand.u32 %s450, 1
          %s886 = smul.addr %s885, 16
          %s887 = scalar_lea.vmem [#allocation22], %s886
          %889 = vsyncadd %s884, 0
          %s890 = smul.addr %s57, 16
          %s891 = smul.addr %s58, 32
          %s892 = sadd.s32 %s890, %s891
          %s893 = scalar_lea.hbm %s14, %s892
          %s895 = sshll.u32 %s893, 4
          %s896 = int_to_ptr.hbm [resolvable:$true] %s895
          %s897 = sshll.u32 %s887, 4
          %s898 = int_to_ptr.vmem [resolvable:$true] %s897
          %900 = dma.hbm_to_vmem [thread:$0]  %s896, 256, %s898, %s884
        $region76: #{_rem_forward.4} parent=23 // pred_fallthru
          _
        // Predicated region
        $region77: #{_rem_forward.4} parent=23 // pred_check
          %p901 = pneg %p488
        $region78: #{_rem_forward.4} parent=23 // pred_check_branch
          %903 = sbr.rel (%p901) target = $region80
        $region79: #{_rem_forward.4} parent=23 // pred_region
          %s904 = sand.u32 %s50, 1
          %s905 = scalar_lea.sflag [#allocation24], %s904
          %s906 = sand.u32 %s478, 1
          %s907 = smul.addr %s906, 1024
          %s908 = scalar_lea.vmem [#allocation23], %s907
          %910 = vsyncadd %s905, 0
          %s911 = smul.addr %s57, 256
          %s912 = smul.addr %s58, 512
          %s913 = sadd.s32 %s911, %s912
          %s914 = smul.addr %s913, 4
          %s915 = scalar_lea.hbm %s15, %s914
          %s916 = sshll.u32 %s915, 4
          %s917 = int_to_ptr.hbm [resolvable:$true] %s916
          %s918 = sshll.u32 %s908, 4
          %s919 = int_to_ptr.vmem [resolvable:$true] %s918
          %924 = dma.hbm_to_vmem [thread:$0]  %s917, 16384, %s919, %s905, 64, 64, 4
        $region80: #{_rem_forward.4} parent=23 // pred_fallthru
          _
        // Predicated region
        $region81: #{_rem_forward.4} parent=23 // pred_check
          %p925 = pneg %p516
        $region82: #{_rem_forward.4} parent=23 // pred_check_branch
          %927 = sbr.rel (%p925) target = $region84
        $region83: #{_rem_forward.4} parent=23 // pred_region
          %s928 = sand.u32 %s50, 1
          %s929 = scalar_lea.sflag [#allocation24], %s928
          %s930 = sand.u32 %s506, 1
          %s931 = scalar_lea.vmem [#allocation25], %s930
          %933 = vsyncadd %s929, 0
          %s934 = smul.addr %s58, 2
          %s935 = sadd.s32 %s57, %s934
          %s936 = scalar_lea.hbm %s16, %s935
          %s938 = sshll.u32 %s936, 4
          %s939 = int_to_ptr.hbm [resolvable:$true] %s938
          %s940 = sshll.u32 %s931, 4
          %s941 = int_to_ptr.vmem [resolvable:$true] %s940
          %943 = dma.hbm_to_vmem [thread:$0]  %s939, 16, %s941, %s929
        $region84: #{_rem_forward.4} parent=23 // pred_fallthru
          _
        // Predicated region
        $region85: #{_rem_forward.4} parent=23 // pred_check
          %p944 = pneg %p544
        $region86: #{_rem_forward.4} parent=23 // pred_check_branch
          %946 = sbr.rel (%p944) target = $region88
        $region87: #{_rem_forward.4} parent=23 // pred_region
          %s947 = sand.u32 %s50, 1
          %s948 = scalar_lea.sflag [#allocation27], %s947
          %s949 = sand.u32 %s534, 1
          %s950 = scalar_lea.vmem [#allocation26], %s949
          %952 = vsyncadd %s948, 0
          %s953 = smul.addr %s58, 2
          %s954 = sadd.s32 %s57, %s953
          %s955 = scalar_lea.hbm %s17, %s954
          %s957 = sshll.u32 %s955, 4
          %s958 = int_to_ptr.hbm [resolvable:$true] %s957
          %s959 = sshll.u32 %s950, 4
          %s960 = int_to_ptr.vmem [resolvable:$true] %s959
          %962 = dma.hbm_to_vmem [thread:$0]  %s958, 16, %s960, %s948
        $region88: #{_rem_forward.4} parent=23 // pred_fallthru
          _
        // Predicated region
        $region89: #{_rem_forward.4} parent=23 // pred_check
          %p963 = pneg %p572
        $region90: #{_rem_forward.4} parent=23 // pred_check_branch
          %965 = sbr.rel (%p963) target = $region92
        $region91: #{_rem_forward.4} parent=23 // pred_region
          %s966 = sand.u32 %s50, 1
          %s967 = scalar_lea.sflag [#allocation27], %s966
          %s968 = sand.u32 %s562, 1
          %s969 = scalar_lea.vmem [#allocation28], %s968
          %971 = vsyncadd %s967, 0
          %s972 = smul.addr %s58, 2
          %s973 = sadd.s32 %s57, %s972
          %s974 = scalar_lea.hbm %s18, %s973
          %s976 = sshll.u32 %s974, 4
          %s977 = int_to_ptr.hbm [resolvable:$true] %s976
          %s978 = sshll.u32 %s969, 4
          %s979 = int_to_ptr.vmem [resolvable:$true] %s978
          %981 = dma.hbm_to_vmem [thread:$0]  %s977, 16, %s979, %s967
        $region92: #{_rem_forward.4} parent=23 // pred_fallthru
          _
      $region24: #{_rem_forward.4} parent=5 // pred_fallthru
        _
      %p982 = scmp.le.s32.totalorder 1, %s50
      %p983 = scmp.lt.s32.totalorder %s50, 5
      %p984 = pnand %p982, %p983
      %p985 = pneg %p984
      // Predicated region
      $region93: #{_rem_forward.4} parent=5 // pred_check
        _
      $region94: #{_rem_forward.4} parent=5 // pred_check_branch
        %987 = sbr.rel (%p984) target = $region96
      $region95: #{_rem_forward.4} parent=5 // pred_region
        %s988 = ssub.s32 %s50, 1
        // Predicated region
        $region97: #{_rem_forward.4} parent=95 // pred_check
          %p989 = pneg %p130
        $region98: #{_rem_forward.4} parent=95 // pred_check_branch
          %991 = sbr.rel (%p989) target = $region100
        $region99: #{_rem_forward.4} parent=95 // pred_region
          %993 = dma.done [#allocation4], 128
        $region100: #{_rem_forward.4} parent=95 // pred_fallthru
          _
        %s994 = sand.u32 %s55, 1
        %s995 = scalar_lea.sflag [#allocation6], %s994
        %s996 = sand.u32 %s145, 1
        %s997 = smul.addr %s996, 64
        %s998 = scalar_lea.vmem [#allocation5], %s997
        // Predicated region
        $region101: #{_rem_forward.4} parent=95 // pred_check
          %p999 = pneg %p158
        $region102: #{_rem_forward.4} parent=95 // pred_check_branch
          %1001 = sbr.rel (%p999) target = $region104
        $region103: #{_rem_forward.4} parent=95 // pred_region
          %1003 = dma.done %s995, 1024
        $region104: #{_rem_forward.4} parent=95 // pred_fallthru
          _
        %s1004 = sand.u32 %s55, 1
        %s1005 = scalar_lea.sflag [#allocation6], %s1004
        %s1006 = sand.u32 %s173, 1
        %s1007 = scalar_lea.vmem [#allocation7], %s1006
        // Predicated region
        $region105: #{_rem_forward.4} parent=95 // pred_check
          %p1008 = pneg %p186
        $region106: #{_rem_forward.4} parent=95 // pred_check_branch
          %1010 = sbr.rel (%p1008) target = $region108
        $region107: #{_rem_forward.4} parent=95 // pred_region
          %1012 = dma.done %s1005, 16
        $region108: #{_rem_forward.4} parent=95 // pred_fallthru
          _
        %s1013 = sand.u32 %s55, 1
        %s1014 = scalar_lea.sflag [#allocation9], %s1013
        %s1015 = sand.u32 %s201, 1
        %s1016 = smul.addr %s1015, 64
        %s1017 = scalar_lea.vmem [#allocation8], %s1016
        // Predicated region
        $region109: #{_rem_forward.4} parent=95 // pred_check
          %p1018 = pneg %p214
        $region110: #{_rem_forward.4} parent=95 // pred_check_branch
          %1020 = sbr.rel (%p1018) target = $region112
        $region111: #{_rem_forward.4} parent=95 // pred_region
          %1022 = dma.done %s1014, 1024
        $region112: #{_rem_forward.4} parent=95 // pred_fallthru
          _
        %s1023 = sand.u32 %s55, 1
        %s1024 = scalar_lea.sflag [#allocation9], %s1023
        %s1025 = sand.u32 %s229, 1
        %s1026 = scalar_lea.vmem [#allocation10], %s1025
        // Predicated region
        $region113: #{_rem_forward.4} parent=95 // pred_check
          %p1027 = pneg %p242
        $region114: #{_rem_forward.4} parent=95 // pred_check_branch
          %1029 = sbr.rel (%p1027) target = $region116
        $region115: #{_rem_forward.4} parent=95 // pred_region
          %1031 = dma.done %s1024, 16
        $region116: #{_rem_forward.4} parent=95 // pred_fallthru
          _
        %s1032 = sand.u32 %s55, 1
        %s1033 = scalar_lea.sflag [#allocation12], %s1032
        %s1034 = sand.u32 %s257, 1
        %s1035 = smul.addr %s1034, 64
        %s1036 = scalar_lea.vmem [#allocation11], %s1035
        // Predicated region
        $region117: #{_rem_forward.4} parent=95 // pred_check
          %p1037 = pneg %p270
        $region118: #{_rem_forward.4} parent=95 // pred_check_branch
          %1039 = sbr.rel (%p1037) target = $region120
        $region119: #{_rem_forward.4} parent=95 // pred_region
          %1041 = dma.done %s1033, 1024
        $region120: #{_rem_forward.4} parent=95 // pred_fallthru
          _
        %s1042 = sand.u32 %s55, 1
        %s1043 = scalar_lea.sflag [#allocation12], %s1042
        %s1044 = sand.u32 %s285, 1
        %s1045 = scalar_lea.vmem [#allocation13], %s1044
        // Predicated region
        $region121: #{_rem_forward.4} parent=95 // pred_check
          %p1046 = pneg %p298
        $region122: #{_rem_forward.4} parent=95 // pred_check_branch
          %1048 = sbr.rel (%p1046) target = $region124
        $region123: #{_rem_forward.4} parent=95 // pred_region
          %1050 = dma.done %s1043, 16
        $region124: #{_rem_forward.4} parent=95 // pred_fallthru
          _
        %s1051 = sand.u32 %s55, 1
        %s1052 = scalar_lea.sflag [#allocation15], %s1051
        %s1053 = sand.u32 %s313, 1
        %s1054 = smul.addr %s1053, 64
        %s1055 = scalar_lea.vmem [#allocation14], %s1054
        // Predicated region
        $region125: #{_rem_forward.4} parent=95 // pred_check
          %p1056 = pneg %p326
        $region126: #{_rem_forward.4} parent=95 // pred_check_branch
          %1058 = sbr.rel (%p1056) target = $region128
        $region127: #{_rem_forward.4} parent=95 // pred_region
          %1060 = dma.done %s1052, 1024
        $region128: #{_rem_forward.4} parent=95 // pred_fallthru
          _
        %s1061 = sand.u32 %s55, 1
        %s1062 = scalar_lea.sflag [#allocation15], %s1061
        %s1063 = sand.u32 %s341, 1
        %s1064 = scalar_lea.vmem [#allocation16], %s1063
        // Predicated region
        $region129: #{_rem_forward.4} parent=95 // pred_check
          %p1065 = pneg %p354
        $region130: #{_rem_forward.4} parent=95 // pred_check_branch
          %1067 = sbr.rel (%p1065) target = $region132
        $region131: #{_rem_forward.4} parent=95 // pred_region
          %1069 = dma.done %s1062, 16
        $region132: #{_rem_forward.4} parent=95 // pred_fallthru
          _
        %s1070 = sand.u32 %s55, 1
        %s1071 = scalar_lea.sflag [#allocation18], %s1070
        %s1072 = sand.u32 %s369, 1
        %s1073 = scalar_lea.vmem [#allocation17], %s1072
        // Predicated region
        $region133: #{_rem_forward.4} parent=95 // pred_check
          %p1074 = pneg %p382
        $region134: #{_rem_forward.4} parent=95 // pred_check_branch
          %1076 = sbr.rel (%p1074) target = $region136
        $region135: #{_rem_forward.4} parent=95 // pred_region
          %1078 = dma.done %s1071, 16
        $region136: #{_rem_forward.4} parent=95 // pred_fallthru
          _
        %s1079 = sand.u32 %s55, 1
        %s1080 = scalar_lea.sflag [#allocation18], %s1079
        %s1081 = sand.u32 %s397, 1
        %s1082 = scalar_lea.vmem [#allocation19], %s1081
        // Predicated region
        $region137: #{_rem_forward.4} parent=95 // pred_check
          %p1083 = pneg %p410
        $region138: #{_rem_forward.4} parent=95 // pred_check_branch
          %1085 = sbr.rel (%p1083) target = $region140
        $region139: #{_rem_forward.4} parent=95 // pred_region
          %1087 = dma.done %s1080, 16
        $region140: #{_rem_forward.4} parent=95 // pred_fallthru
          _
        %s1088 = sand.u32 %s55, 1
        %s1089 = scalar_lea.sflag [#allocation21], %s1088
        %s1090 = sand.u32 %s425, 1
        %s1091 = smul.addr %s1090, 1024
        %s1092 = scalar_lea.vmem [#allocation20], %s1091
        // Predicated region
        $region141: #{_rem_forward.4} parent=95 // pred_check
          %p1093 = pneg %p438
        $region142: #{_rem_forward.4} parent=95 // pred_check_branch
          %1095 = sbr.rel (%p1093) target = $region144
        $region143: #{_rem_forward.4} parent=95 // pred_region
          %1097 = dma.done %s1089, 16384
        $region144: #{_rem_forward.4} parent=95 // pred_fallthru
          _
        %s1098 = sand.u32 %s55, 1
        %s1099 = scalar_lea.sflag [#allocation21], %s1098
        %s1100 = sand.u32 %s453, 1
        %s1101 = smul.addr %s1100, 16
        %s1102 = scalar_lea.vmem [#allocation22], %s1101
        // Predicated region
        $region145: #{_rem_forward.4} parent=95 // pred_check
          %p1103 = pneg %p466
        $region146: #{_rem_forward.4} parent=95 // pred_check_branch
          %1105 = sbr.rel (%p1103) target = $region148
        $region147: #{_rem_forward.4} parent=95 // pred_region
          %1107 = dma.done %s1099, 256
        $region148: #{_rem_forward.4} parent=95 // pred_fallthru
          _
        %s1108 = sand.u32 %s55, 1
        %s1109 = scalar_lea.sflag [#allocation24], %s1108
        %s1110 = sand.u32 %s481, 1
        %s1111 = smul.addr %s1110, 1024
        %s1112 = scalar_lea.vmem [#allocation23], %s1111
        // Predicated region
        $region149: #{_rem_forward.4} parent=95 // pred_check
          %p1113 = pneg %p494
        $region150: #{_rem_forward.4} parent=95 // pred_check_branch
          %1115 = sbr.rel (%p1113) target = $region152
        $region151: #{_rem_forward.4} parent=95 // pred_region
          %1117 = dma.done %s1109, 16384
        $region152: #{_rem_forward.4} parent=95 // pred_fallthru
          _
        %s1118 = sand.u32 %s55, 1
        %s1119 = scalar_lea.sflag [#allocation24], %s1118
        %s1120 = sand.u32 %s509, 1
        %s1121 = scalar_lea.vmem [#allocation25], %s1120
        // Predicated region
        $region153: #{_rem_forward.4} parent=95 // pred_check
          %p1122 = pneg %p522
        $region154: #{_rem_forward.4} parent=95 // pred_check_branch
          %1124 = sbr.rel (%p1122) target = $region156
        $region155: #{_rem_forward.4} parent=95 // pred_region
          %1126 = dma.done %s1119, 16
        $region156: #{_rem_forward.4} parent=95 // pred_fallthru
          _
        %s1127 = sand.u32 %s55, 1
        %s1128 = scalar_lea.sflag [#allocation27], %s1127
        %s1129 = sand.u32 %s537, 1
        %s1130 = scalar_lea.vmem [#allocation26], %s1129
        // Predicated region
        $region157: #{_rem_forward.4} parent=95 // pred_check
          %p1131 = pneg %p550
        $region158: #{_rem_forward.4} parent=95 // pred_check_branch
          %1133 = sbr.rel (%p1131) target = $region160
        $region159: #{_rem_forward.4} parent=95 // pred_region
          %1135 = dma.done %s1128, 16
        $region160: #{_rem_forward.4} parent=95 // pred_fallthru
          _
        %s1136 = sand.u32 %s55, 1
        %s1137 = scalar_lea.sflag [#allocation27], %s1136
        %s1138 = sand.u32 %s565, 1
        %s1139 = scalar_lea.vmem [#allocation28], %s1138
        // Predicated region
        $region161: #{_rem_forward.4} parent=95 // pred_check
          %p1140 = pneg %p578
        $region162: #{_rem_forward.4} parent=95 // pred_check_branch
          %1142 = sbr.rel (%p1140) target = $region164
        $region163: #{_rem_forward.4} parent=95 // pred_region
          %1144 = dma.done %s1137, 16
        $region164: #{_rem_forward.4} parent=95 // pred_fallthru
          _
        %p1145 = scmp.lt.s32.totalorder %s59, 1
        %s1146 = scalar_select %p1145, %s59, 1
        %s1147 = smul.addr %s1146, 2
        %s1148 = smul.addr %s1147, 8
        %s1149 = scalar_lea.vmem %s0, %s1148
        %p1150 = pneg %p88
        %p1151 = pneg %p85
        %p1152 = pneg %p109
        %p1153 = pneg %p106
        %p1154 = pneg %p130
        %p1155 = pneg %p127
        %s1156 = sand.u32 %s55, 1
        %s1157 = scalar_lea.sflag [#allocation6], %s1156
        %s1158 = sand.u32 %s145, 1
        %s1159 = smul.addr %s1158, 64
        %s1160 = scalar_lea.vmem [#allocation5], %s1159
        %p1161 = pneg %p158
        %p1162 = pneg %p155
        %s1163 = sand.u32 %s55, 1
        %s1164 = scalar_lea.sflag [#allocation6], %s1163
        %s1165 = sand.u32 %s173, 1
        %s1166 = scalar_lea.vmem [#allocation7], %s1165
        %p1167 = pneg %p186
        %p1168 = pneg %p183
        %s1169 = sand.u32 %s55, 1
        %s1170 = scalar_lea.sflag [#allocation9], %s1169
        %s1171 = sand.u32 %s201, 1
        %s1172 = smul.addr %s1171, 64
        %s1173 = scalar_lea.vmem [#allocation8], %s1172
        %p1174 = pneg %p214
        %p1175 = pneg %p211
        %s1176 = sand.u32 %s55, 1
        %s1177 = scalar_lea.sflag [#allocation9], %s1176
        %s1178 = sand.u32 %s229, 1
        %s1179 = scalar_lea.vmem [#allocation10], %s1178
        %p1180 = pneg %p242
        %p1181 = pneg %p239
        %s1182 = sand.u32 %s55, 1
        %s1183 = scalar_lea.sflag [#allocation12], %s1182
        %s1184 = sand.u32 %s257, 1
        %s1185 = smul.addr %s1184, 64
        %s1186 = scalar_lea.vmem [#allocation11], %s1185
        %p1187 = pneg %p270
        %p1188 = pneg %p267
        %s1189 = sand.u32 %s55, 1
        %s1190 = scalar_lea.sflag [#allocation12], %s1189
        %s1191 = sand.u32 %s285, 1
        %s1192 = scalar_lea.vmem [#allocation13], %s1191
        %p1193 = pneg %p298
        %p1194 = pneg %p295
        %s1195 = sand.u32 %s55, 1
        %s1196 = scalar_lea.sflag [#allocation15], %s1195
        %s1197 = sand.u32 %s313, 1
        %s1198 = smul.addr %s1197, 64
        %s1199 = scalar_lea.vmem [#allocation14], %s1198
        %p1200 = pneg %p326
        %p1201 = pneg %p323
        %s1202 = sand.u32 %s55, 1
        %s1203 = scalar_lea.sflag [#allocation15], %s1202
        %s1204 = sand.u32 %s341, 1
        %s1205 = scalar_lea.vmem [#allocation16], %s1204
        %p1206 = pneg %p354
        %p1207 = pneg %p351
        %s1208 = sand.u32 %s55, 1
        %s1209 = scalar_lea.sflag [#allocation18], %s1208
        %s1210 = sand.u32 %s369, 1
        %s1211 = scalar_lea.vmem [#allocation17], %s1210
        %p1212 = pneg %p382
        %p1213 = pneg %p379
        %s1214 = sand.u32 %s55, 1
        %s1215 = scalar_lea.sflag [#allocation18], %s1214
        %s1216 = sand.u32 %s397, 1
        %s1217 = scalar_lea.vmem [#allocation19], %s1216
        %p1218 = pneg %p410
        %p1219 = pneg %p407
        %s1220 = sand.u32 %s55, 1
        %s1221 = scalar_lea.sflag [#allocation21], %s1220
        %s1222 = sand.u32 %s425, 1
        %s1223 = smul.addr %s1222, 1024
        %s1224 = scalar_lea.vmem [#allocation20], %s1223
        %p1225 = pneg %p438
        %p1226 = pneg %p435
        %s1227 = sand.u32 %s55, 1
        %s1228 = scalar_lea.sflag [#allocation21], %s1227
        %s1229 = sand.u32 %s453, 1
        %s1230 = smul.addr %s1229, 16
        %s1231 = scalar_lea.vmem [#allocation22], %s1230
        %p1232 = pneg %p466
        %p1233 = pneg %p463
        %s1234 = sand.u32 %s55, 1
        %s1235 = scalar_lea.sflag [#allocation24], %s1234
        %s1236 = sand.u32 %s481, 1
        %s1237 = smul.addr %s1236, 1024
        %s1238 = scalar_lea.vmem [#allocation23], %s1237
        %p1239 = pneg %p494
        %p1240 = pneg %p491
        %s1241 = sand.u32 %s55, 1
        %s1242 = scalar_lea.sflag [#allocation24], %s1241
        %s1243 = sand.u32 %s509, 1
        %s1244 = scalar_lea.vmem [#allocation25], %s1243
        %p1245 = pneg %p522
        %p1246 = pneg %p519
        %s1247 = sand.u32 %s55, 1
        %s1248 = scalar_lea.sflag [#allocation27], %s1247
        %s1249 = sand.u32 %s537, 1
        %s1250 = scalar_lea.vmem [#allocation26], %s1249
        %p1251 = pneg %p550
        %p1252 = pneg %p547
        %s1253 = sand.u32 %s55, 1
        %s1254 = scalar_lea.sflag [#allocation27], %s1253
        %s1255 = sand.u32 %s565, 1
        %s1256 = scalar_lea.vmem [#allocation28], %s1255
        %p1257 = pneg %p578
        %p1258 = pneg %p575
        %p1259 = pneg %p604
        %p1260 = pneg %p601
        %p1261 = scmp.lt.s32.totalorder %s59, 1
        %s1262 = scalar_select %p1261, %s59, 1
        %s1263 = smul.addr %s1262, 2
        %s1264 = smul.addr %s1263, 8
        %s1265 = scalar_lea.vmem %s19, %s1264
        %p1266 = scmp.lt.s32.totalorder %s59, 1
        %s1267 = scalar_select %p1266, %s59, 1
        %s1268 = smul.addr %s1267, 2
        %s1269 = smul.addr %s1268, 8
        %s1270 = scalar_lea.vmem %s0, %s1269
        %p1271 = scmp.lt.s32.totalorder %s59, 1
        %s1272 = scalar_select %p1271, %s59, 1
        %s1273 = smul.addr %s1272, 2
        %s1274 = smul.addr %s1273, 8
        %s1275 = scalar_lea.vmem %s19, %s1274
        %p1276 = scmp.eq.s32.totalorder %s60, 0
        // Predicated region
        $region165: #{_rem_forward.4} parent=95 // pred_check
          %p1277 = pneg %p1276
        $region166: #{_rem_forward.4} parent=95 // pred_check_branch
          %1279 = sbr.rel (%p1277) target = $region168
        $region167: #{_rem_forward.4} parent=95 // pred_region
          %v1280 = vld [vmem:[%s1270] sm:$0xff]
          %v1281 = vld [vmem:[%s1270 + $0x8] sm:$0xff]
          %1282 = vst [vmem:[#allocation2] sm:$0xff] %v1280
          %1283 = vst [vmem:[#allocation2 + $0x8] sm:$0xff] %v1281
        $region168: #{_rem_forward.4} parent=95 // pred_fallthru
          _
        %v1284 = vld [vmem:[#allocation2] sm:$0xff]
        %v1285 = vld [vmem:[#allocation2 + $0x8] sm:$0xff]
        %v1286 = vpack.c.bf16 %v1285, %v1284
        %v1287 = vld [vmem:[%s998] sm:$0xf]
        %v1288 = vld [vmem:[%s998 + $0x4] sm:$0xf]
        %v1289 = vld [vmem:[%s998 + $0x8] sm:$0xf]
        %v1290 = vld [vmem:[%s998 + $0xc] sm:$0xf]
        %v1291 = vld [vmem:[%s998 + $0x10] sm:$0xf]
        %v1292 = vld [vmem:[%s998 + $0x14] sm:$0xf]
        %v1293 = vld [vmem:[%s998 + $0x18] sm:$0xf]
        %v1294 = vld [vmem:[%s998 + $0x1c] sm:$0xf]
        %v1295 = vld [vmem:[%s998 + $0x20] sm:$0xf]
        %v1296 = vld [vmem:[%s998 + $0x24] sm:$0xf]
        %v1297 = vld [vmem:[%s998 + $0x28] sm:$0xf]
        %v1298 = vld [vmem:[%s998 + $0x2c] sm:$0xf]
        %v1299 = vld [vmem:[%s998 + $0x30] sm:$0xf]
        %v1300 = vld [vmem:[%s998 + $0x34] sm:$0xf]
        %v1301 = vld [vmem:[%s998 + $0x38] sm:$0xf]
        %v1302 = vld [vmem:[%s998 + $0x3c] sm:$0xf]
        %v1303 = vld [vmem:[%s1007] sm:$0x1]
        %v1305 = vperm.slane %v1303, 0
        %v1323 = vunpack.c.l.b16 %v1287
        %v1324 = vunpack.c.l.b16 %v1288
        %v1325 = vunpack.c.l.b16 %v1289
        %v1326 = vunpack.c.l.b16 %v1290
        %v1327 = vunpack.c.l.b16 %v1291
        %v1328 = vunpack.c.l.b16 %v1292
        %v1329 = vunpack.c.l.b16 %v1293
        %v1330 = vunpack.c.l.b16 %v1294
        %v1331 = vunpack.c.l.b16 %v1295
        %v1332 = vunpack.c.l.b16 %v1296
        %v1333 = vunpack.c.l.b16 %v1297
        %v1334 = vunpack.c.l.b16 %v1298
        %v1335 = vunpack.c.l.b16 %v1299
        %v1336 = vunpack.c.l.b16 %v1300
        %v1337 = vunpack.c.l.b16 %v1301
        %v1338 = vunpack.c.l.b16 %v1302
        %v1339 = vpack.c.b16 %v1324, %v1323
        %v1340 = vpack.c.b16 %v1326, %v1325
        %v1341 = vpack.c.b16 %v1328, %v1327
        %v1342 = vpack.c.b16 %v1330, %v1329
        %v1343 = vpack.c.b16 %v1332, %v1331
        %v1344 = vpack.c.b16 %v1334, %v1333
        %v1345 = vpack.c.b16 %v1336, %v1335
        %v1346 = vpack.c.b16 %v1338, %v1337
        %1355 = vmatpush.bf16.msra.mxu0 %v1346
        %1356 = vmatpush.bf16.msra.mxu0 %v1345
        %1357 = vmatpush.bf16.msra.mxu0 %v1344
        %1358 = vmatpush.bf16.msra.mxu0 %v1343
        %1359 = vmatpush.bf16.msra.mxu0 %v1342
        %1360 = vmatpush.bf16.msra.mxu0 %v1341
        %1361 = vmatpush.bf16.msra.mxu0 %v1340
        %1362 = vmatpush.bf16.msra.mxu0 %v1339
        %1363 = vmatmul.bf16.gmra.mxu0 %v1286
        %v1364 = vpop.f32.mrf.mxu0
        %v1365 = vadd.f32 %v1305, %v1364
        %v1366 = vpop.f32.mrf.mxu0
        %v1367 = vadd.f32 %v1305, %v1366
        %1368 = vdwg.mxu0
        %v1369 = vld [vmem:[%s1017] sm:$0xf]
        %v1370 = vld [vmem:[%s1017 + $0x4] sm:$0xf]
        %v1371 = vld [vmem:[%s1017 + $0x8] sm:$0xf]
        %v1372 = vld [vmem:[%s1017 + $0xc] sm:$0xf]
        %v1373 = vld [vmem:[%s1017 + $0x10] sm:$0xf]
        %v1374 = vld [vmem:[%s1017 + $0x14] sm:$0xf]
        %v1375 = vld [vmem:[%s1017 + $0x18] sm:$0xf]
        %v1376 = vld [vmem:[%s1017 + $0x1c] sm:$0xf]
        %v1377 = vld [vmem:[%s1017 + $0x20] sm:$0xf]
        %v1378 = vld [vmem:[%s1017 + $0x24] sm:$0xf]
        %v1379 = vld [vmem:[%s1017 + $0x28] sm:$0xf]
        %v1380 = vld [vmem:[%s1017 + $0x2c] sm:$0xf]
        %v1381 = vld [vmem:[%s1017 + $0x30] sm:$0xf]
        %v1382 = vld [vmem:[%s1017 + $0x34] sm:$0xf]
        %v1383 = vld [vmem:[%s1017 + $0x38] sm:$0xf]
        %v1384 = vld [vmem:[%s1017 + $0x3c] sm:$0xf]
        %v1385 = vld [vmem:[%s1026] sm:$0x1]
        %v1387 = vperm.slane %v1385, 0
        %v1405 = vunpack.c.l.b16 %v1369
        %v1406 = vunpack.c.l.b16 %v1370
        %v1407 = vunpack.c.l.b16 %v1371
        %v1408 = vunpack.c.l.b16 %v1372
        %v1409 = vunpack.c.l.b16 %v1373
        %v1410 = vunpack.c.l.b16 %v1374
        %v1411 = vunpack.c.l.b16 %v1375
        %v1412 = vunpack.c.l.b16 %v1376
        %v1413 = vunpack.c.l.b16 %v1377
        %v1414 = vunpack.c.l.b16 %v1378
        %v1415 = vunpack.c.l.b16 %v1379
        %v1416 = vunpack.c.l.b16 %v1380
        %v1417 = vunpack.c.l.b16 %v1381
        %v1418 = vunpack.c.l.b16 %v1382
        %v1419 = vunpack.c.l.b16 %v1383
        %v1420 = vunpack.c.l.b16 %v1384
        %v1421 = vpack.c.b16 %v1406, %v1405
        %v1422 = vpack.c.b16 %v1408, %v1407
        %v1423 = vpack.c.b16 %v1410, %v1409
        %v1424 = vpack.c.b16 %v1412, %v1411
        %v1425 = vpack.c.b16 %v1414, %v1413
        %v1426 = vpack.c.b16 %v1416, %v1415
        %v1427 = vpack.c.b16 %v1418, %v1417
        %v1428 = vpack.c.b16 %v1420, %v1419
        %1437 = vmatpush.bf16.msra.mxu0 %v1428
        %1438 = vmatpush.bf16.msra.mxu0 %v1427
        %1439 = vmatpush.bf16.msra.mxu0 %v1426
        %1440 = vmatpush.bf16.msra.mxu0 %v1425
        %1441 = vmatpush.bf16.msra.mxu0 %v1424
        %1442 = vmatpush.bf16.msra.mxu0 %v1423
        %1443 = vmatpush.bf16.msra.mxu0 %v1422
        %1444 = vmatpush.bf16.msra.mxu0 %v1421
        %1445 = vmatmul.bf16.gmra.mxu0 %v1286
        %v1446 = vpop.f32.mrf.mxu0
        %v1447 = vadd.f32 %v1387, %v1446
        %v1448 = vpop.f32.mrf.mxu0
        %v1449 = vadd.f32 %v1387, %v1448
        %1450 = vdwg.mxu0
        %v1451 = vld [vmem:[%s1036] sm:$0xf]
        %v1452 = vld [vmem:[%s1036 + $0x4] sm:$0xf]
        %v1453 = vld [vmem:[%s1036 + $0x8] sm:$0xf]
        %v1454 = vld [vmem:[%s1036 + $0xc] sm:$0xf]
        %v1455 = vld [vmem:[%s1036 + $0x10] sm:$0xf]
        %v1456 = vld [vmem:[%s1036 + $0x14] sm:$0xf]
        %v1457 = vld [vmem:[%s1036 + $0x18] sm:$0xf]
        %v1458 = vld [vmem:[%s1036 + $0x1c] sm:$0xf]
        %v1459 = vld [vmem:[%s1036 + $0x20] sm:$0xf]
        %v1460 = vld [vmem:[%s1036 + $0x24] sm:$0xf]
        %v1461 = vld [vmem:[%s1036 + $0x28] sm:$0xf]
        %v1462 = vld [vmem:[%s1036 + $0x2c] sm:$0xf]
        %v1463 = vld [vmem:[%s1036 + $0x30] sm:$0xf]
        %v1464 = vld [vmem:[%s1036 + $0x34] sm:$0xf]
        %v1465 = vld [vmem:[%s1036 + $0x38] sm:$0xf]
        %v1466 = vld [vmem:[%s1036 + $0x3c] sm:$0xf]
        %v1467 = vld [vmem:[%s1045] sm:$0x1]
        %v1469 = vperm.slane %v1467, 0
        %v1487 = vunpack.c.l.b16 %v1451
        %v1488 = vunpack.c.l.b16 %v1452
        %v1489 = vunpack.c.l.b16 %v1453
        %v1490 = vunpack.c.l.b16 %v1454
        %v1491 = vunpack.c.l.b16 %v1455
        %v1492 = vunpack.c.l.b16 %v1456
        %v1493 = vunpack.c.l.b16 %v1457
        %v1494 = vunpack.c.l.b16 %v1458
        %v1495 = vunpack.c.l.b16 %v1459
        %v1496 = vunpack.c.l.b16 %v1460
        %v1497 = vunpack.c.l.b16 %v1461
        %v1498 = vunpack.c.l.b16 %v1462
        %v1499 = vunpack.c.l.b16 %v1463
        %v1500 = vunpack.c.l.b16 %v1464
        %v1501 = vunpack.c.l.b16 %v1465
        %v1502 = vunpack.c.l.b16 %v1466
        %v1503 = vpack.c.b16 %v1488, %v1487
        %v1504 = vpack.c.b16 %v1490, %v1489
        %v1505 = vpack.c.b16 %v1492, %v1491
        %v1506 = vpack.c.b16 %v1494, %v1493
        %v1507 = vpack.c.b16 %v1496, %v1495
        %v1508 = vpack.c.b16 %v1498, %v1497
        %v1509 = vpack.c.b16 %v1500, %v1499
        %v1510 = vpack.c.b16 %v1502, %v1501
        %1519 = vmatpush.bf16.msra.mxu0 %v1510
        %1520 = vmatpush.bf16.msra.mxu0 %v1509
        %1521 = vmatpush.bf16.msra.mxu0 %v1508
        %1522 = vmatpush.bf16.msra.mxu0 %v1507
        %1523 = vmatpush.bf16.msra.mxu0 %v1506
        %1524 = vmatpush.bf16.msra.mxu0 %v1505
        %1525 = vmatpush.bf16.msra.mxu0 %v1504
        %1526 = vmatpush.bf16.msra.mxu0 %v1503
        %1527 = vmatmul.bf16.gmra.mxu0 %v1286
        %v1528 = vpop.f32.mrf.mxu0
        %v1529 = vadd.f32 %v1469, %v1528
        %v1530 = vpop.f32.mrf.mxu0
        %v1531 = vadd.f32 %v1469, %v1530
        %1532 = vdwg.mxu0
        %v1533 = vld [vmem:[%s1] sm:$0xff]
        %v1534 = vld [vmem:[%s1 + $0x8] sm:$0xff]
        %v1535 = vld [vmem:[%s1 + $0x10] sm:$0xff]
        %v1536 = vld [vmem:[%s1 + $0x18] sm:$0xff]
        %v1537 = vld [vmem:[%s1 + $0x20] sm:$0xff]
        %v1538 = vld [vmem:[%s1 + $0x28] sm:$0xff]
        %v1539 = vld [vmem:[%s1 + $0x30] sm:$0xff]
        %v1540 = vld [vmem:[%s1 + $0x38] sm:$0xff]
        %v1541 = vld [vmem:[%s1 + $0x40] sm:$0xff]
        %v1542 = vld [vmem:[%s1 + $0x48] sm:$0xff]
        %v1543 = vld [vmem:[%s1 + $0x50] sm:$0xff]
        %v1544 = vld [vmem:[%s1 + $0x58] sm:$0xff]
        %v1545 = vld [vmem:[%s1 + $0x60] sm:$0xff]
        %v1546 = vld [vmem:[%s1 + $0x68] sm:$0xff]
        %v1547 = vld [vmem:[%s1 + $0x70] sm:$0xff]
        %v1548 = vld [vmem:[%s1 + $0x78] sm:$0xff]
        %v1549 = vld [vmem:[#allocation3] sm:$0xff]
        %v1550 = vmul.f32 %v1365, %v1447
        %1551 = vmatpush.msra.mxu0 %v1548
        %1552 = vmatpush.msra.mxu0 %v1547
        %1553 = vmatpush.msra.mxu0 %v1546
        %1554 = vmatpush.msra.mxu0 %v1545
        %1555 = vmatpush.msra.mxu0 %v1544
        %1556 = vmatpush.msra.mxu0 %v1543
        %1557 = vmatpush.msra.mxu0 %v1542
        %1558 = vmatpush.msra.mxu0 %v1541
        %1559 = vmatpush.msra.mxu0 %v1540
        %1560 = vmatpush.msra.mxu0 %v1539
        %1561 = vmatpush.msra.mxu0 %v1538
        %1562 = vmatpush.msra.mxu0 %v1537
        %1563 = vmatpush.msra.mxu0 %v1536
        %1564 = vmatpush.msra.mxu0 %v1535
        %1565 = vmatpush.msra.mxu0 %v1534
        %1566 = vmatpush.msra.mxu0 %v1533
        %1567 = vmatmul.f32.gmra.mxu0 %v1550
        %v1568 = vpop.f32.mrf.mxu0
        %v1569 = vadd.f32 0.0, %v1568
        %1570 = vdwg.mxu0
        %v1571 = vmax.f32 %v1569, -1e+30
        %v1572 = vsub.f32 -1e+30, %v1571
        %v1573 = vmul.f32 %v1572, 1.442695
        %v1574 = vpow.pop %v1573
        %v1575 = vsub.f32 %v1569, %v1571
        %v1576 = vmul.f32 %v1575, 1.442695
        %v1577 = vpow.pop %v1576
        %v1578 = vmul.f32 %v1574, 0.0
        %v1579 = vadd.f32 %v1578, %v1577
        %vm1580 = vcmask 64512
        %v1582 = vsel %vm1580, %v1574, 0
        %1584 = vmatpush.msra.mxu0 0.0
        %1585 = vmatpush.msra.mxu0 0.0
        %1586 = vmatpush.msra.mxu0 0.0
        %1587 = vmatpush.msra.mxu0 0.0
        %1588 = vmatpush.msra.mxu0 0.0
        %1589 = vmatpush.msra.mxu0 0.0
        %1590 = vmatpush.msra.mxu0 0.0
        %1591 = vmatpush.msra.mxu0 0.0
        %1592 = vmatpush.msra.mxu0 0.0
        %1593 = vmatpush.msra.mxu0 0.0
        %1594 = vmatpush.msra.mxu0 0.0
        %1595 = vmatpush.msra.mxu0 0.0
        %1596 = vmatpush.msra.mxu0 0.0
        %1597 = vmatpush.msra.mxu0 0.0
        %1598 = vmatpush.msra.mxu0 0.0
        %1599 = vmatpush.msra.mxu0 %v1549
        %1600 = vmatmul.f32.gmra.mxu0 %v1582
        %v1601 = vpop.f32.mrf.mxu0
        %v1602 = vadd.f32 0.0, %v1601
        %1603 = vdwg.mxu0
        %v1605 = vsel %vm1580, %v1577, 0
        %1607 = vmatpush.msra.mxu0 0.0
        %1608 = vmatpush.msra.mxu0 0.0
        %1609 = vmatpush.msra.mxu0 0.0
        %1610 = vmatpush.msra.mxu0 0.0
        %1611 = vmatpush.msra.mxu0 0.0
        %1612 = vmatpush.msra.mxu0 0.0
        %1613 = vmatpush.msra.mxu0 0.0
        %1614 = vmatpush.msra.mxu0 0.0
        %1615 = vmatpush.msra.mxu0 0.0
        %1616 = vmatpush.msra.mxu0 0.0
        %1617 = vmatpush.msra.mxu0 0.0
        %1618 = vmatpush.msra.mxu0 0.0
        %1619 = vmatpush.msra.mxu0 0.0
        %1620 = vmatpush.msra.mxu0 0.0
        %1621 = vmatpush.msra.mxu0 0.0
        %1622 = vmatpush.msra.mxu0 %v1549
        %1623 = vmatmul.f32.gmra.mxu0 %v1605
        %v1624 = vpop.f32.mrf.mxu0
        %v1625 = vadd.f32 0.0, %v1624
        %1626 = vdwg.mxu0
        %v1627 = vmul.f32 %v1602, 0.0
        %v1628 = vmul.f32 %v1625, %v1529
        %v1629 = vadd.f32 %v1627, %v1628
        %v1630 = vmul.f32 %v1365, %v1449
        %1631 = vmatpush.msra.mxu0 %v1548
        %1632 = vmatpush.msra.mxu0 %v1547
        %1633 = vmatpush.msra.mxu0 %v1546
        %1634 = vmatpush.msra.mxu0 %v1545
        %1635 = vmatpush.msra.mxu0 %v1544
        %1636 = vmatpush.msra.mxu0 %v1543
        %1637 = vmatpush.msra.mxu0 %v1542
        %1638 = vmatpush.msra.mxu0 %v1541
        %1639 = vmatpush.msra.mxu0 %v1540
        %1640 = vmatpush.msra.mxu0 %v1539
        %1641 = vmatpush.msra.mxu0 %v1538
        %1642 = vmatpush.msra.mxu0 %v1537
        %1643 = vmatpush.msra.mxu0 %v1536
        %1644 = vmatpush.msra.mxu0 %v1535
        %1645 = vmatpush.msra.mxu0 %v1534
        %1646 = vmatpush.msra.mxu0 %v1533
        %1647 = vmatmul.f32.gmra.mxu0 %v1630
        %v1648 = vpop.f32.mrf.mxu0
        %v1649 = vadd.f32 0.0, %v1648
        %1650 = vdwg.mxu0
        %v1651 = vmax.f32 %v1571, %v1649
        %v1652 = vsub.f32 %v1571, %v1651
        %v1653 = vmul.f32 %v1652, 1.442695
        %v1654 = vpow.pop %v1653
        %v1655 = vsub.f32 %v1649, %v1651
        %v1656 = vmul.f32 %v1655, 1.442695
        %v1657 = vpow.pop %v1656
        %v1658 = vmul.f32 %v1654, %v1579
        %v1659 = vadd.f32 %v1658, %v1657
        %v1661 = vsel %vm1580, %v1654, 0
        %1663 = vmatpush.msra.mxu0 0.0
        %1664 = vmatpush.msra.mxu0 0.0
        %1665 = vmatpush.msra.mxu0 0.0
        %1666 = vmatpush.msra.mxu0 0.0
        %1667 = vmatpush.msra.mxu0 0.0
        %1668 = vmatpush.msra.mxu0 0.0
        %1669 = vmatpush.msra.mxu0 0.0
        %1670 = vmatpush.msra.mxu0 0.0
        %1671 = vmatpush.msra.mxu0 0.0
        %1672 = vmatpush.msra.mxu0 0.0
        %1673 = vmatpush.msra.mxu0 0.0
        %1674 = vmatpush.msra.mxu0 0.0
        %1675 = vmatpush.msra.mxu0 0.0
        %1676 = vmatpush.msra.mxu0 0.0
        %1677 = vmatpush.msra.mxu0 0.0
        %1678 = vmatpush.msra.mxu0 %v1549
        %1679 = vmatmul.f32.gmra.mxu0 %v1661
        %v1680 = vpop.f32.mrf.mxu0
        %v1681 = vadd.f32 0.0, %v1680
        %1682 = vdwg.mxu0
        %v1684 = vsel %vm1580, %v1657, 0
        %1686 = vmatpush.msra.mxu0 0.0
        %1687 = vmatpush.msra.mxu0 0.0
        %1688 = vmatpush.msra.mxu0 0.0
        %1689 = vmatpush.msra.mxu0 0.0
        %1690 = vmatpush.msra.mxu0 0.0
        %1691 = vmatpush.msra.mxu0 0.0
        %1692 = vmatpush.msra.mxu0 0.0
        %1693 = vmatpush.msra.mxu0 0.0
        %1694 = vmatpush.msra.mxu0 0.0
        %1695 = vmatpush.msra.mxu0 0.0
        %1696 = vmatpush.msra.mxu0 0.0
        %1697 = vmatpush.msra.mxu0 0.0
        %1698 = vmatpush.msra.mxu0 0.0
        %1699 = vmatpush.msra.mxu0 0.0
        %1700 = vmatpush.msra.mxu0 0.0
        %1701 = vmatpush.msra.mxu0 %v1549
        %1702 = vmatmul.f32.gmra.mxu0 %v1684
        %v1703 = vpop.f32.mrf.mxu0
        %v1704 = vadd.f32 0.0, %v1703
        %1705 = vdwg.mxu0
        %v1706 = vmul.f32 %v1681, %v1629
        %v1707 = vmul.f32 %v1704, %v1531
        %v1708 = vadd.f32 %v1706, %v1707
        %v1709 = vrcp.pop %v1659
        %v1711 = vsel %vm1580, %v1709, 0
        %1713 = vmatpush.msra.mxu0 0.0
        %1714 = vmatpush.msra.mxu0 0.0
        %1715 = vmatpush.msra.mxu0 0.0
        %1716 = vmatpush.msra.mxu0 0.0
        %1717 = vmatpush.msra.mxu0 0.0
        %1718 = vmatpush.msra.mxu0 0.0
        %1719 = vmatpush.msra.mxu0 0.0
        %1720 = vmatpush.msra.mxu0 0.0
        %1721 = vmatpush.msra.mxu0 0.0
        %1722 = vmatpush.msra.mxu0 0.0
        %1723 = vmatpush.msra.mxu0 0.0
        %1724 = vmatpush.msra.mxu0 0.0
        %1725 = vmatpush.msra.mxu0 0.0
        %1726 = vmatpush.msra.mxu0 0.0
        %1727 = vmatpush.msra.mxu0 0.0
        %1728 = vmatpush.msra.mxu0 %v1549
        %1729 = vmatmul.f32.gmra.mxu0 %v1711
        %v1730 = vpop.f32.mrf.mxu0
        %v1731 = vadd.f32 0.0, %v1730
        %1732 = vdwg.mxu0
        %v1733 = vmul.f32 %v1708, %v1731
        %v1734 = vmul.f32 %v1367, %v1447
        %1735 = vmatpush.msra.mxu0 %v1548
        %1736 = vmatpush.msra.mxu0 %v1547
        %1737 = vmatpush.msra.mxu0 %v1546
        %1738 = vmatpush.msra.mxu0 %v1545
        %1739 = vmatpush.msra.mxu0 %v1544
        %1740 = vmatpush.msra.mxu0 %v1543
        %1741 = vmatpush.msra.mxu0 %v1542
        %1742 = vmatpush.msra.mxu0 %v1541
        %1743 = vmatpush.msra.mxu0 %v1540
        %1744 = vmatpush.msra.mxu0 %v1539
        %1745 = vmatpush.msra.mxu0 %v1538
        %1746 = vmatpush.msra.mxu0 %v1537
        %1747 = vmatpush.msra.mxu0 %v1536
        %1748 = vmatpush.msra.mxu0 %v1535
        %1749 = vmatpush.msra.mxu0 %v1534
        %1750 = vmatpush.msra.mxu0 %v1533
        %1751 = vmatmul.f32.gmra.mxu0 %v1734
        %v1752 = vpop.f32.mrf.mxu0
        %v1753 = vadd.f32 0.0, %v1752
        %1754 = vdwg.mxu0
        %v1755 = vmax.f32 %v1753, -1e+30
        %v1756 = vsub.f32 -1e+30, %v1755
        %v1757 = vmul.f32 %v1756, 1.442695
        %v1758 = vpow.pop %v1757
        %v1759 = vsub.f32 %v1753, %v1755
        %v1760 = vmul.f32 %v1759, 1.442695
        %v1761 = vpow.pop %v1760
        %v1762 = vmul.f32 %v1758, 0.0
        %v1763 = vadd.f32 %v1762, %v1761
        %v1765 = vsel %vm1580, %v1758, 0
        %1767 = vmatpush.msra.mxu0 0.0
        %1768 = vmatpush.msra.mxu0 0.0
        %1769 = vmatpush.msra.mxu0 0.0
        %1770 = vmatpush.msra.mxu0 0.0
        %1771 = vmatpush.msra.mxu0 0.0
        %1772 = vmatpush.msra.mxu0 0.0
        %1773 = vmatpush.msra.mxu0 0.0
        %1774 = vmatpush.msra.mxu0 0.0
        %1775 = vmatpush.msra.mxu0 0.0
        %1776 = vmatpush.msra.mxu0 0.0
        %1777 = vmatpush.msra.mxu0 0.0
        %1778 = vmatpush.msra.mxu0 0.0
        %1779 = vmatpush.msra.mxu0 0.0
        %1780 = vmatpush.msra.mxu0 0.0
        %1781 = vmatpush.msra.mxu0 0.0
        %1782 = vmatpush.msra.mxu0 %v1549
        %1783 = vmatmul.f32.gmra.mxu0 %v1765
        %v1784 = vpop.f32.mrf.mxu0
        %v1785 = vadd.f32 0.0, %v1784
        %1786 = vdwg.mxu0
        %v1788 = vsel %vm1580, %v1761, 0
        %1790 = vmatpush.msra.mxu0 0.0
        %1791 = vmatpush.msra.mxu0 0.0
        %1792 = vmatpush.msra.mxu0 0.0
        %1793 = vmatpush.msra.mxu0 0.0
        %1794 = vmatpush.msra.mxu0 0.0
        %1795 = vmatpush.msra.mxu0 0.0
        %1796 = vmatpush.msra.mxu0 0.0
        %1797 = vmatpush.msra.mxu0 0.0
        %1798 = vmatpush.msra.mxu0 0.0
        %1799 = vmatpush.msra.mxu0 0.0
        %1800 = vmatpush.msra.mxu0 0.0
        %1801 = vmatpush.msra.mxu0 0.0
        %1802 = vmatpush.msra.mxu0 0.0
        %1803 = vmatpush.msra.mxu0 0.0
        %1804 = vmatpush.msra.mxu0 0.0
        %1805 = vmatpush.msra.mxu0 %v1549
        %1806 = vmatmul.f32.gmra.mxu0 %v1788
        %v1807 = vpop.f32.mrf.mxu0
        %v1808 = vadd.f32 0.0, %v1807
        %1809 = vdwg.mxu0
        %v1810 = vmul.f32 %v1785, 0.0
        %v1811 = vmul.f32 %v1808, %v1529
        %v1812 = vadd.f32 %v1810, %v1811
        %v1813 = vmul.f32 %v1367, %v1449
        %1814 = vmatpush.msra.mxu0 %v1548
        %1815 = vmatpush.msra.mxu0 %v1547
        %1816 = vmatpush.msra.mxu0 %v1546
        %1817 = vmatpush.msra.mxu0 %v1545
        %1818 = vmatpush.msra.mxu0 %v1544
        %1819 = vmatpush.msra.mxu0 %v1543
        %1820 = vmatpush.msra.mxu0 %v1542
        %1821 = vmatpush.msra.mxu0 %v1541
        %1822 = vmatpush.msra.mxu0 %v1540
        %1823 = vmatpush.msra.mxu0 %v1539
        %1824 = vmatpush.msra.mxu0 %v1538
        %1825 = vmatpush.msra.mxu0 %v1537
        %1826 = vmatpush.msra.mxu0 %v1536
        %1827 = vmatpush.msra.mxu0 %v1535
        %1828 = vmatpush.msra.mxu0 %v1534
        %1829 = vmatpush.msra.mxu0 %v1533
        %1830 = vmatmul.f32.gmra.mxu0 %v1813
        %v1831 = vpop.f32.mrf.mxu0
        %v1832 = vadd.f32 0.0, %v1831
        %1833 = vdwg.mxu0
        %v1834 = vmax.f32 %v1755, %v1832
        %v1835 = vsub.f32 %v1755, %v1834
        %v1836 = vmul.f32 %v1835, 1.442695
        %v1837 = vpow.pop %v1836
        %v1838 = vsub.f32 %v1832, %v1834
        %v1839 = vmul.f32 %v1838, 1.442695
        %v1840 = vpow.pop %v1839
        %v1841 = vmul.f32 %v1837, %v1763
        %v1842 = vadd.f32 %v1841, %v1840
        %v1844 = vsel %vm1580, %v1837, 0
        %1846 = vmatpush.msra.mxu0 0.0
        %1847 = vmatpush.msra.mxu0 0.0
        %1848 = vmatpush.msra.mxu0 0.0
        %1849 = vmatpush.msra.mxu0 0.0
        %1850 = vmatpush.msra.mxu0 0.0
        %1851 = vmatpush.msra.mxu0 0.0
        %1852 = vmatpush.msra.mxu0 0.0
        %1853 = vmatpush.msra.mxu0 0.0
        %1854 = vmatpush.msra.mxu0 0.0
        %1855 = vmatpush.msra.mxu0 0.0
        %1856 = vmatpush.msra.mxu0 0.0
        %1857 = vmatpush.msra.mxu0 0.0
        %1858 = vmatpush.msra.mxu0 0.0
        %1859 = vmatpush.msra.mxu0 0.0
        %1860 = vmatpush.msra.mxu0 0.0
        %1861 = vmatpush.msra.mxu0 %v1549
        %1862 = vmatmul.f32.gmra.mxu0 %v1844
        %v1863 = vpop.f32.mrf.mxu0
        %v1864 = vadd.f32 0.0, %v1863
        %1865 = vdwg.mxu0
        %v1867 = vsel %vm1580, %v1840, 0
        %1869 = vmatpush.msra.mxu0 0.0
        %1870 = vmatpush.msra.mxu0 0.0
        %1871 = vmatpush.msra.mxu0 0.0
        %1872 = vmatpush.msra.mxu0 0.0
        %1873 = vmatpush.msra.mxu0 0.0
        %1874 = vmatpush.msra.mxu0 0.0
        %1875 = vmatpush.msra.mxu0 0.0
        %1876 = vmatpush.msra.mxu0 0.0
        %1877 = vmatpush.msra.mxu0 0.0
        %1878 = vmatpush.msra.mxu0 0.0
        %1879 = vmatpush.msra.mxu0 0.0
        %1880 = vmatpush.msra.mxu0 0.0
        %1881 = vmatpush.msra.mxu0 0.0
        %1882 = vmatpush.msra.mxu0 0.0
        %1883 = vmatpush.msra.mxu0 0.0
        %1884 = vmatpush.msra.mxu0 %v1549
        %1885 = vmatmul.f32.gmra.mxu0 %v1867
        %v1886 = vpop.f32.mrf.mxu0
        %v1887 = vadd.f32 0.0, %v1886
        %1888 = vdwg.mxu0
        %v1889 = vmul.f32 %v1864, %v1812
        %v1890 = vmul.f32 %v1887, %v1531
        %v1891 = vadd.f32 %v1889, %v1890
        %v1892 = vrcp.pop %v1842
        %v1894 = vsel %vm1580, %v1892, 0
        %1896 = vmatpush.msra.mxu0 0.0
        %1897 = vmatpush.msra.mxu0 0.0
        %1898 = vmatpush.msra.mxu0 0.0
        %1899 = vmatpush.msra.mxu0 0.0
        %1900 = vmatpush.msra.mxu0 0.0
        %1901 = vmatpush.msra.mxu0 0.0
        %1902 = vmatpush.msra.mxu0 0.0
        %1903 = vmatpush.msra.mxu0 0.0
        %1904 = vmatpush.msra.mxu0 0.0
        %1905 = vmatpush.msra.mxu0 0.0
        %1906 = vmatpush.msra.mxu0 0.0
        %1907 = vmatpush.msra.mxu0 0.0
        %1908 = vmatpush.msra.mxu0 0.0
        %1909 = vmatpush.msra.mxu0 0.0
        %1910 = vmatpush.msra.mxu0 0.0
        %1911 = vmatpush.msra.mxu0 %v1549
        %1912 = vmatmul.f32.gmra.mxu0 %v1894
        %v1913 = vpop.f32.mrf.mxu0
        %v1914 = vadd.f32 0.0, %v1913
        %1915 = vdwg.mxu0
        %v1916 = vmul.f32 %v1891, %v1914
        %v1917 = vpack.c.bf16 %v1916, %v1733
        %v1918 = vld [vmem:[%s1055] sm:$0xf]
        %v1919 = vld [vmem:[%s1055 + $0x4] sm:$0xf]
        %v1920 = vld [vmem:[%s1055 + $0x8] sm:$0xf]
        %v1921 = vld [vmem:[%s1055 + $0xc] sm:$0xf]
        %v1922 = vld [vmem:[%s1055 + $0x10] sm:$0xf]
        %v1923 = vld [vmem:[%s1055 + $0x14] sm:$0xf]
        %v1924 = vld [vmem:[%s1055 + $0x18] sm:$0xf]
        %v1925 = vld [vmem:[%s1055 + $0x1c] sm:$0xf]
        %v1926 = vld [vmem:[%s1055 + $0x20] sm:$0xf]
        %v1927 = vld [vmem:[%s1055 + $0x24] sm:$0xf]
        %v1928 = vld [vmem:[%s1055 + $0x28] sm:$0xf]
        %v1929 = vld [vmem:[%s1055 + $0x2c] sm:$0xf]
        %v1930 = vld [vmem:[%s1055 + $0x30] sm:$0xf]
        %v1931 = vld [vmem:[%s1055 + $0x34] sm:$0xf]
        %v1932 = vld [vmem:[%s1055 + $0x38] sm:$0xf]
        %v1933 = vld [vmem:[%s1055 + $0x3c] sm:$0xf]
        %v1934 = vld [vmem:[%s1064] sm:$0x1]
        %v1936 = vperm.slane %v1934, 0
        %v1954 = vunpack.c.l.b16 %v1918
        %v1955 = vunpack.c.l.b16 %v1919
        %v1956 = vunpack.c.l.b16 %v1920
        %v1957 = vunpack.c.l.b16 %v1921
        %v1958 = vunpack.c.l.b16 %v1922
        %v1959 = vunpack.c.l.b16 %v1923
        %v1960 = vunpack.c.l.b16 %v1924
        %v1961 = vunpack.c.l.b16 %v1925
        %v1962 = vunpack.c.l.b16 %v1926
        %v1963 = vunpack.c.l.b16 %v1927
        %v1964 = vunpack.c.l.b16 %v1928
        %v1965 = vunpack.c.l.b16 %v1929
        %v1966 = vunpack.c.l.b16 %v1930
        %v1967 = vunpack.c.l.b16 %v1931
        %v1968 = vunpack.c.l.b16 %v1932
        %v1969 = vunpack.c.l.b16 %v1933
        %v1970 = vpack.c.b16 %v1955, %v1954
        %v1971 = vpack.c.b16 %v1957, %v1956
        %v1972 = vpack.c.b16 %v1959, %v1958
        %v1973 = vpack.c.b16 %v1961, %v1960
        %v1974 = vpack.c.b16 %v1963, %v1962
        %v1975 = vpack.c.b16 %v1965, %v1964
        %v1976 = vpack.c.b16 %v1967, %v1966
        %v1977 = vpack.c.b16 %v1969, %v1968
        %1986 = vmatpush.bf16.msra.mxu0 %v1977
        %1987 = vmatpush.bf16.msra.mxu0 %v1976
        %1988 = vmatpush.bf16.msra.mxu0 %v1975
        %1989 = vmatpush.bf16.msra.mxu0 %v1974
        %1990 = vmatpush.bf16.msra.mxu0 %v1973
        %1991 = vmatpush.bf16.msra.mxu0 %v1972
        %1992 = vmatpush.bf16.msra.mxu0 %v1971
        %1993 = vmatpush.bf16.msra.mxu0 %v1970
        %1994 = vmatmul.bf16.gmra.mxu0 %v1917
        %v1995 = vpop.f32.mrf.mxu0
        %v1996 = vadd.f32 %v1936, %v1995
        %v1997 = vpop.f32.mrf.mxu0
        %v1998 = vadd.f32 %v1936, %v1997
        %1999 = vdwg.mxu0
        %v2000 = vadd.f32 %v1284, %v1996
        %v2001 = vadd.f32 %v1285, %v1998
        %2002 = vadd.xlane.f32.xlu0 %v2000
        %v2003 = vpop.xlane.xlu0 %2002
        %2004 = vadd.xlane.f32.xlu0 %v2001
        %v2005 = vpop.xlane.xlu0 %2004
        %v2006 = vrcp.pop 128.0
        %v2007 = vmul.f32 128.0, %v2006
        %v2008 = vsub.f32 1.0, %v2007
        %v2009 = vmul.f32 %v2006, %v2008
        %v2010 = vadd.f32 %v2006, %v2009
        %vm2011 = vweird.f32 %v2006
        %v2012 = vsel %vm2011, %v2006, %v2010
        %v2013 = vmul.f32 %v2003, %v2012
        %v2014 = vmul.f32 %v2005, %v2012
        %v2015 = vmul.f32 %v2000, %v2000
        %v2016 = vmul.f32 %v2001, %v2001
        %2017 = vadd.xlane.f32.xlu0 %v2015
        %v2018 = vpop.xlane.xlu0 %2017
        %2019 = vadd.xlane.f32.xlu0 %v2016
        %v2020 = vpop.xlane.xlu0 %2019
        %v2021 = vmul.f32 %v2018, %v2012
        %v2022 = vmul.f32 %v2020, %v2012
        %v2023 = vmul.f32 %v2013, %v2013
        %v2024 = vmul.f32 %v2014, %v2014
        %v2025 = vsub.f32 %v2021, %v2023
        %v2026 = vsub.f32 %v2022, %v2024
        %v2027 = vsub.f32 %v2000, %v2013
        %v2028 = vsub.f32 %v2001, %v2014
        %v2029 = vadd.f32 %v2025, 1e-05
        %v2030 = vadd.f32 %v2026, 1e-05
        %v2031 = vrsqrt.pop %v2029
        %v2032 = vmul.f32 %v2031, %v2029
        %v2033 = vmul.f32 %v2032, %v2031
        %v2034 = vmul.f32 0.5, %v2033
        %v2035 = vsub.f32 1.5, %v2034
        %v2036 = vmul.f32 %v2031, %v2035
        %vm2037 = vweird.f32 %v2029
        %vm2038 = vweird.f32 %v2031
        %vm2039 = vmor %vm2037, %vm2038
        %v2040 = vsel %vm2039, %v2031, %v2036
        %v2041 = vrsqrt.pop %v2030
        %v2042 = vmul.f32 %v2041, %v2030
        %v2043 = vmul.f32 %v2042, %v2041
        %v2044 = vmul.f32 0.5, %v2043
        %v2045 = vsub.f32 1.5, %v2044
        %v2046 = vmul.f32 %v2041, %v2045
        %vm2047 = vweird.f32 %v2030
        %vm2048 = vweird.f32 %v2041
        %vm2049 = vmor %vm2047, %vm2048
        %v2050 = vsel %vm2049, %v2041, %v2046
        %v2051 = vmul.f32 %v2027, %v2040
        %v2052 = vmul.f32 %v2028, %v2050
        %v2053 = vld [vmem:[%s1073] sm:$0x1]
        %v2055 = vperm.slane %v2053, 0
        %v2057 = vmul.f32 %v2051, %v2055
        %v2058 = vmul.f32 %v2052, %v2055
        %v2059 = vld [vmem:[%s1082] sm:$0x1]
        %v2061 = vperm.slane %v2059, 0
        %v2063 = vadd.f32 %v2057, %v2061
        %v2064 = vadd.f32 %v2058, %v2061
        %v2065 = vpack.c.bf16 %v2064, %v2063
        %v2066 = vld [vmem:[%s1092] sm:$0xff]
        %v2067 = vld [vmem:[%s1092 + $0x8] sm:$0xff]
        %v2068 = vld [vmem:[%s1092 + $0x10] sm:$0xff]
        %v2069 = vld [vmem:[%s1092 + $0x18] sm:$0xff]
        %v2070 = vld [vmem:[%s1092 + $0x20] sm:$0xff]
        %v2071 = vld [vmem:[%s1092 + $0x28] sm:$0xff]
        %v2072 = vld [vmem:[%s1092 + $0x30] sm:$0xff]
        %v2073 = vld [vmem:[%s1092 + $0x38] sm:$0xff]
        %v2074 = vld [vmem:[%s1092 + $0x40] sm:$0xff]
        %v2075 = vld [vmem:[%s1092 + $0x48] sm:$0xff]
        %v2076 = vld [vmem:[%s1092 + $0x50] sm:$0xff]
        %v2077 = vld [vmem:[%s1092 + $0x58] sm:$0xff]
        %v2078 = vld [vmem:[%s1092 + $0x60] sm:$0xff]
        %v2079 = vld [vmem:[%s1092 + $0x68] sm:$0xff]
        %v2080 = vld [vmem:[%s1092 + $0x70] sm:$0xff]
        %v2081 = vld [vmem:[%s1092 + $0x78] sm:$0xff]
        %v2082 = vld [vmem:[%s1092 + $0x80] sm:$0xff]
        %v2083 = vld [vmem:[%s1092 + $0x88] sm:$0xff]
        %v2084 = vld [vmem:[%s1092 + $0x90] sm:$0xff]
        %v2085 = vld [vmem:[%s1092 + $0x98] sm:$0xff]
        %v2086 = vld [vmem:[%s1092 + $0xa0] sm:$0xff]
        %v2087 = vld [vmem:[%s1092 + $0xa8] sm:$0xff]
        %v2088 = vld [vmem:[%s1092 + $0xb0] sm:$0xff]
        %v2089 = vld [vmem:[%s1092 + $0xb8] sm:$0xff]
        %v2090 = vld [vmem:[%s1092 + $0xc0] sm:$0xff]
        %v2091 = vld [vmem:[%s1092 + $0xc8] sm:$0xff]
        %v2092 = vld [vmem:[%s1092 + $0xd0] sm:$0xff]
        %v2093 = vld [vmem:[%s1092 + $0xd8] sm:$0xff]
        %v2094 = vld [vmem:[%s1092 + $0xe0] sm:$0xff]
        %v2095 = vld [vmem:[%s1092 + $0xe8] sm:$0xff]
        %v2096 = vld [vmem:[%s1092 + $0xf0] sm:$0xff]
        %v2097 = vld [vmem:[%s1092 + $0xf8] sm:$0xff]
        %v2098 = vld [vmem:[%s1092 + $0x100] sm:$0xff]
        %v2099 = vld [vmem:[%s1092 + $0x108] sm:$0xff]
        %v2100 = vld [vmem:[%s1092 + $0x110] sm:$0xff]
        %v2101 = vld [vmem:[%s1092 + $0x118] sm:$0xff]
        %v2102 = vld [vmem:[%s1092 + $0x120] sm:$0xff]
        %v2103 = vld [vmem:[%s1092 + $0x128] sm:$0xff]
        %v2104 = vld [vmem:[%s1092 + $0x130] sm:$0xff]
        %v2105 = vld [vmem:[%s1092 + $0x138] sm:$0xff]
        %v2106 = vld [vmem:[%s1092 + $0x140] sm:$0xff]
        %v2107 = vld [vmem:[%s1092 + $0x148] sm:$0xff]
        %v2108 = vld [vmem:[%s1092 + $0x150] sm:$0xff]
        %v2109 = vld [vmem:[%s1092 + $0x158] sm:$0xff]
        %v2110 = vld [vmem:[%s1092 + $0x160] sm:$0xff]
        %v2111 = vld [vmem:[%s1092 + $0x168] sm:$0xff]
        %v2112 = vld [vmem:[%s1092 + $0x170] sm:$0xff]
        %v2113 = vld [vmem:[%s1092 + $0x178] sm:$0xff]
        %v2114 = vld [vmem:[%s1092 + $0x180] sm:$0xff]
        %v2115 = vld [vmem:[%s1092 + $0x188] sm:$0xff]
        %v2116 = vld [vmem:[%s1092 + $0x190] sm:$0xff]
        %v2117 = vld [vmem:[%s1092 + $0x198] sm:$0xff]
        %v2118 = vld [vmem:[%s1092 + $0x1a0] sm:$0xff]
        %v2119 = vld [vmem:[%s1092 + $0x1a8] sm:$0xff]
        %v2120 = vld [vmem:[%s1092 + $0x1b0] sm:$0xff]
        %v2121 = vld [vmem:[%s1092 + $0x1b8] sm:$0xff]
        %v2122 = vld [vmem:[%s1092 + $0x1c0] sm:$0xff]
        %v2123 = vld [vmem:[%s1092 + $0x1c8] sm:$0xff]
        %v2124 = vld [vmem:[%s1092 + $0x1d0] sm:$0xff]
        %v2125 = vld [vmem:[%s1092 + $0x1d8] sm:$0xff]
        %v2126 = vld [vmem:[%s1092 + $0x1e0] sm:$0xff]
        %v2127 = vld [vmem:[%s1092 + $0x1e8] sm:$0xff]
        %v2128 = vld [vmem:[%s1092 + $0x1f0] sm:$0xff]
        %v2129 = vld [vmem:[%s1092 + $0x1f8] sm:$0xff]
        %v2130 = vld [vmem:[%s1092 + $0x200] sm:$0xff]
        %v2131 = vld [vmem:[%s1092 + $0x208] sm:$0xff]
        %v2132 = vld [vmem:[%s1092 + $0x210] sm:$0xff]
        %v2133 = vld [vmem:[%s1092 + $0x218] sm:$0xff]
        %v2134 = vld [vmem:[%s1092 + $0x220] sm:$0xff]
        %v2135 = vld [vmem:[%s1092 + $0x228] sm:$0xff]
        %v2136 = vld [vmem:[%s1092 + $0x230] sm:$0xff]
        %v2137 = vld [vmem:[%s1092 + $0x238] sm:$0xff]
        %v2138 = vld [vmem:[%s1092 + $0x240] sm:$0xff]
        %v2139 = vld [vmem:[%s1092 + $0x248] sm:$0xff]
        %v2140 = vld [vmem:[%s1092 + $0x250] sm:$0xff]
        %v2141 = vld [vmem:[%s1092 + $0x258] sm:$0xff]
        %v2142 = vld [vmem:[%s1092 + $0x260] sm:$0xff]
        %v2143 = vld [vmem:[%s1092 + $0x268] sm:$0xff]
        %v2144 = vld [vmem:[%s1092 + $0x270] sm:$0xff]
        %v2145 = vld [vmem:[%s1092 + $0x278] sm:$0xff]
        %v2146 = vld [vmem:[%s1092 + $0x280] sm:$0xff]
        %v2147 = vld [vmem:[%s1092 + $0x288] sm:$0xff]
        %v2148 = vld [vmem:[%s1092 + $0x290] sm:$0xff]
        %v2149 = vld [vmem:[%s1092 + $0x298] sm:$0xff]
        %v2150 = vld [vmem:[%s1092 + $0x2a0] sm:$0xff]
        %v2151 = vld [vmem:[%s1092 + $0x2a8] sm:$0xff]
        %v2152 = vld [vmem:[%s1092 + $0x2b0] sm:$0xff]
        %v2153 = vld [vmem:[%s1092 + $0x2b8] sm:$0xff]
        %v2154 = vld [vmem:[%s1092 + $0x2c0] sm:$0xff]
        %v2155 = vld [vmem:[%s1092 + $0x2c8] sm:$0xff]
        %v2156 = vld [vmem:[%s1092 + $0x2d0] sm:$0xff]
        %v2157 = vld [vmem:[%s1092 + $0x2d8] sm:$0xff]
        %v2158 = vld [vmem:[%s1092 + $0x2e0] sm:$0xff]
        %v2159 = vld [vmem:[%s1092 + $0x2e8] sm:$0xff]
        %v2160 = vld [vmem:[%s1092 + $0x2f0] sm:$0xff]
        %v2161 = vld [vmem:[%s1092 + $0x2f8] sm:$0xff]
        %v2162 = vld [vmem:[%s1092 + $0x300] sm:$0xff]
        %v2163 = vld [vmem:[%s1092 + $0x308] sm:$0xff]
        %v2164 = vld [vmem:[%s1092 + $0x310] sm:$0xff]
        %v2165 = vld [vmem:[%s1092 + $0x318] sm:$0xff]
        %v2166 = vld [vmem:[%s1092 + $0x320] sm:$0xff]
        %v2167 = vld [vmem:[%s1092 + $0x328] sm:$0xff]
        %v2168 = vld [vmem:[%s1092 + $0x330] sm:$0xff]
        %v2169 = vld [vmem:[%s1092 + $0x338] sm:$0xff]
        %v2170 = vld [vmem:[%s1092 + $0x340] sm:$0xff]
        %v2171 = vld [vmem:[%s1092 + $0x348] sm:$0xff]
        %v2172 = vld [vmem:[%s1092 + $0x350] sm:$0xff]
        %v2173 = vld [vmem:[%s1092 + $0x358] sm:$0xff]
        %v2174 = vld [vmem:[%s1092 + $0x360] sm:$0xff]
        %v2175 = vld [vmem:[%s1092 + $0x368] sm:$0xff]
        %v2176 = vld [vmem:[%s1092 + $0x370] sm:$0xff]
        %v2177 = vld [vmem:[%s1092 + $0x378] sm:$0xff]
        %v2178 = vld [vmem:[%s1092 + $0x380] sm:$0xff]
        %v2179 = vld [vmem:[%s1092 + $0x388] sm:$0xff]
        %v2180 = vld [vmem:[%s1092 + $0x390] sm:$0xff]
        %v2181 = vld [vmem:[%s1092 + $0x398] sm:$0xff]
        %v2182 = vld [vmem:[%s1092 + $0x3a0] sm:$0xff]
        %v2183 = vld [vmem:[%s1092 + $0x3a8] sm:$0xff]
        %v2184 = vld [vmem:[%s1092 + $0x3b0] sm:$0xff]
        %v2185 = vld [vmem:[%s1092 + $0x3b8] sm:$0xff]
        %v2186 = vld [vmem:[%s1092 + $0x3c0] sm:$0xff]
        %v2187 = vld [vmem:[%s1092 + $0x3c8] sm:$0xff]
        %v2188 = vld [vmem:[%s1092 + $0x3d0] sm:$0xff]
        %v2189 = vld [vmem:[%s1092 + $0x3d8] sm:$0xff]
        %v2190 = vld [vmem:[%s1092 + $0x3e0] sm:$0xff]
        %v2191 = vld [vmem:[%s1092 + $0x3e8] sm:$0xff]
        %v2192 = vld [vmem:[%s1092 + $0x3f0] sm:$0xff]
        %v2193 = vld [vmem:[%s1092 + $0x3f8] sm:$0xff]
        %v2194 = vld [vmem:[%s1102] sm:$0xff]
        %v2195 = vld [vmem:[%s1102 + $0x8] sm:$0xff]
        %v2198 = vperm.slane %v2194, 0
        %v2199 = vperm.slane %v2194, 1
        %v2200 = vperm.slane %v2194, 2
        %v2201 = vperm.slane %v2194, 3
        %v2202 = vperm.slane %v2194, 4
        %v2203 = vperm.slane %v2194, 5
        %v2204 = vperm.slane %v2194, 6
        %v2205 = vperm.slane %v2194, 7
        %v2206 = vperm.slane %v2195, 0
        %v2207 = vperm.slane %v2195, 1
        %v2208 = vperm.slane %v2195, 2
        %v2209 = vperm.slane %v2195, 3
        %v2210 = vperm.slane %v2195, 4
        %v2211 = vperm.slane %v2195, 5
        %v2212 = vperm.slane %v2195, 6
        %v2213 = vperm.slane %v2195, 7
        %v2358 = vunpack.c.l.b16 %v2066
        %v2359 = vunpack.c.h.b16 %v2066
        %v2360 = vunpack.c.l.b16 %v2067
        %v2361 = vunpack.c.h.b16 %v2067
        %v2362 = vunpack.c.l.b16 %v2068
        %v2363 = vunpack.c.h.b16 %v2068
        %v2364 = vunpack.c.l.b16 %v2069
        %v2365 = vunpack.c.h.b16 %v2069
        %v2366 = vunpack.c.l.b16 %v2070
        %v2367 = vunpack.c.h.b16 %v2070
        %v2368 = vunpack.c.l.b16 %v2071
        %v2369 = vunpack.c.h.b16 %v2071
        %v2370 = vunpack.c.l.b16 %v2072
        %v2371 = vunpack.c.h.b16 %v2072
        %v2372 = vunpack.c.l.b16 %v2073
        %v2373 = vunpack.c.h.b16 %v2073
        %v2374 = vunpack.c.l.b16 %v2074
        %v2375 = vunpack.c.h.b16 %v2074
        %v2376 = vunpack.c.l.b16 %v2075
        %v2377 = vunpack.c.h.b16 %v2075
        %v2378 = vunpack.c.l.b16 %v2076
        %v2379 = vunpack.c.h.b16 %v2076
        %v2380 = vunpack.c.l.b16 %v2077
        %v2381 = vunpack.c.h.b16 %v2077
        %v2382 = vunpack.c.l.b16 %v2078
        %v2383 = vunpack.c.h.b16 %v2078
        %v2384 = vunpack.c.l.b16 %v2079
        %v2385 = vunpack.c.h.b16 %v2079
        %v2386 = vunpack.c.l.b16 %v2080
        %v2387 = vunpack.c.h.b16 %v2080
        %v2388 = vunpack.c.l.b16 %v2081
        %v2389 = vunpack.c.h.b16 %v2081
        %v2390 = vunpack.c.l.b16 %v2082
        %v2391 = vunpack.c.h.b16 %v2082
        %v2392 = vunpack.c.l.b16 %v2083
        %v2393 = vunpack.c.h.b16 %v2083
        %v2394 = vunpack.c.l.b16 %v2084
        %v2395 = vunpack.c.h.b16 %v2084
        %v2396 = vunpack.c.l.b16 %v2085
        %v2397 = vunpack.c.h.b16 %v2085
        %v2398 = vunpack.c.l.b16 %v2086
        %v2399 = vunpack.c.h.b16 %v2086
        %v2400 = vunpack.c.l.b16 %v2087
        %v2401 = vunpack.c.h.b16 %v2087
        %v2402 = vunpack.c.l.b16 %v2088
        %v2403 = vunpack.c.h.b16 %v2088
        %v2404 = vunpack.c.l.b16 %v2089
        %v2405 = vunpack.c.h.b16 %v2089
        %v2406 = vunpack.c.l.b16 %v2090
        %v2407 = vunpack.c.h.b16 %v2090
        %v2408 = vunpack.c.l.b16 %v2091
        %v2409 = vunpack.c.h.b16 %v2091
        %v2410 = vunpack.c.l.b16 %v2092
        %v2411 = vunpack.c.h.b16 %v2092
        %v2412 = vunpack.c.l.b16 %v2093
        %v2413 = vunpack.c.h.b16 %v2093
        %v2414 = vunpack.c.l.b16 %v2094
        %v2415 = vunpack.c.h.b16 %v2094
        %v2416 = vunpack.c.l.b16 %v2095
        %v2417 = vunpack.c.h.b16 %v2095
        %v2418 = vunpack.c.l.b16 %v2096
        %v2419 = vunpack.c.h.b16 %v2096
        %v2420 = vunpack.c.l.b16 %v2097
        %v2421 = vunpack.c.h.b16 %v2097
        %v2422 = vunpack.c.l.b16 %v2098
        %v2423 = vunpack.c.h.b16 %v2098
        %v2424 = vunpack.c.l.b16 %v2099
        %v2425 = vunpack.c.h.b16 %v2099
        %v2426 = vunpack.c.l.b16 %v2100
        %v2427 = vunpack.c.h.b16 %v2100
        %v2428 = vunpack.c.l.b16 %v2101
        %v2429 = vunpack.c.h.b16 %v2101
        %v2430 = vunpack.c.l.b16 %v2102
        %v2431 = vunpack.c.h.b16 %v2102
        %v2432 = vunpack.c.l.b16 %v2103
        %v2433 = vunpack.c.h.b16 %v2103
        %v2434 = vunpack.c.l.b16 %v2104
        %v2435 = vunpack.c.h.b16 %v2104
        %v2436 = vunpack.c.l.b16 %v2105
        %v2437 = vunpack.c.h.b16 %v2105
        %v2438 = vunpack.c.l.b16 %v2106
        %v2439 = vunpack.c.h.b16 %v2106
        %v2440 = vunpack.c.l.b16 %v2107
        %v2441 = vunpack.c.h.b16 %v2107
        %v2442 = vunpack.c.l.b16 %v2108
        %v2443 = vunpack.c.h.b16 %v2108
        %v2444 = vunpack.c.l.b16 %v2109
        %v2445 = vunpack.c.h.b16 %v2109
        %v2446 = vunpack.c.l.b16 %v2110
        %v2447 = vunpack.c.h.b16 %v2110
        %v2448 = vunpack.c.l.b16 %v2111
        %v2449 = vunpack.c.h.b16 %v2111
        %v2450 = vunpack.c.l.b16 %v2112
        %v2451 = vunpack.c.h.b16 %v2112
        %v2452 = vunpack.c.l.b16 %v2113
        %v2453 = vunpack.c.h.b16 %v2113
        %v2454 = vunpack.c.l.b16 %v2114
        %v2455 = vunpack.c.h.b16 %v2114
        %v2456 = vunpack.c.l.b16 %v2115
        %v2457 = vunpack.c.h.b16 %v2115
        %v2458 = vunpack.c.l.b16 %v2116
        %v2459 = vunpack.c.h.b16 %v2116
        %v2460 = vunpack.c.l.b16 %v2117
        %v2461 = vunpack.c.h.b16 %v2117
        %v2462 = vunpack.c.l.b16 %v2118
        %v2463 = vunpack.c.h.b16 %v2118
        %v2464 = vunpack.c.l.b16 %v2119
        %v2465 = vunpack.c.h.b16 %v2119
        %v2466 = vunpack.c.l.b16 %v2120
        %v2467 = vunpack.c.h.b16 %v2120
        %v2468 = vunpack.c.l.b16 %v2121
        %v2469 = vunpack.c.h.b16 %v2121
        %v2470 = vunpack.c.l.b16 %v2122
        %v2471 = vunpack.c.h.b16 %v2122
        %v2472 = vunpack.c.l.b16 %v2123
        %v2473 = vunpack.c.h.b16 %v2123
        %v2474 = vunpack.c.l.b16 %v2124
        %v2475 = vunpack.c.h.b16 %v2124
        %v2476 = vunpack.c.l.b16 %v2125
        %v2477 = vunpack.c.h.b16 %v2125
        %v2478 = vunpack.c.l.b16 %v2126
        %v2479 = vunpack.c.h.b16 %v2126
        %v2480 = vunpack.c.l.b16 %v2127
        %v2481 = vunpack.c.h.b16 %v2127
        %v2482 = vunpack.c.l.b16 %v2128
        %v2483 = vunpack.c.h.b16 %v2128
        %v2484 = vunpack.c.l.b16 %v2129
        %v2485 = vunpack.c.h.b16 %v2129
        %v2486 = vunpack.c.l.b16 %v2130
        %v2487 = vunpack.c.h.b16 %v2130
        %v2488 = vunpack.c.l.b16 %v2131
        %v2489 = vunpack.c.h.b16 %v2131
        %v2490 = vunpack.c.l.b16 %v2132
        %v2491 = vunpack.c.h.b16 %v2132
        %v2492 = vunpack.c.l.b16 %v2133
        %v2493 = vunpack.c.h.b16 %v2133
        %v2494 = vunpack.c.l.b16 %v2134
        %v2495 = vunpack.c.h.b16 %v2134
        %v2496 = vunpack.c.l.b16 %v2135
        %v2497 = vunpack.c.h.b16 %v2135
        %v2498 = vunpack.c.l.b16 %v2136
        %v2499 = vunpack.c.h.b16 %v2136
        %v2500 = vunpack.c.l.b16 %v2137
        %v2501 = vunpack.c.h.b16 %v2137
        %v2502 = vunpack.c.l.b16 %v2138
        %v2503 = vunpack.c.h.b16 %v2138
        %v2504 = vunpack.c.l.b16 %v2139
        %v2505 = vunpack.c.h.b16 %v2139
        %v2506 = vunpack.c.l.b16 %v2140
        %v2507 = vunpack.c.h.b16 %v2140
        %v2508 = vunpack.c.l.b16 %v2141
        %v2509 = vunpack.c.h.b16 %v2141
        %v2510 = vunpack.c.l.b16 %v2142
        %v2511 = vunpack.c.h.b16 %v2142
        %v2512 = vunpack.c.l.b16 %v2143
        %v2513 = vunpack.c.h.b16 %v2143
        %v2514 = vunpack.c.l.b16 %v2144
        %v2515 = vunpack.c.h.b16 %v2144
        %v2516 = vunpack.c.l.b16 %v2145
        %v2517 = vunpack.c.h.b16 %v2145
        %v2518 = vunpack.c.l.b16 %v2146
        %v2519 = vunpack.c.h.b16 %v2146
        %v2520 = vunpack.c.l.b16 %v2147
        %v2521 = vunpack.c.h.b16 %v2147
        %v2522 = vunpack.c.l.b16 %v2148
        %v2523 = vunpack.c.h.b16 %v2148
        %v2524 = vunpack.c.l.b16 %v2149
        %v2525 = vunpack.c.h.b16 %v2149
        %v2526 = vunpack.c.l.b16 %v2150
        %v2527 = vunpack.c.h.b16 %v2150
        %v2528 = vunpack.c.l.b16 %v2151
        %v2529 = vunpack.c.h.b16 %v2151
        %v2530 = vunpack.c.l.b16 %v2152
        %v2531 = vunpack.c.h.b16 %v2152
        %v2532 = vunpack.c.l.b16 %v2153
        %v2533 = vunpack.c.h.b16 %v2153
        %v2534 = vunpack.c.l.b16 %v2154
        %v2535 = vunpack.c.h.b16 %v2154
        %v2536 = vunpack.c.l.b16 %v2155
        %v2537 = vunpack.c.h.b16 %v2155
        %v2538 = vunpack.c.l.b16 %v2156
        %v2539 = vunpack.c.h.b16 %v2156
        %v2540 = vunpack.c.l.b16 %v2157
        %v2541 = vunpack.c.h.b16 %v2157
        %v2542 = vunpack.c.l.b16 %v2158
        %v2543 = vunpack.c.h.b16 %v2158
        %v2544 = vunpack.c.l.b16 %v2159
        %v2545 = vunpack.c.h.b16 %v2159
        %v2546 = vunpack.c.l.b16 %v2160
        %v2547 = vunpack.c.h.b16 %v2160
        %v2548 = vunpack.c.l.b16 %v2161
        %v2549 = vunpack.c.h.b16 %v2161
        %v2550 = vunpack.c.l.b16 %v2162
        %v2551 = vunpack.c.h.b16 %v2162
        %v2552 = vunpack.c.l.b16 %v2163
        %v2553 = vunpack.c.h.b16 %v2163
        %v2554 = vunpack.c.l.b16 %v2164
        %v2555 = vunpack.c.h.b16 %v2164
        %v2556 = vunpack.c.l.b16 %v2165
        %v2557 = vunpack.c.h.b16 %v2165
        %v2558 = vunpack.c.l.b16 %v2166
        %v2559 = vunpack.c.h.b16 %v2166
        %v2560 = vunpack.c.l.b16 %v2167
        %v2561 = vunpack.c.h.b16 %v2167
        %v2562 = vunpack.c.l.b16 %v2168
        %v2563 = vunpack.c.h.b16 %v2168
        %v2564 = vunpack.c.l.b16 %v2169
        %v2565 = vunpack.c.h.b16 %v2169
        %v2566 = vunpack.c.l.b16 %v2170
        %v2567 = vunpack.c.h.b16 %v2170
        %v2568 = vunpack.c.l.b16 %v2171
        %v2569 = vunpack.c.h.b16 %v2171
        %v2570 = vunpack.c.l.b16 %v2172
        %v2571 = vunpack.c.h.b16 %v2172
        %v2572 = vunpack.c.l.b16 %v2173
        %v2573 = vunpack.c.h.b16 %v2173
        %v2574 = vunpack.c.l.b16 %v2174
        %v2575 = vunpack.c.h.b16 %v2174
        %v2576 = vunpack.c.l.b16 %v2175
        %v2577 = vunpack.c.h.b16 %v2175
        %v2578 = vunpack.c.l.b16 %v2176
        %v2579 = vunpack.c.h.b16 %v2176
        %v2580 = vunpack.c.l.b16 %v2177
        %v2581 = vunpack.c.h.b16 %v2177
        %v2582 = vunpack.c.l.b16 %v2178
        %v2583 = vunpack.c.h.b16 %v2178
        %v2584 = vunpack.c.l.b16 %v2179
        %v2585 = vunpack.c.h.b16 %v2179
        %v2586 = vunpack.c.l.b16 %v2180
        %v2587 = vunpack.c.h.b16 %v2180
        %v2588 = vunpack.c.l.b16 %v2181
        %v2589 = vunpack.c.h.b16 %v2181
        %v2590 = vunpack.c.l.b16 %v2182
        %v2591 = vunpack.c.h.b16 %v2182
        %v2592 = vunpack.c.l.b16 %v2183
        %v2593 = vunpack.c.h.b16 %v2183
        %v2594 = vunpack.c.l.b16 %v2184
        %v2595 = vunpack.c.h.b16 %v2184
        %v2596 = vunpack.c.l.b16 %v2185
        %v2597 = vunpack.c.h.b16 %v2185
        %v2598 = vunpack.c.l.b16 %v2186
        %v2599 = vunpack.c.h.b16 %v2186
        %v2600 = vunpack.c.l.b16 %v2187
        %v2601 = vunpack.c.h.b16 %v2187
        %v2602 = vunpack.c.l.b16 %v2188
        %v2603 = vunpack.c.h.b16 %v2188
        %v2604 = vunpack.c.l.b16 %v2189
        %v2605 = vunpack.c.h.b16 %v2189
        %v2606 = vunpack.c.l.b16 %v2190
        %v2607 = vunpack.c.h.b16 %v2190
        %v2608 = vunpack.c.l.b16 %v2191
        %v2609 = vunpack.c.h.b16 %v2191
        %v2610 = vunpack.c.l.b16 %v2192
        %v2611 = vunpack.c.h.b16 %v2192
        %v2612 = vunpack.c.l.b16 %v2193
        %v2613 = vunpack.c.h.b16 %v2193
        %v2614 = vpack.c.b16 %v2374, %v2358
        %v2615 = vpack.c.b16 %v2375, %v2359
        %v2616 = vpack.c.b16 %v2376, %v2360
        %v2617 = vpack.c.b16 %v2377, %v2361
        %v2618 = vpack.c.b16 %v2378, %v2362
        %v2619 = vpack.c.b16 %v2379, %v2363
        %v2620 = vpack.c.b16 %v2380, %v2364
        %v2621 = vpack.c.b16 %v2381, %v2365
        %v2622 = vpack.c.b16 %v2382, %v2366
        %v2623 = vpack.c.b16 %v2383, %v2367
        %v2624 = vpack.c.b16 %v2384, %v2368
        %v2625 = vpack.c.b16 %v2385, %v2369
        %v2626 = vpack.c.b16 %v2386, %v2370
        %v2627 = vpack.c.b16 %v2387, %v2371
        %v2628 = vpack.c.b16 %v2388, %v2372
        %v2629 = vpack.c.b16 %v2389, %v2373
        %v2630 = vpack.c.b16 %v2406, %v2390
        %v2631 = vpack.c.b16 %v2407, %v2391
        %v2632 = vpack.c.b16 %v2408, %v2392
        %v2633 = vpack.c.b16 %v2409, %v2393
        %v2634 = vpack.c.b16 %v2410, %v2394
        %v2635 = vpack.c.b16 %v2411, %v2395
        %v2636 = vpack.c.b16 %v2412, %v2396
        %v2637 = vpack.c.b16 %v2413, %v2397
        %v2638 = vpack.c.b16 %v2414, %v2398
        %v2639 = vpack.c.b16 %v2415, %v2399
        %v2640 = vpack.c.b16 %v2416, %v2400
        %v2641 = vpack.c.b16 %v2417, %v2401
        %v2642 = vpack.c.b16 %v2418, %v2402
        %v2643 = vpack.c.b16 %v2419, %v2403
        %v2644 = vpack.c.b16 %v2420, %v2404
        %v2645 = vpack.c.b16 %v2421, %v2405
        %v2646 = vpack.c.b16 %v2438, %v2422
        %v2647 = vpack.c.b16 %v2439, %v2423
        %v2648 = vpack.c.b16 %v2440, %v2424
        %v2649 = vpack.c.b16 %v2441, %v2425
        %v2650 = vpack.c.b16 %v2442, %v2426
        %v2651 = vpack.c.b16 %v2443, %v2427
        %v2652 = vpack.c.b16 %v2444, %v2428
        %v2653 = vpack.c.b16 %v2445, %v2429
        %v2654 = vpack.c.b16 %v2446, %v2430
        %v2655 = vpack.c.b16 %v2447, %v2431
        %v2656 = vpack.c.b16 %v2448, %v2432
        %v2657 = vpack.c.b16 %v2449, %v2433
        %v2658 = vpack.c.b16 %v2450, %v2434
        %v2659 = vpack.c.b16 %v2451, %v2435
        %v2660 = vpack.c.b16 %v2452, %v2436
        %v2661 = vpack.c.b16 %v2453, %v2437
        %v2662 = vpack.c.b16 %v2470, %v2454
        %v2663 = vpack.c.b16 %v2471, %v2455
        %v2664 = vpack.c.b16 %v2472, %v2456
        %v2665 = vpack.c.b16 %v2473, %v2457
        %v2666 = vpack.c.b16 %v2474, %v2458
        %v2667 = vpack.c.b16 %v2475, %v2459
        %v2668 = vpack.c.b16 %v2476, %v2460
        %v2669 = vpack.c.b16 %v2477, %v2461
        %v2670 = vpack.c.b16 %v2478, %v2462
        %v2671 = vpack.c.b16 %v2479, %v2463
        %v2672 = vpack.c.b16 %v2480, %v2464
        %v2673 = vpack.c.b16 %v2481, %v2465
        %v2674 = vpack.c.b16 %v2482, %v2466
        %v2675 = vpack.c.b16 %v2483, %v2467
        %v2676 = vpack.c.b16 %v2484, %v2468
        %v2677 = vpack.c.b16 %v2485, %v2469
        %v2678 = vpack.c.b16 %v2502, %v2486
        %v2679 = vpack.c.b16 %v2503, %v2487
        %v2680 = vpack.c.b16 %v2504, %v2488
        %v2681 = vpack.c.b16 %v2505, %v2489
        %v2682 = vpack.c.b16 %v2506, %v2490
        %v2683 = vpack.c.b16 %v2507, %v2491
        %v2684 = vpack.c.b16 %v2508, %v2492
        %v2685 = vpack.c.b16 %v2509, %v2493
        %v2686 = vpack.c.b16 %v2510, %v2494
        %v2687 = vpack.c.b16 %v2511, %v2495
        %v2688 = vpack.c.b16 %v2512, %v2496
        %v2689 = vpack.c.b16 %v2513, %v2497
        %v2690 = vpack.c.b16 %v2514, %v2498
        %v2691 = vpack.c.b16 %v2515, %v2499
        %v2692 = vpack.c.b16 %v2516, %v2500
        %v2693 = vpack.c.b16 %v2517, %v2501
        %v2694 = vpack.c.b16 %v2534, %v2518
        %v2695 = vpack.c.b16 %v2535, %v2519
        %v2696 = vpack.c.b16 %v2536, %v2520
        %v2697 = vpack.c.b16 %v2537, %v2521
        %v2698 = vpack.c.b16 %v2538, %v2522
        %v2699 = vpack.c.b16 %v2539, %v2523
        %v2700 = vpack.c.b16 %v2540, %v2524
        %v2701 = vpack.c.b16 %v2541, %v2525
        %v2702 = vpack.c.b16 %v2542, %v2526
        %v2703 = vpack.c.b16 %v2543, %v2527
        %v2704 = vpack.c.b16 %v2544, %v2528
        %v2705 = vpack.c.b16 %v2545, %v2529
        %v2706 = vpack.c.b16 %v2546, %v2530
        %v2707 = vpack.c.b16 %v2547, %v2531
        %v2708 = vpack.c.b16 %v2548, %v2532
        %v2709 = vpack.c.b16 %v2549, %v2533
        %v2710 = vpack.c.b16 %v2566, %v2550
        %v2711 = vpack.c.b16 %v2567, %v2551
        %v2712 = vpack.c.b16 %v2568, %v2552
        %v2713 = vpack.c.b16 %v2569, %v2553
        %v2714 = vpack.c.b16 %v2570, %v2554
        %v2715 = vpack.c.b16 %v2571, %v2555
        %v2716 = vpack.c.b16 %v2572, %v2556
        %v2717 = vpack.c.b16 %v2573, %v2557
        %v2718 = vpack.c.b16 %v2574, %v2558
        %v2719 = vpack.c.b16 %v2575, %v2559
        %v2720 = vpack.c.b16 %v2576, %v2560
        %v2721 = vpack.c.b16 %v2577, %v2561
        %v2722 = vpack.c.b16 %v2578, %v2562
        %v2723 = vpack.c.b16 %v2579, %v2563
        %v2724 = vpack.c.b16 %v2580, %v2564
        %v2725 = vpack.c.b16 %v2581, %v2565
        %v2726 = vpack.c.b16 %v2598, %v2582
        %v2727 = vpack.c.b16 %v2599, %v2583
        %v2728 = vpack.c.b16 %v2600, %v2584
        %v2729 = vpack.c.b16 %v2601, %v2585
        %v2730 = vpack.c.b16 %v2602, %v2586
        %v2731 = vpack.c.b16 %v2603, %v2587
        %v2732 = vpack.c.b16 %v2604, %v2588
        %v2733 = vpack.c.b16 %v2605, %v2589
        %v2734 = vpack.c.b16 %v2606, %v2590
        %v2735 = vpack.c.b16 %v2607, %v2591
        %v2736 = vpack.c.b16 %v2608, %v2592
        %v2737 = vpack.c.b16 %v2609, %v2593
        %v2738 = vpack.c.b16 %v2610, %v2594
        %v2739 = vpack.c.b16 %v2611, %v2595
        %v2740 = vpack.c.b16 %v2612, %v2596
        %v2741 = vpack.c.b16 %v2613, %v2597
        %2870 = vmatpush.bf16.msra.mxu0 %v2726
        %2871 = vmatpush.bf16.msra.mxu0 %v2710
        %2872 = vmatpush.bf16.msra.mxu0 %v2694
        %2873 = vmatpush.bf16.msra.mxu0 %v2678
        %2874 = vmatpush.bf16.msra.mxu0 %v2662
        %2875 = vmatpush.bf16.msra.mxu0 %v2646
        %2876 = vmatpush.bf16.msra.mxu0 %v2630
        %2877 = vmatpush.bf16.msra.mxu0 %v2614
        %2878 = vmatmul.bf16.gmra.mxu0 %v2065
        %v2879 = vpop.f32.mrf.mxu0
        %v2880 = vadd.f32 %v2198, %v2879
        %v2881 = vpop.f32.mrf.mxu0
        %v2882 = vadd.f32 %v2198, %v2881
        %2883 = vdwg.mxu0
        %2884 = vmatpush.bf16.msra.mxu0 %v2727
        %2885 = vmatpush.bf16.msra.mxu0 %v2711
        %2886 = vmatpush.bf16.msra.mxu0 %v2695
        %2887 = vmatpush.bf16.msra.mxu0 %v2679
        %2888 = vmatpush.bf16.msra.mxu0 %v2663
        %2889 = vmatpush.bf16.msra.mxu0 %v2647
        %2890 = vmatpush.bf16.msra.mxu0 %v2631
        %2891 = vmatpush.bf16.msra.mxu0 %v2615
        %2892 = vmatmul.bf16.gmra.mxu0 %v2065
        %v2893 = vpop.f32.mrf.mxu0
        %v2894 = vadd.f32 %v2199, %v2893
        %v2895 = vpop.f32.mrf.mxu0
        %v2896 = vadd.f32 %v2199, %v2895
        %2897 = vdwg.mxu0
        %2898 = vmatpush.bf16.msra.mxu0 %v2728
        %2899 = vmatpush.bf16.msra.mxu0 %v2712
        %2900 = vmatpush.bf16.msra.mxu0 %v2696
        %2901 = vmatpush.bf16.msra.mxu0 %v2680
        %2902 = vmatpush.bf16.msra.mxu0 %v2664
        %2903 = vmatpush.bf16.msra.mxu0 %v2648
        %2904 = vmatpush.bf16.msra.mxu0 %v2632
        %2905 = vmatpush.bf16.msra.mxu0 %v2616
        %2906 = vmatmul.bf16.gmra.mxu0 %v2065
        %v2907 = vpop.f32.mrf.mxu0
        %v2908 = vadd.f32 %v2200, %v2907
        %v2909 = vpop.f32.mrf.mxu0
        %v2910 = vadd.f32 %v2200, %v2909
        %2911 = vdwg.mxu0
        %2912 = vmatpush.bf16.msra.mxu0 %v2729
        %2913 = vmatpush.bf16.msra.mxu0 %v2713
        %2914 = vmatpush.bf16.msra.mxu0 %v2697
        %2915 = vmatpush.bf16.msra.mxu0 %v2681
        %2916 = vmatpush.bf16.msra.mxu0 %v2665
        %2917 = vmatpush.bf16.msra.mxu0 %v2649
        %2918 = vmatpush.bf16.msra.mxu0 %v2633
        %2919 = vmatpush.bf16.msra.mxu0 %v2617
        %2920 = vmatmul.bf16.gmra.mxu0 %v2065
        %v2921 = vpop.f32.mrf.mxu0
        %v2922 = vadd.f32 %v2201, %v2921
        %v2923 = vpop.f32.mrf.mxu0
        %v2924 = vadd.f32 %v2201, %v2923
        %2925 = vdwg.mxu0
        %2926 = vmatpush.bf16.msra.mxu0 %v2730
        %2927 = vmatpush.bf16.msra.mxu0 %v2714
        %2928 = vmatpush.bf16.msra.mxu0 %v2698
        %2929 = vmatpush.bf16.msra.mxu0 %v2682
        %2930 = vmatpush.bf16.msra.mxu0 %v2666
        %2931 = vmatpush.bf16.msra.mxu0 %v2650
        %2932 = vmatpush.bf16.msra.mxu0 %v2634
        %2933 = vmatpush.bf16.msra.mxu0 %v2618
        %2934 = vmatmul.bf16.gmra.mxu0 %v2065
        %v2935 = vpop.f32.mrf.mxu0
        %v2936 = vadd.f32 %v2202, %v2935
        %v2937 = vpop.f32.mrf.mxu0
        %v2938 = vadd.f32 %v2202, %v2937
        %2939 = vdwg.mxu0
        %2940 = vmatpush.bf16.msra.mxu0 %v2731
        %2941 = vmatpush.bf16.msra.mxu0 %v2715
        %2942 = vmatpush.bf16.msra.mxu0 %v2699
        %2943 = vmatpush.bf16.msra.mxu0 %v2683
        %2944 = vmatpush.bf16.msra.mxu0 %v2667
        %2945 = vmatpush.bf16.msra.mxu0 %v2651
        %2946 = vmatpush.bf16.msra.mxu0 %v2635
        %2947 = vmatpush.bf16.msra.mxu0 %v2619
        %2948 = vmatmul.bf16.gmra.mxu0 %v2065
        %v2949 = vpop.f32.mrf.mxu0
        %v2950 = vadd.f32 %v2203, %v2949
        %v2951 = vpop.f32.mrf.mxu0
        %v2952 = vadd.f32 %v2203, %v2951
        %2953 = vdwg.mxu0
        %2954 = vmatpush.bf16.msra.mxu0 %v2732
        %2955 = vmatpush.bf16.msra.mxu0 %v2716
        %2956 = vmatpush.bf16.msra.mxu0 %v2700
        %2957 = vmatpush.bf16.msra.mxu0 %v2684
        %2958 = vmatpush.bf16.msra.mxu0 %v2668
        %2959 = vmatpush.bf16.msra.mxu0 %v2652
        %2960 = vmatpush.bf16.msra.mxu0 %v2636
        %2961 = vmatpush.bf16.msra.mxu0 %v2620
        %2962 = vmatmul.bf16.gmra.mxu0 %v2065
        %v2963 = vpop.f32.mrf.mxu0
        %v2964 = vadd.f32 %v2204, %v2963
        %v2965 = vpop.f32.mrf.mxu0
        %v2966 = vadd.f32 %v2204, %v2965
        %2967 = vdwg.mxu0
        %2968 = vmatpush.bf16.msra.mxu0 %v2733
        %2969 = vmatpush.bf16.msra.mxu0 %v2717
        %2970 = vmatpush.bf16.msra.mxu0 %v2701
        %2971 = vmatpush.bf16.msra.mxu0 %v2685
        %2972 = vmatpush.bf16.msra.mxu0 %v2669
        %2973 = vmatpush.bf16.msra.mxu0 %v2653
        %2974 = vmatpush.bf16.msra.mxu0 %v2637
        %2975 = vmatpush.bf16.msra.mxu0 %v2621
        %2976 = vmatmul.bf16.gmra.mxu0 %v2065
        %v2977 = vpop.f32.mrf.mxu0
        %v2978 = vadd.f32 %v2205, %v2977
        %v2979 = vpop.f32.mrf.mxu0
        %v2980 = vadd.f32 %v2205, %v2979
        %2981 = vdwg.mxu0
        %2982 = vmatpush.bf16.msra.mxu0 %v2734
        %2983 = vmatpush.bf16.msra.mxu0 %v2718
        %2984 = vmatpush.bf16.msra.mxu0 %v2702
        %2985 = vmatpush.bf16.msra.mxu0 %v2686
        %2986 = vmatpush.bf16.msra.mxu0 %v2670
        %2987 = vmatpush.bf16.msra.mxu0 %v2654
        %2988 = vmatpush.bf16.msra.mxu0 %v2638
        %2989 = vmatpush.bf16.msra.mxu0 %v2622
        %2990 = vmatmul.bf16.gmra.mxu0 %v2065
        %v2991 = vpop.f32.mrf.mxu0
        %v2992 = vadd.f32 %v2206, %v2991
        %v2993 = vpop.f32.mrf.mxu0
        %v2994 = vadd.f32 %v2206, %v2993
        %2995 = vdwg.mxu0
        %2996 = vmatpush.bf16.msra.mxu0 %v2735
        %2997 = vmatpush.bf16.msra.mxu0 %v2719
        %2998 = vmatpush.bf16.msra.mxu0 %v2703
        %2999 = vmatpush.bf16.msra.mxu0 %v2687
        %3000 = vmatpush.bf16.msra.mxu0 %v2671
        %3001 = vmatpush.bf16.msra.mxu0 %v2655
        %3002 = vmatpush.bf16.msra.mxu0 %v2639
        %3003 = vmatpush.bf16.msra.mxu0 %v2623
        %3004 = vmatmul.bf16.gmra.mxu0 %v2065
        %v3005 = vpop.f32.mrf.mxu0
        %v3006 = vadd.f32 %v2207, %v3005
        %v3007 = vpop.f32.mrf.mxu0
        %v3008 = vadd.f32 %v2207, %v3007
        %3009 = vdwg.mxu0
        %3010 = vmatpush.bf16.msra.mxu0 %v2736
        %3011 = vmatpush.bf16.msra.mxu0 %v2720
        %3012 = vmatpush.bf16.msra.mxu0 %v2704
        %3013 = vmatpush.bf16.msra.mxu0 %v2688
        %3014 = vmatpush.bf16.msra.mxu0 %v2672
        %3015 = vmatpush.bf16.msra.mxu0 %v2656
        %3016 = vmatpush.bf16.msra.mxu0 %v2640
        %3017 = vmatpush.bf16.msra.mxu0 %v2624
        %3018 = vmatmul.bf16.gmra.mxu0 %v2065
        %v3019 = vpop.f32.mrf.mxu0
        %v3020 = vadd.f32 %v2208, %v3019
        %v3021 = vpop.f32.mrf.mxu0
        %v3022 = vadd.f32 %v2208, %v3021
        %3023 = vdwg.mxu0
        %3024 = vmatpush.bf16.msra.mxu0 %v2737
        %3025 = vmatpush.bf16.msra.mxu0 %v2721
        %3026 = vmatpush.bf16.msra.mxu0 %v2705
        %3027 = vmatpush.bf16.msra.mxu0 %v2689
        %3028 = vmatpush.bf16.msra.mxu0 %v2673
        %3029 = vmatpush.bf16.msra.mxu0 %v2657
        %3030 = vmatpush.bf16.msra.mxu0 %v2641
        %3031 = vmatpush.bf16.msra.mxu0 %v2625
        %3032 = vmatmul.bf16.gmra.mxu0 %v2065
        %v3033 = vpop.f32.mrf.mxu0
        %v3034 = vadd.f32 %v2209, %v3033
        %v3035 = vpop.f32.mrf.mxu0
        %v3036 = vadd.f32 %v2209, %v3035
        %3037 = vdwg.mxu0
        %3038 = vmatpush.bf16.msra.mxu0 %v2738
        %3039 = vmatpush.bf16.msra.mxu0 %v2722
        %3040 = vmatpush.bf16.msra.mxu0 %v2706
        %3041 = vmatpush.bf16.msra.mxu0 %v2690
        %3042 = vmatpush.bf16.msra.mxu0 %v2674
        %3043 = vmatpush.bf16.msra.mxu0 %v2658
        %3044 = vmatpush.bf16.msra.mxu0 %v2642
        %3045 = vmatpush.bf16.msra.mxu0 %v2626
        %3046 = vmatmul.bf16.gmra.mxu0 %v2065
        %v3047 = vpop.f32.mrf.mxu0
        %v3048 = vadd.f32 %v2210, %v3047
        %v3049 = vpop.f32.mrf.mxu0
        %v3050 = vadd.f32 %v2210, %v3049
        %3051 = vdwg.mxu0
        %3052 = vmatpush.bf16.msra.mxu0 %v2739
        %3053 = vmatpush.bf16.msra.mxu0 %v2723
        %3054 = vmatpush.bf16.msra.mxu0 %v2707
        %3055 = vmatpush.bf16.msra.mxu0 %v2691
        %3056 = vmatpush.bf16.msra.mxu0 %v2675
        %3057 = vmatpush.bf16.msra.mxu0 %v2659
        %3058 = vmatpush.bf16.msra.mxu0 %v2643
        %3059 = vmatpush.bf16.msra.mxu0 %v2627
        %3060 = vmatmul.bf16.gmra.mxu0 %v2065
        %v3061 = vpop.f32.mrf.mxu0
        %v3062 = vadd.f32 %v2211, %v3061
        %v3063 = vpop.f32.mrf.mxu0
        %v3064 = vadd.f32 %v2211, %v3063
        %3065 = vdwg.mxu0
        %3066 = vmatpush.bf16.msra.mxu0 %v2740
        %3067 = vmatpush.bf16.msra.mxu0 %v2724
        %3068 = vmatpush.bf16.msra.mxu0 %v2708
        %3069 = vmatpush.bf16.msra.mxu0 %v2692
        %3070 = vmatpush.bf16.msra.mxu0 %v2676
        %3071 = vmatpush.bf16.msra.mxu0 %v2660
        %3072 = vmatpush.bf16.msra.mxu0 %v2644
        %3073 = vmatpush.bf16.msra.mxu0 %v2628
        %3074 = vmatmul.bf16.gmra.mxu0 %v2065
        %v3075 = vpop.f32.mrf.mxu0
        %v3076 = vadd.f32 %v2212, %v3075
        %v3077 = vpop.f32.mrf.mxu0
        %v3078 = vadd.f32 %v2212, %v3077
        %3079 = vdwg.mxu0
        %3080 = vmatpush.bf16.msra.mxu0 %v2741
        %3081 = vmatpush.bf16.msra.mxu0 %v2725
        %3082 = vmatpush.bf16.msra.mxu0 %v2709
        %3083 = vmatpush.bf16.msra.mxu0 %v2693
        %3084 = vmatpush.bf16.msra.mxu0 %v2677
        %3085 = vmatpush.bf16.msra.mxu0 %v2661
        %3086 = vmatpush.bf16.msra.mxu0 %v2645
        %3087 = vmatpush.bf16.msra.mxu0 %v2629
        %3088 = vmatmul.bf16.gmra.mxu0 %v2065
        %v3089 = vpop.f32.mrf.mxu0
        %v3090 = vadd.f32 %v2213, %v3089
        %v3091 = vpop.f32.mrf.mxu0
        %v3092 = vadd.f32 %v2213, %v3091
        %3093 = vdwg.mxu0
        %v3094 = vmax.f32 %v2880, 0.0
        %v3095 = vmax.f32 %v2894, 0.0
        %v3096 = vmax.f32 %v2908, 0.0
        %v3097 = vmax.f32 %v2922, 0.0
        %v3098 = vmax.f32 %v2936, 0.0
        %v3099 = vmax.f32 %v2950, 0.0
        %v3100 = vmax.f32 %v2964, 0.0
        %v3101 = vmax.f32 %v2978, 0.0
        %v3102 = vmax.f32 %v2992, 0.0
        %v3103 = vmax.f32 %v3006, 0.0
        %v3104 = vmax.f32 %v3020, 0.0
        %v3105 = vmax.f32 %v3034, 0.0
        %v3106 = vmax.f32 %v3048, 0.0
        %v3107 = vmax.f32 %v3062, 0.0
        %v3108 = vmax.f32 %v3076, 0.0
        %v3109 = vmax.f32 %v3090, 0.0
        %v3110 = vmax.f32 %v2882, 0.0
        %v3111 = vmax.f32 %v2896, 0.0
        %v3112 = vmax.f32 %v2910, 0.0
        %v3113 = vmax.f32 %v2924, 0.0
        %v3114 = vmax.f32 %v2938, 0.0
        %v3115 = vmax.f32 %v2952, 0.0
        %v3116 = vmax.f32 %v2966, 0.0
        %v3117 = vmax.f32 %v2980, 0.0
        %v3118 = vmax.f32 %v2994, 0.0
        %v3119 = vmax.f32 %v3008, 0.0
        %v3120 = vmax.f32 %v3022, 0.0
        %v3121 = vmax.f32 %v3036, 0.0
        %v3122 = vmax.f32 %v3050, 0.0
        %v3123 = vmax.f32 %v3064, 0.0
        %v3124 = vmax.f32 %v3078, 0.0
        %v3125 = vmax.f32 %v3092, 0.0
        %v3126 = vpack.c.bf16 %v3110, %v3094
        %v3127 = vpack.c.bf16 %v3111, %v3095
        %v3128 = vpack.c.bf16 %v3112, %v3096
        %v3129 = vpack.c.bf16 %v3113, %v3097
        %v3130 = vpack.c.bf16 %v3114, %v3098
        %v3131 = vpack.c.bf16 %v3115, %v3099
        %v3132 = vpack.c.bf16 %v3116, %v3100
        %v3133 = vpack.c.bf16 %v3117, %v3101
        %v3134 = vpack.c.bf16 %v3118, %v3102
        %v3135 = vpack.c.bf16 %v3119, %v3103
        %v3136 = vpack.c.bf16 %v3120, %v3104
        %v3137 = vpack.c.bf16 %v3121, %v3105
        %v3138 = vpack.c.bf16 %v3122, %v3106
        %v3139 = vpack.c.bf16 %v3123, %v3107
        %v3140 = vpack.c.bf16 %v3124, %v3108
        %v3141 = vpack.c.bf16 %v3125, %v3109
        %v3142 = vld [vmem:[%s1112] sm:$0xf]
        %v3143 = vld [vmem:[%s1112 + $0x4] sm:$0xf]
        %v3144 = vld [vmem:[%s1112 + $0x8] sm:$0xf]
        %v3145 = vld [vmem:[%s1112 + $0xc] sm:$0xf]
        %v3146 = vld [vmem:[%s1112 + $0x10] sm:$0xf]
        %v3147 = vld [vmem:[%s1112 + $0x14] sm:$0xf]
        %v3148 = vld [vmem:[%s1112 + $0x18] sm:$0xf]
        %v3149 = vld [vmem:[%s1112 + $0x1c] sm:$0xf]
        %v3150 = vld [vmem:[%s1112 + $0x20] sm:$0xf]
        %v3151 = vld [vmem:[%s1112 + $0x24] sm:$0xf]
        %v3152 = vld [vmem:[%s1112 + $0x28] sm:$0xf]
        %v3153 = vld [vmem:[%s1112 + $0x2c] sm:$0xf]
        %v3154 = vld [vmem:[%s1112 + $0x30] sm:$0xf]
        %v3155 = vld [vmem:[%s1112 + $0x34] sm:$0xf]
        %v3156 = vld [vmem:[%s1112 + $0x38] sm:$0xf]
        %v3157 = vld [vmem:[%s1112 + $0x3c] sm:$0xf]
        %v3158 = vld [vmem:[%s1112 + $0x40] sm:$0xf]
        %v3159 = vld [vmem:[%s1112 + $0x44] sm:$0xf]
        %v3160 = vld [vmem:[%s1112 + $0x48] sm:$0xf]
        %v3161 = vld [vmem:[%s1112 + $0x4c] sm:$0xf]
        %v3162 = vld [vmem:[%s1112 + $0x50] sm:$0xf]
        %v3163 = vld [vmem:[%s1112 + $0x54] sm:$0xf]
        %v3164 = vld [vmem:[%s1112 + $0x58] sm:$0xf]
        %v3165 = vld [vmem:[%s1112 + $0x5c] sm:$0xf]
        %v3166 = vld [vmem:[%s1112 + $0x60] sm:$0xf]
        %v3167 = vld [vmem:[%s1112 + $0x64] sm:$0xf]
        %v3168 = vld [vmem:[%s1112 + $0x68] sm:$0xf]
        %v3169 = vld [vmem:[%s1112 + $0x6c] sm:$0xf]
        %v3170 = vld [vmem:[%s1112 + $0x70] sm:$0xf]
        %v3171 = vld [vmem:[%s1112 + $0x74] sm:$0xf]
        %v3172 = vld [vmem:[%s1112 + $0x78] sm:$0xf]
        %v3173 = vld [vmem:[%s1112 + $0x7c] sm:$0xf]
        %v3174 = vld [vmem:[%s1112 + $0x80] sm:$0xf]
        %v3175 = vld [vmem:[%s1112 + $0x84] sm:$0xf]
        %v3176 = vld [vmem:[%s1112 + $0x88] sm:$0xf]
        %v3177 = vld [vmem:[%s1112 + $0x8c] sm:$0xf]
        %v3178 = vld [vmem:[%s1112 + $0x90] sm:$0xf]
        %v3179 = vld [vmem:[%s1112 + $0x94] sm:$0xf]
        %v3180 = vld [vmem:[%s1112 + $0x98] sm:$0xf]
        %v3181 = vld [vmem:[%s1112 + $0x9c] sm:$0xf]
        %v3182 = vld [vmem:[%s1112 + $0xa0] sm:$0xf]
        %v3183 = vld [vmem:[%s1112 + $0xa4] sm:$0xf]
        %v3184 = vld [vmem:[%s1112 + $0xa8] sm:$0xf]
        %v3185 = vld [vmem:[%s1112 + $0xac] sm:$0xf]
        %v3186 = vld [vmem:[%s1112 + $0xb0] sm:$0xf]
        %v3187 = vld [vmem:[%s1112 + $0xb4] sm:$0xf]
        %v3188 = vld [vmem:[%s1112 + $0xb8] sm:$0xf]
        %v3189 = vld [vmem:[%s1112 + $0xbc] sm:$0xf]
        %v3190 = vld [vmem:[%s1112 + $0xc0] sm:$0xf]
        %v3191 = vld [vmem:[%s1112 + $0xc4] sm:$0xf]
        %v3192 = vld [vmem:[%s1112 + $0xc8] sm:$0xf]
        %v3193 = vld [vmem:[%s1112 + $0xcc] sm:$0xf]
        %v3194 = vld [vmem:[%s1112 + $0xd0] sm:$0xf]
        %v3195 = vld [vmem:[%s1112 + $0xd4] sm:$0xf]
        %v3196 = vld [vmem:[%s1112 + $0xd8] sm:$0xf]
        %v3197 = vld [vmem:[%s1112 + $0xdc] sm:$0xf]
        %v3198 = vld [vmem:[%s1112 + $0xe0] sm:$0xf]
        %v3199 = vld [vmem:[%s1112 + $0xe4] sm:$0xf]
        %v3200 = vld [vmem:[%s1112 + $0xe8] sm:$0xf]
        %v3201 = vld [vmem:[%s1112 + $0xec] sm:$0xf]
        %v3202 = vld [vmem:[%s1112 + $0xf0] sm:$0xf]
        %v3203 = vld [vmem:[%s1112 + $0xf4] sm:$0xf]
        %v3204 = vld [vmem:[%s1112 + $0xf8] sm:$0xf]
        %v3205 = vld [vmem:[%s1112 + $0xfc] sm:$0xf]
        %v3206 = vld [vmem:[%s1112 + $0x100] sm:$0xf]
        %v3207 = vld [vmem:[%s1112 + $0x104] sm:$0xf]
        %v3208 = vld [vmem:[%s1112 + $0x108] sm:$0xf]
        %v3209 = vld [vmem:[%s1112 + $0x10c] sm:$0xf]
        %v3210 = vld [vmem:[%s1112 + $0x110] sm:$0xf]
        %v3211 = vld [vmem:[%s1112 + $0x114] sm:$0xf]
        %v3212 = vld [vmem:[%s1112 + $0x118] sm:$0xf]
        %v3213 = vld [vmem:[%s1112 + $0x11c] sm:$0xf]
        %v3214 = vld [vmem:[%s1112 + $0x120] sm:$0xf]
        %v3215 = vld [vmem:[%s1112 + $0x124] sm:$0xf]
        %v3216 = vld [vmem:[%s1112 + $0x128] sm:$0xf]
        %v3217 = vld [vmem:[%s1112 + $0x12c] sm:$0xf]
        %v3218 = vld [vmem:[%s1112 + $0x130] sm:$0xf]
        %v3219 = vld [vmem:[%s1112 + $0x134] sm:$0xf]
        %v3220 = vld [vmem:[%s1112 + $0x138] sm:$0xf]
        %v3221 = vld [vmem:[%s1112 + $0x13c] sm:$0xf]
        %v3222 = vld [vmem:[%s1112 + $0x140] sm:$0xf]
        %v3223 = vld [vmem:[%s1112 + $0x144] sm:$0xf]
        %v3224 = vld [vmem:[%s1112 + $0x148] sm:$0xf]
        %v3225 = vld [vmem:[%s1112 + $0x14c] sm:$0xf]
        %v3226 = vld [vmem:[%s1112 + $0x150] sm:$0xf]
        %v3227 = vld [vmem:[%s1112 + $0x154] sm:$0xf]
        %v3228 = vld [vmem:[%s1112 + $0x158] sm:$0xf]
        %v3229 = vld [vmem:[%s1112 + $0x15c] sm:$0xf]
        %v3230 = vld [vmem:[%s1112 + $0x160] sm:$0xf]
        %v3231 = vld [vmem:[%s1112 + $0x164] sm:$0xf]
        %v3232 = vld [vmem:[%s1112 + $0x168] sm:$0xf]
        %v3233 = vld [vmem:[%s1112 + $0x16c] sm:$0xf]
        %v3234 = vld [vmem:[%s1112 + $0x170] sm:$0xf]
        %v3235 = vld [vmem:[%s1112 + $0x174] sm:$0xf]
        %v3236 = vld [vmem:[%s1112 + $0x178] sm:$0xf]
        %v3237 = vld [vmem:[%s1112 + $0x17c] sm:$0xf]
        %v3238 = vld [vmem:[%s1112 + $0x180] sm:$0xf]
        %v3239 = vld [vmem:[%s1112 + $0x184] sm:$0xf]
        %v3240 = vld [vmem:[%s1112 + $0x188] sm:$0xf]
        %v3241 = vld [vmem:[%s1112 + $0x18c] sm:$0xf]
        %v3242 = vld [vmem:[%s1112 + $0x190] sm:$0xf]
        %v3243 = vld [vmem:[%s1112 + $0x194] sm:$0xf]
        %v3244 = vld [vmem:[%s1112 + $0x198] sm:$0xf]
        %v3245 = vld [vmem:[%s1112 + $0x19c] sm:$0xf]
        %v3246 = vld [vmem:[%s1112 + $0x1a0] sm:$0xf]
        %v3247 = vld [vmem:[%s1112 + $0x1a4] sm:$0xf]
        %v3248 = vld [vmem:[%s1112 + $0x1a8] sm:$0xf]
        %v3249 = vld [vmem:[%s1112 + $0x1ac] sm:$0xf]
        %v3250 = vld [vmem:[%s1112 + $0x1b0] sm:$0xf]
        %v3251 = vld [vmem:[%s1112 + $0x1b4] sm:$0xf]
        %v3252 = vld [vmem:[%s1112 + $0x1b8] sm:$0xf]
        %v3253 = vld [vmem:[%s1112 + $0x1bc] sm:$0xf]
        %v3254 = vld [vmem:[%s1112 + $0x1c0] sm:$0xf]
        %v3255 = vld [vmem:[%s1112 + $0x1c4] sm:$0xf]
        %v3256 = vld [vmem:[%s1112 + $0x1c8] sm:$0xf]
        %v3257 = vld [vmem:[%s1112 + $0x1cc] sm:$0xf]
        %v3258 = vld [vmem:[%s1112 + $0x1d0] sm:$0xf]
        %v3259 = vld [vmem:[%s1112 + $0x1d4] sm:$0xf]
        %v3260 = vld [vmem:[%s1112 + $0x1d8] sm:$0xf]
        %v3261 = vld [vmem:[%s1112 + $0x1dc] sm:$0xf]
        %v3262 = vld [vmem:[%s1112 + $0x1e0] sm:$0xf]
        %v3263 = vld [vmem:[%s1112 + $0x1e4] sm:$0xf]
        %v3264 = vld [vmem:[%s1112 + $0x1e8] sm:$0xf]
        %v3265 = vld [vmem:[%s1112 + $0x1ec] sm:$0xf]
        %v3266 = vld [vmem:[%s1112 + $0x1f0] sm:$0xf]
        %v3267 = vld [vmem:[%s1112 + $0x1f4] sm:$0xf]
        %v3268 = vld [vmem:[%s1112 + $0x1f8] sm:$0xf]
        %v3269 = vld [vmem:[%s1112 + $0x1fc] sm:$0xf]
        %v3270 = vld [vmem:[%s1112 + $0x200] sm:$0xf]
        %v3271 = vld [vmem:[%s1112 + $0x204] sm:$0xf]
        %v3272 = vld [vmem:[%s1112 + $0x208] sm:$0xf]
        %v3273 = vld [vmem:[%s1112 + $0x20c] sm:$0xf]
        %v3274 = vld [vmem:[%s1112 + $0x210] sm:$0xf]
        %v3275 = vld [vmem:[%s1112 + $0x214] sm:$0xf]
        %v3276 = vld [vmem:[%s1112 + $0x218] sm:$0xf]
        %v3277 = vld [vmem:[%s1112 + $0x21c] sm:$0xf]
        %v3278 = vld [vmem:[%s1112 + $0x220] sm:$0xf]
        %v3279 = vld [vmem:[%s1112 + $0x224] sm:$0xf]
        %v3280 = vld [vmem:[%s1112 + $0x228] sm:$0xf]
        %v3281 = vld [vmem:[%s1112 + $0x22c] sm:$0xf]
        %v3282 = vld [vmem:[%s1112 + $0x230] sm:$0xf]
        %v3283 = vld [vmem:[%s1112 + $0x234] sm:$0xf]
        %v3284 = vld [vmem:[%s1112 + $0x238] sm:$0xf]
        %v3285 = vld [vmem:[%s1112 + $0x23c] sm:$0xf]
        %v3286 = vld [vmem:[%s1112 + $0x240] sm:$0xf]
        %v3287 = vld [vmem:[%s1112 + $0x244] sm:$0xf]
        %v3288 = vld [vmem:[%s1112 + $0x248] sm:$0xf]
        %v3289 = vld [vmem:[%s1112 + $0x24c] sm:$0xf]
        %v3290 = vld [vmem:[%s1112 + $0x250] sm:$0xf]
        %v3291 = vld [vmem:[%s1112 + $0x254] sm:$0xf]
        %v3292 = vld [vmem:[%s1112 + $0x258] sm:$0xf]
        %v3293 = vld [vmem:[%s1112 + $0x25c] sm:$0xf]
        %v3294 = vld [vmem:[%s1112 + $0x260] sm:$0xf]
        %v3295 = vld [vmem:[%s1112 + $0x264] sm:$0xf]
        %v3296 = vld [vmem:[%s1112 + $0x268] sm:$0xf]
        %v3297 = vld [vmem:[%s1112 + $0x26c] sm:$0xf]
        %v3298 = vld [vmem:[%s1112 + $0x270] sm:$0xf]
        %v3299 = vld [vmem:[%s1112 + $0x274] sm:$0xf]
        %v3300 = vld [vmem:[%s1112 + $0x278] sm:$0xf]
        %v3301 = vld [vmem:[%s1112 + $0x27c] sm:$0xf]
        %v3302 = vld [vmem:[%s1112 + $0x280] sm:$0xf]
        %v3303 = vld [vmem:[%s1112 + $0x284] sm:$0xf]
        %v3304 = vld [vmem:[%s1112 + $0x288] sm:$0xf]
        %v3305 = vld [vmem:[%s1112 + $0x28c] sm:$0xf]
        %v3306 = vld [vmem:[%s1112 + $0x290] sm:$0xf]
        %v3307 = vld [vmem:[%s1112 + $0x294] sm:$0xf]
        %v3308 = vld [vmem:[%s1112 + $0x298] sm:$0xf]
        %v3309 = vld [vmem:[%s1112 + $0x29c] sm:$0xf]
        %v3310 = vld [vmem:[%s1112 + $0x2a0] sm:$0xf]
        %v3311 = vld [vmem:[%s1112 + $0x2a4] sm:$0xf]
        %v3312 = vld [vmem:[%s1112 + $0x2a8] sm:$0xf]
        %v3313 = vld [vmem:[%s1112 + $0x2ac] sm:$0xf]
        %v3314 = vld [vmem:[%s1112 + $0x2b0] sm:$0xf]
        %v3315 = vld [vmem:[%s1112 + $0x2b4] sm:$0xf]
        %v3316 = vld [vmem:[%s1112 + $0x2b8] sm:$0xf]
        %v3317 = vld [vmem:[%s1112 + $0x2bc] sm:$0xf]
        %v3318 = vld [vmem:[%s1112 + $0x2c0] sm:$0xf]
        %v3319 = vld [vmem:[%s1112 + $0x2c4] sm:$0xf]
        %v3320 = vld [vmem:[%s1112 + $0x2c8] sm:$0xf]
        %v3321 = vld [vmem:[%s1112 + $0x2cc] sm:$0xf]
        %v3322 = vld [vmem:[%s1112 + $0x2d0] sm:$0xf]
        %v3323 = vld [vmem:[%s1112 + $0x2d4] sm:$0xf]
        %v3324 = vld [vmem:[%s1112 + $0x2d8] sm:$0xf]
        %v3325 = vld [vmem:[%s1112 + $0x2dc] sm:$0xf]
        %v3326 = vld [vmem:[%s1112 + $0x2e0] sm:$0xf]
        %v3327 = vld [vmem:[%s1112 + $0x2e4] sm:$0xf]
        %v3328 = vld [vmem:[%s1112 + $0x2e8] sm:$0xf]
        %v3329 = vld [vmem:[%s1112 + $0x2ec] sm:$0xf]
        %v3330 = vld [vmem:[%s1112 + $0x2f0] sm:$0xf]
        %v3331 = vld [vmem:[%s1112 + $0x2f4] sm:$0xf]
        %v3332 = vld [vmem:[%s1112 + $0x2f8] sm:$0xf]
        %v3333 = vld [vmem:[%s1112 + $0x2fc] sm:$0xf]
        %v3334 = vld [vmem:[%s1112 + $0x300] sm:$0xf]
        %v3335 = vld [vmem:[%s1112 + $0x304] sm:$0xf]
        %v3336 = vld [vmem:[%s1112 + $0x308] sm:$0xf]
        %v3337 = vld [vmem:[%s1112 + $0x30c] sm:$0xf]
        %v3338 = vld [vmem:[%s1112 + $0x310] sm:$0xf]
        %v3339 = vld [vmem:[%s1112 + $0x314] sm:$0xf]
        %v3340 = vld [vmem:[%s1112 + $0x318] sm:$0xf]
        %v3341 = vld [vmem:[%s1112 + $0x31c] sm:$0xf]
        %v3342 = vld [vmem:[%s1112 + $0x320] sm:$0xf]
        %v3343 = vld [vmem:[%s1112 + $0x324] sm:$0xf]
        %v3344 = vld [vmem:[%s1112 + $0x328] sm:$0xf]
        %v3345 = vld [vmem:[%s1112 + $0x32c] sm:$0xf]
        %v3346 = vld [vmem:[%s1112 + $0x330] sm:$0xf]
        %v3347 = vld [vmem:[%s1112 + $0x334] sm:$0xf]
        %v3348 = vld [vmem:[%s1112 + $0x338] sm:$0xf]
        %v3349 = vld [vmem:[%s1112 + $0x33c] sm:$0xf]
        %v3350 = vld [vmem:[%s1112 + $0x340] sm:$0xf]
        %v3351 = vld [vmem:[%s1112 + $0x344] sm:$0xf]
        %v3352 = vld [vmem:[%s1112 + $0x348] sm:$0xf]
        %v3353 = vld [vmem:[%s1112 + $0x34c] sm:$0xf]
        %v3354 = vld [vmem:[%s1112 + $0x350] sm:$0xf]
        %v3355 = vld [vmem:[%s1112 + $0x354] sm:$0xf]
        %v3356 = vld [vmem:[%s1112 + $0x358] sm:$0xf]
        %v3357 = vld [vmem:[%s1112 + $0x35c] sm:$0xf]
        %v3358 = vld [vmem:[%s1112 + $0x360] sm:$0xf]
        %v3359 = vld [vmem:[%s1112 + $0x364] sm:$0xf]
        %v3360 = vld [vmem:[%s1112 + $0x368] sm:$0xf]
        %v3361 = vld [vmem:[%s1112 + $0x36c] sm:$0xf]
        %v3362 = vld [vmem:[%s1112 + $0x370] sm:$0xf]
        %v3363 = vld [vmem:[%s1112 + $0x374] sm:$0xf]
        %v3364 = vld [vmem:[%s1112 + $0x378] sm:$0xf]
        %v3365 = vld [vmem:[%s1112 + $0x37c] sm:$0xf]
        %v3366 = vld [vmem:[%s1112 + $0x380] sm:$0xf]
        %v3367 = vld [vmem:[%s1112 + $0x384] sm:$0xf]
        %v3368 = vld [vmem:[%s1112 + $0x388] sm:$0xf]
        %v3369 = vld [vmem:[%s1112 + $0x38c] sm:$0xf]
        %v3370 = vld [vmem:[%s1112 + $0x390] sm:$0xf]
        %v3371 = vld [vmem:[%s1112 + $0x394] sm:$0xf]
        %v3372 = vld [vmem:[%s1112 + $0x398] sm:$0xf]
        %v3373 = vld [vmem:[%s1112 + $0x39c] sm:$0xf]
        %v3374 = vld [vmem:[%s1112 + $0x3a0] sm:$0xf]
        %v3375 = vld [vmem:[%s1112 + $0x3a4] sm:$0xf]
        %v3376 = vld [vmem:[%s1112 + $0x3a8] sm:$0xf]
        %v3377 = vld [vmem:[%s1112 + $0x3ac] sm:$0xf]
        %v3378 = vld [vmem:[%s1112 + $0x3b0] sm:$0xf]
        %v3379 = vld [vmem:[%s1112 + $0x3b4] sm:$0xf]
        %v3380 = vld [vmem:[%s1112 + $0x3b8] sm:$0xf]
        %v3381 = vld [vmem:[%s1112 + $0x3bc] sm:$0xf]
        %v3382 = vld [vmem:[%s1112 + $0x3c0] sm:$0xf]
        %v3383 = vld [vmem:[%s1112 + $0x3c4] sm:$0xf]
        %v3384 = vld [vmem:[%s1112 + $0x3c8] sm:$0xf]
        %v3385 = vld [vmem:[%s1112 + $0x3cc] sm:$0xf]
        %v3386 = vld [vmem:[%s1112 + $0x3d0] sm:$0xf]
        %v3387 = vld [vmem:[%s1112 + $0x3d4] sm:$0xf]
        %v3388 = vld [vmem:[%s1112 + $0x3d8] sm:$0xf]
        %v3389 = vld [vmem:[%s1112 + $0x3dc] sm:$0xf]
        %v3390 = vld [vmem:[%s1112 + $0x3e0] sm:$0xf]
        %v3391 = vld [vmem:[%s1112 + $0x3e4] sm:$0xf]
        %v3392 = vld [vmem:[%s1112 + $0x3e8] sm:$0xf]
        %v3393 = vld [vmem:[%s1112 + $0x3ec] sm:$0xf]
        %v3394 = vld [vmem:[%s1112 + $0x3f0] sm:$0xf]
        %v3395 = vld [vmem:[%s1112 + $0x3f4] sm:$0xf]
        %v3396 = vld [vmem:[%s1112 + $0x3f8] sm:$0xf]
        %v3397 = vld [vmem:[%s1112 + $0x3fc] sm:$0xf]
        %v3398 = vld [vmem:[%s1121] sm:$0x1]
        %v3400 = vperm.slane %v3398, 0
        %v3658 = vunpack.c.l.b16 %v3142
        %v3659 = vunpack.c.l.b16 %v3143
        %v3660 = vunpack.c.l.b16 %v3144
        %v3661 = vunpack.c.l.b16 %v3145
        %v3662 = vunpack.c.l.b16 %v3146
        %v3663 = vunpack.c.l.b16 %v3147
        %v3664 = vunpack.c.l.b16 %v3148
        %v3665 = vunpack.c.l.b16 %v3149
        %v3666 = vunpack.c.l.b16 %v3150
        %v3667 = vunpack.c.l.b16 %v3151
        %v3668 = vunpack.c.l.b16 %v3152
        %v3669 = vunpack.c.l.b16 %v3153
        %v3670 = vunpack.c.l.b16 %v3154
        %v3671 = vunpack.c.l.b16 %v3155
        %v3672 = vunpack.c.l.b16 %v3156
        %v3673 = vunpack.c.l.b16 %v3157
        %v3674 = vunpack.c.l.b16 %v3158
        %v3675 = vunpack.c.l.b16 %v3159
        %v3676 = vunpack.c.l.b16 %v3160
        %v3677 = vunpack.c.l.b16 %v3161
        %v3678 = vunpack.c.l.b16 %v3162
        %v3679 = vunpack.c.l.b16 %v3163
        %v3680 = vunpack.c.l.b16 %v3164
        %v3681 = vunpack.c.l.b16 %v3165
        %v3682 = vunpack.c.l.b16 %v3166
        %v3683 = vunpack.c.l.b16 %v3167
        %v3684 = vunpack.c.l.b16 %v3168
        %v3685 = vunpack.c.l.b16 %v3169
        %v3686 = vunpack.c.l.b16 %v3170
        %v3687 = vunpack.c.l.b16 %v3171
        %v3688 = vunpack.c.l.b16 %v3172
        %v3689 = vunpack.c.l.b16 %v3173
        %v3690 = vunpack.c.l.b16 %v3174
        %v3691 = vunpack.c.l.b16 %v3175
        %v3692 = vunpack.c.l.b16 %v3176
        %v3693 = vunpack.c.l.b16 %v3177
        %v3694 = vunpack.c.l.b16 %v3178
        %v3695 = vunpack.c.l.b16 %v3179
        %v3696 = vunpack.c.l.b16 %v3180
        %v3697 = vunpack.c.l.b16 %v3181
        %v3698 = vunpack.c.l.b16 %v3182
        %v3699 = vunpack.c.l.b16 %v3183
        %v3700 = vunpack.c.l.b16 %v3184
        %v3701 = vunpack.c.l.b16 %v3185
        %v3702 = vunpack.c.l.b16 %v3186
        %v3703 = vunpack.c.l.b16 %v3187
        %v3704 = vunpack.c.l.b16 %v3188
        %v3705 = vunpack.c.l.b16 %v3189
        %v3706 = vunpack.c.l.b16 %v3190
        %v3707 = vunpack.c.l.b16 %v3191
        %v3708 = vunpack.c.l.b16 %v3192
        %v3709 = vunpack.c.l.b16 %v3193
        %v3710 = vunpack.c.l.b16 %v3194
        %v3711 = vunpack.c.l.b16 %v3195
        %v3712 = vunpack.c.l.b16 %v3196
        %v3713 = vunpack.c.l.b16 %v3197
        %v3714 = vunpack.c.l.b16 %v3198
        %v3715 = vunpack.c.l.b16 %v3199
        %v3716 = vunpack.c.l.b16 %v3200
        %v3717 = vunpack.c.l.b16 %v3201
        %v3718 = vunpack.c.l.b16 %v3202
        %v3719 = vunpack.c.l.b16 %v3203
        %v3720 = vunpack.c.l.b16 %v3204
        %v3721 = vunpack.c.l.b16 %v3205
        %v3722 = vunpack.c.l.b16 %v3206
        %v3723 = vunpack.c.l.b16 %v3207
        %v3724 = vunpack.c.l.b16 %v3208
        %v3725 = vunpack.c.l.b16 %v3209
        %v3726 = vunpack.c.l.b16 %v3210
        %v3727 = vunpack.c.l.b16 %v3211
        %v3728 = vunpack.c.l.b16 %v3212
        %v3729 = vunpack.c.l.b16 %v3213
        %v3730 = vunpack.c.l.b16 %v3214
        %v3731 = vunpack.c.l.b16 %v3215
        %v3732 = vunpack.c.l.b16 %v3216
        %v3733 = vunpack.c.l.b16 %v3217
        %v3734 = vunpack.c.l.b16 %v3218
        %v3735 = vunpack.c.l.b16 %v3219
        %v3736 = vunpack.c.l.b16 %v3220
        %v3737 = vunpack.c.l.b16 %v3221
        %v3738 = vunpack.c.l.b16 %v3222
        %v3739 = vunpack.c.l.b16 %v3223
        %v3740 = vunpack.c.l.b16 %v3224
        %v3741 = vunpack.c.l.b16 %v3225
        %v3742 = vunpack.c.l.b16 %v3226
        %v3743 = vunpack.c.l.b16 %v3227
        %v3744 = vunpack.c.l.b16 %v3228
        %v3745 = vunpack.c.l.b16 %v3229
        %v3746 = vunpack.c.l.b16 %v3230
        %v3747 = vunpack.c.l.b16 %v3231
        %v3748 = vunpack.c.l.b16 %v3232
        %v3749 = vunpack.c.l.b16 %v3233
        %v3750 = vunpack.c.l.b16 %v3234
        %v3751 = vunpack.c.l.b16 %v3235
        %v3752 = vunpack.c.l.b16 %v3236
        %v3753 = vunpack.c.l.b16 %v3237
        %v3754 = vunpack.c.l.b16 %v3238
        %v3755 = vunpack.c.l.b16 %v3239
        %v3756 = vunpack.c.l.b16 %v3240
        %v3757 = vunpack.c.l.b16 %v3241
        %v3758 = vunpack.c.l.b16 %v3242
        %v3759 = vunpack.c.l.b16 %v3243
        %v3760 = vunpack.c.l.b16 %v3244
        %v3761 = vunpack.c.l.b16 %v3245
        %v3762 = vunpack.c.l.b16 %v3246
        %v3763 = vunpack.c.l.b16 %v3247
        %v3764 = vunpack.c.l.b16 %v3248
        %v3765 = vunpack.c.l.b16 %v3249
        %v3766 = vunpack.c.l.b16 %v3250
        %v3767 = vunpack.c.l.b16 %v3251
        %v3768 = vunpack.c.l.b16 %v3252
        %v3769 = vunpack.c.l.b16 %v3253
        %v3770 = vunpack.c.l.b16 %v3254
        %v3771 = vunpack.c.l.b16 %v3255
        %v3772 = vunpack.c.l.b16 %v3256
        %v3773 = vunpack.c.l.b16 %v3257
        %v3774 = vunpack.c.l.b16 %v3258
        %v3775 = vunpack.c.l.b16 %v3259
        %v3776 = vunpack.c.l.b16 %v3260
        %v3777 = vunpack.c.l.b16 %v3261
        %v3778 = vunpack.c.l.b16 %v3262
        %v3779 = vunpack.c.l.b16 %v3263
        %v3780 = vunpack.c.l.b16 %v3264
        %v3781 = vunpack.c.l.b16 %v3265
        %v3782 = vunpack.c.l.b16 %v3266
        %v3783 = vunpack.c.l.b16 %v3267
        %v3784 = vunpack.c.l.b16 %v3268
        %v3785 = vunpack.c.l.b16 %v3269
        %v3786 = vunpack.c.l.b16 %v3270
        %v3787 = vunpack.c.l.b16 %v3271
        %v3788 = vunpack.c.l.b16 %v3272
        %v3789 = vunpack.c.l.b16 %v3273
        %v3790 = vunpack.c.l.b16 %v3274
        %v3791 = vunpack.c.l.b16 %v3275
        %v3792 = vunpack.c.l.b16 %v3276
        %v3793 = vunpack.c.l.b16 %v3277
        %v3794 = vunpack.c.l.b16 %v3278
        %v3795 = vunpack.c.l.b16 %v3279
        %v3796 = vunpack.c.l.b16 %v3280
        %v3797 = vunpack.c.l.b16 %v3281
        %v3798 = vunpack.c.l.b16 %v3282
        %v3799 = vunpack.c.l.b16 %v3283
        %v3800 = vunpack.c.l.b16 %v3284
        %v3801 = vunpack.c.l.b16 %v3285
        %v3802 = vunpack.c.l.b16 %v3286
        %v3803 = vunpack.c.l.b16 %v3287
        %v3804 = vunpack.c.l.b16 %v3288
        %v3805 = vunpack.c.l.b16 %v3289
        %v3806 = vunpack.c.l.b16 %v3290
        %v3807 = vunpack.c.l.b16 %v3291
        %v3808 = vunpack.c.l.b16 %v3292
        %v3809 = vunpack.c.l.b16 %v3293
        %v3810 = vunpack.c.l.b16 %v3294
        %v3811 = vunpack.c.l.b16 %v3295
        %v3812 = vunpack.c.l.b16 %v3296
        %v3813 = vunpack.c.l.b16 %v3297
        %v3814 = vunpack.c.l.b16 %v3298
        %v3815 = vunpack.c.l.b16 %v3299
        %v3816 = vunpack.c.l.b16 %v3300
        %v3817 = vunpack.c.l.b16 %v3301
        %v3818 = vunpack.c.l.b16 %v3302
        %v3819 = vunpack.c.l.b16 %v3303
        %v3820 = vunpack.c.l.b16 %v3304
        %v3821 = vunpack.c.l.b16 %v3305
        %v3822 = vunpack.c.l.b16 %v3306
        %v3823 = vunpack.c.l.b16 %v3307
        %v3824 = vunpack.c.l.b16 %v3308
        %v3825 = vunpack.c.l.b16 %v3309
        %v3826 = vunpack.c.l.b16 %v3310
        %v3827 = vunpack.c.l.b16 %v3311
        %v3828 = vunpack.c.l.b16 %v3312
        %v3829 = vunpack.c.l.b16 %v3313
        %v3830 = vunpack.c.l.b16 %v3314
        %v3831 = vunpack.c.l.b16 %v3315
        %v3832 = vunpack.c.l.b16 %v3316
        %v3833 = vunpack.c.l.b16 %v3317
        %v3834 = vunpack.c.l.b16 %v3318
        %v3835 = vunpack.c.l.b16 %v3319
        %v3836 = vunpack.c.l.b16 %v3320
        %v3837 = vunpack.c.l.b16 %v3321
        %v3838 = vunpack.c.l.b16 %v3322
        %v3839 = vunpack.c.l.b16 %v3323
        %v3840 = vunpack.c.l.b16 %v3324
        %v3841 = vunpack.c.l.b16 %v3325
        %v3842 = vunpack.c.l.b16 %v3326
        %v3843 = vunpack.c.l.b16 %v3327
        %v3844 = vunpack.c.l.b16 %v3328
        %v3845 = vunpack.c.l.b16 %v3329
        %v3846 = vunpack.c.l.b16 %v3330
        %v3847 = vunpack.c.l.b16 %v3331
        %v3848 = vunpack.c.l.b16 %v3332
        %v3849 = vunpack.c.l.b16 %v3333
        %v3850 = vunpack.c.l.b16 %v3334
        %v3851 = vunpack.c.l.b16 %v3335
        %v3852 = vunpack.c.l.b16 %v3336
        %v3853 = vunpack.c.l.b16 %v3337
        %v3854 = vunpack.c.l.b16 %v3338
        %v3855 = vunpack.c.l.b16 %v3339
        %v3856 = vunpack.c.l.b16 %v3340
        %v3857 = vunpack.c.l.b16 %v3341
        %v3858 = vunpack.c.l.b16 %v3342
        %v3859 = vunpack.c.l.b16 %v3343
        %v3860 = vunpack.c.l.b16 %v3344
        %v3861 = vunpack.c.l.b16 %v3345
        %v3862 = vunpack.c.l.b16 %v3346
        %v3863 = vunpack.c.l.b16 %v3347
        %v3864 = vunpack.c.l.b16 %v3348
        %v3865 = vunpack.c.l.b16 %v3349
        %v3866 = vunpack.c.l.b16 %v3350
        %v3867 = vunpack.c.l.b16 %v3351
        %v3868 = vunpack.c.l.b16 %v3352
        %v3869 = vunpack.c.l.b16 %v3353
        %v3870 = vunpack.c.l.b16 %v3354
        %v3871 = vunpack.c.l.b16 %v3355
        %v3872 = vunpack.c.l.b16 %v3356
        %v3873 = vunpack.c.l.b16 %v3357
        %v3874 = vunpack.c.l.b16 %v3358
        %v3875 = vunpack.c.l.b16 %v3359
        %v3876 = vunpack.c.l.b16 %v3360
        %v3877 = vunpack.c.l.b16 %v3361
        %v3878 = vunpack.c.l.b16 %v3362
        %v3879 = vunpack.c.l.b16 %v3363
        %v3880 = vunpack.c.l.b16 %v3364
        %v3881 = vunpack.c.l.b16 %v3365
        %v3882 = vunpack.c.l.b16 %v3366
        %v3883 = vunpack.c.l.b16 %v3367
        %v3884 = vunpack.c.l.b16 %v3368
        %v3885 = vunpack.c.l.b16 %v3369
        %v3886 = vunpack.c.l.b16 %v3370
        %v3887 = vunpack.c.l.b16 %v3371
        %v3888 = vunpack.c.l.b16 %v3372
        %v3889 = vunpack.c.l.b16 %v3373
        %v3890 = vunpack.c.l.b16 %v3374
        %v3891 = vunpack.c.l.b16 %v3375
        %v3892 = vunpack.c.l.b16 %v3376
        %v3893 = vunpack.c.l.b16 %v3377
        %v3894 = vunpack.c.l.b16 %v3378
        %v3895 = vunpack.c.l.b16 %v3379
        %v3896 = vunpack.c.l.b16 %v3380
        %v3897 = vunpack.c.l.b16 %v3381
        %v3898 = vunpack.c.l.b16 %v3382
        %v3899 = vunpack.c.l.b16 %v3383
        %v3900 = vunpack.c.l.b16 %v3384
        %v3901 = vunpack.c.l.b16 %v3385
        %v3902 = vunpack.c.l.b16 %v3386
        %v3903 = vunpack.c.l.b16 %v3387
        %v3904 = vunpack.c.l.b16 %v3388
        %v3905 = vunpack.c.l.b16 %v3389
        %v3906 = vunpack.c.l.b16 %v3390
        %v3907 = vunpack.c.l.b16 %v3391
        %v3908 = vunpack.c.l.b16 %v3392
        %v3909 = vunpack.c.l.b16 %v3393
        %v3910 = vunpack.c.l.b16 %v3394
        %v3911 = vunpack.c.l.b16 %v3395
        %v3912 = vunpack.c.l.b16 %v3396
        %v3913 = vunpack.c.l.b16 %v3397
        %v3914 = vpack.c.b16 %v3659, %v3658
        %v3915 = vpack.c.b16 %v3661, %v3660
        %v3916 = vpack.c.b16 %v3663, %v3662
        %v3917 = vpack.c.b16 %v3665, %v3664
        %v3918 = vpack.c.b16 %v3667, %v3666
        %v3919 = vpack.c.b16 %v3669, %v3668
        %v3920 = vpack.c.b16 %v3671, %v3670
        %v3921 = vpack.c.b16 %v3673, %v3672
        %v3922 = vpack.c.b16 %v3675, %v3674
        %v3923 = vpack.c.b16 %v3677, %v3676
        %v3924 = vpack.c.b16 %v3679, %v3678
        %v3925 = vpack.c.b16 %v3681, %v3680
        %v3926 = vpack.c.b16 %v3683, %v3682
        %v3927 = vpack.c.b16 %v3685, %v3684
        %v3928 = vpack.c.b16 %v3687, %v3686
        %v3929 = vpack.c.b16 %v3689, %v3688
        %v3930 = vpack.c.b16 %v3691, %v3690
        %v3931 = vpack.c.b16 %v3693, %v3692
        %v3932 = vpack.c.b16 %v3695, %v3694
        %v3933 = vpack.c.b16 %v3697, %v3696
        %v3934 = vpack.c.b16 %v3699, %v3698
        %v3935 = vpack.c.b16 %v3701, %v3700
        %v3936 = vpack.c.b16 %v3703, %v3702
        %v3937 = vpack.c.b16 %v3705, %v3704
        %v3938 = vpack.c.b16 %v3707, %v3706
        %v3939 = vpack.c.b16 %v3709, %v3708
        %v3940 = vpack.c.b16 %v3711, %v3710
        %v3941 = vpack.c.b16 %v3713, %v3712
        %v3942 = vpack.c.b16 %v3715, %v3714
        %v3943 = vpack.c.b16 %v3717, %v3716
        %v3944 = vpack.c.b16 %v3719, %v3718
        %v3945 = vpack.c.b16 %v3721, %v3720
        %v3946 = vpack.c.b16 %v3723, %v3722
        %v3947 = vpack.c.b16 %v3725, %v3724
        %v3948 = vpack.c.b16 %v3727, %v3726
        %v3949 = vpack.c.b16 %v3729, %v3728
        %v3950 = vpack.c.b16 %v3731, %v3730
        %v3951 = vpack.c.b16 %v3733, %v3732
        %v3952 = vpack.c.b16 %v3735, %v3734
        %v3953 = vpack.c.b16 %v3737, %v3736
        %v3954 = vpack.c.b16 %v3739, %v3738
        %v3955 = vpack.c.b16 %v3741, %v3740
        %v3956 = vpack.c.b16 %v3743, %v3742
        %v3957 = vpack.c.b16 %v3745, %v3744
        %v3958 = vpack.c.b16 %v3747, %v3746
        %v3959 = vpack.c.b16 %v3749, %v3748
        %v3960 = vpack.c.b16 %v3751, %v3750
        %v3961 = vpack.c.b16 %v3753, %v3752
        %v3962 = vpack.c.b16 %v3755, %v3754
        %v3963 = vpack.c.b16 %v3757, %v3756
        %v3964 = vpack.c.b16 %v3759, %v3758
        %v3965 = vpack.c.b16 %v3761, %v3760
        %v3966 = vpack.c.b16 %v3763, %v3762
        %v3967 = vpack.c.b16 %v3765, %v3764
        %v3968 = vpack.c.b16 %v3767, %v3766
        %v3969 = vpack.c.b16 %v3769, %v3768
        %v3970 = vpack.c.b16 %v3771, %v3770
        %v3971 = vpack.c.b16 %v3773, %v3772
        %v3972 = vpack.c.b16 %v3775, %v3774
        %v3973 = vpack.c.b16 %v3777, %v3776
        %v3974 = vpack.c.b16 %v3779, %v3778
        %v3975 = vpack.c.b16 %v3781, %v3780
        %v3976 = vpack.c.b16 %v3783, %v3782
        %v3977 = vpack.c.b16 %v3785, %v3784
        %v3978 = vpack.c.b16 %v3787, %v3786
        %v3979 = vpack.c.b16 %v3789, %v3788
        %v3980 = vpack.c.b16 %v3791, %v3790
        %v3981 = vpack.c.b16 %v3793, %v3792
        %v3982 = vpack.c.b16 %v3795, %v3794
        %v3983 = vpack.c.b16 %v3797, %v3796
        %v3984 = vpack.c.b16 %v3799, %v3798
        %v3985 = vpack.c.b16 %v3801, %v3800
        %v3986 = vpack.c.b16 %v3803, %v3802
        %v3987 = vpack.c.b16 %v3805, %v3804
        %v3988 = vpack.c.b16 %v3807, %v3806
        %v3989 = vpack.c.b16 %v3809, %v3808
        %v3990 = vpack.c.b16 %v3811, %v3810
        %v3991 = vpack.c.b16 %v3813, %v3812
        %v3992 = vpack.c.b16 %v3815, %v3814
        %v3993 = vpack.c.b16 %v3817, %v3816
        %v3994 = vpack.c.b16 %v3819, %v3818
        %v3995 = vpack.c.b16 %v3821, %v3820
        %v3996 = vpack.c.b16 %v3823, %v3822
        %v3997 = vpack.c.b16 %v3825, %v3824
        %v3998 = vpack.c.b16 %v3827, %v3826
        %v3999 = vpack.c.b16 %v3829, %v3828
        %v4000 = vpack.c.b16 %v3831, %v3830
        %v4001 = vpack.c.b16 %v3833, %v3832
        %v4002 = vpack.c.b16 %v3835, %v3834
        %v4003 = vpack.c.b16 %v3837, %v3836
        %v4004 = vpack.c.b16 %v3839, %v3838
        %v4005 = vpack.c.b16 %v3841, %v3840
        %v4006 = vpack.c.b16 %v3843, %v3842
        %v4007 = vpack.c.b16 %v3845, %v3844
        %v4008 = vpack.c.b16 %v3847, %v3846
        %v4009 = vpack.c.b16 %v3849, %v3848
        %v4010 = vpack.c.b16 %v3851, %v3850
        %v4011 = vpack.c.b16 %v3853, %v3852
        %v4012 = vpack.c.b16 %v3855, %v3854
        %v4013 = vpack.c.b16 %v3857, %v3856
        %v4014 = vpack.c.b16 %v3859, %v3858
        %v4015 = vpack.c.b16 %v3861, %v3860
        %v4016 = vpack.c.b16 %v3863, %v3862
        %v4017 = vpack.c.b16 %v3865, %v3864
        %v4018 = vpack.c.b16 %v3867, %v3866
        %v4019 = vpack.c.b16 %v3869, %v3868
        %v4020 = vpack.c.b16 %v3871, %v3870
        %v4021 = vpack.c.b16 %v3873, %v3872
        %v4022 = vpack.c.b16 %v3875, %v3874
        %v4023 = vpack.c.b16 %v3877, %v3876
        %v4024 = vpack.c.b16 %v3879, %v3878
        %v4025 = vpack.c.b16 %v3881, %v3880
        %v4026 = vpack.c.b16 %v3883, %v3882
        %v4027 = vpack.c.b16 %v3885, %v3884
        %v4028 = vpack.c.b16 %v3887, %v3886
        %v4029 = vpack.c.b16 %v3889, %v3888
        %v4030 = vpack.c.b16 %v3891, %v3890
        %v4031 = vpack.c.b16 %v3893, %v3892
        %v4032 = vpack.c.b16 %v3895, %v3894
        %v4033 = vpack.c.b16 %v3897, %v3896
        %v4034 = vpack.c.b16 %v3899, %v3898
        %v4035 = vpack.c.b16 %v3901, %v3900
        %v4036 = vpack.c.b16 %v3903, %v3902
        %v4037 = vpack.c.b16 %v3905, %v3904
        %v4038 = vpack.c.b16 %v3907, %v3906
        %v4039 = vpack.c.b16 %v3909, %v3908
        %v4040 = vpack.c.b16 %v3911, %v3910
        %v4041 = vpack.c.b16 %v3913, %v3912
        %4170 = vmatpush.bf16.msra.mxu0 %v3921
        %4171 = vmatpush.bf16.msra.mxu0 %v3920
        %4172 = vmatpush.bf16.msra.mxu0 %v3919
        %4173 = vmatpush.bf16.msra.mxu0 %v3918
        %4174 = vmatpush.bf16.msra.mxu0 %v3917
        %4175 = vmatpush.bf16.msra.mxu0 %v3916
        %4176 = vmatpush.bf16.msra.mxu0 %v3915
        %4177 = vmatpush.bf16.msra.mxu0 %v3914
        %4178 = vmatmul.bf16.gmra.mxu0 %v3126
        %v4179 = vpop.f32.mrf.mxu0
        %v4180 = vadd.f32 %v3400, %v4179
        %v4181 = vpop.f32.mrf.mxu0
        %v4182 = vadd.f32 %v3400, %v4181
        %4183 = vdwg.mxu0
        %4184 = vmatpush.bf16.msra.mxu0 %v3929
        %4185 = vmatpush.bf16.msra.mxu0 %v3928
        %4186 = vmatpush.bf16.msra.mxu0 %v3927
        %4187 = vmatpush.bf16.msra.mxu0 %v3926
        %4188 = vmatpush.bf16.msra.mxu0 %v3925
        %4189 = vmatpush.bf16.msra.mxu0 %v3924
        %4190 = vmatpush.bf16.msra.mxu0 %v3923
        %4191 = vmatpush.bf16.msra.mxu0 %v3922
        %4192 = vmatmul.bf16.gmra.mxu0 %v3127
        %v4193 = vpop.f32.mrf.mxu0
        %v4194 = vadd.f32 %v4180, %v4193
        %v4195 = vpop.f32.mrf.mxu0
        %v4196 = vadd.f32 %v4182, %v4195
        %4197 = vdwg.mxu0
        %4198 = vmatpush.bf16.msra.mxu0 %v3937
        %4199 = vmatpush.bf16.msra.mxu0 %v3936
        %4200 = vmatpush.bf16.msra.mxu0 %v3935
        %4201 = vmatpush.bf16.msra.mxu0 %v3934
        %4202 = vmatpush.bf16.msra.mxu0 %v3933
        %4203 = vmatpush.bf16.msra.mxu0 %v3932
        %4204 = vmatpush.bf16.msra.mxu0 %v3931
        %4205 = vmatpush.bf16.msra.mxu0 %v3930
        %4206 = vmatmul.bf16.gmra.mxu0 %v3128
        %v4207 = vpop.f32.mrf.mxu0
        %v4208 = vadd.f32 %v4194, %v4207
        %v4209 = vpop.f32.mrf.mxu0
        %v4210 = vadd.f32 %v4196, %v4209
        %4211 = vdwg.mxu0
        %4212 = vmatpush.bf16.msra.mxu0 %v3945
        %4213 = vmatpush.bf16.msra.mxu0 %v3944
        %4214 = vmatpush.bf16.msra.mxu0 %v3943
        %4215 = vmatpush.bf16.msra.mxu0 %v3942
        %4216 = vmatpush.bf16.msra.mxu0 %v3941
        %4217 = vmatpush.bf16.msra.mxu0 %v3940
        %4218 = vmatpush.bf16.msra.mxu0 %v3939
        %4219 = vmatpush.bf16.msra.mxu0 %v3938
        %4220 = vmatmul.bf16.gmra.mxu0 %v3129
        %v4221 = vpop.f32.mrf.mxu0
        %v4222 = vadd.f32 %v4208, %v4221
        %v4223 = vpop.f32.mrf.mxu0
        %v4224 = vadd.f32 %v4210, %v4223
        %4225 = vdwg.mxu0
        %4226 = vmatpush.bf16.msra.mxu0 %v3953
        %4227 = vmatpush.bf16.msra.mxu0 %v3952
        %4228 = vmatpush.bf16.msra.mxu0 %v3951
        %4229 = vmatpush.bf16.msra.mxu0 %v3950
        %4230 = vmatpush.bf16.msra.mxu0 %v3949
        %4231 = vmatpush.bf16.msra.mxu0 %v3948
        %4232 = vmatpush.bf16.msra.mxu0 %v3947
        %4233 = vmatpush.bf16.msra.mxu0 %v3946
        %4234 = vmatmul.bf16.gmra.mxu0 %v3130
        %v4235 = vpop.f32.mrf.mxu0
        %v4236 = vadd.f32 %v4222, %v4235
        %v4237 = vpop.f32.mrf.mxu0
        %v4238 = vadd.f32 %v4224, %v4237
        %4239 = vdwg.mxu0
        %4240 = vmatpush.bf16.msra.mxu0 %v3961
        %4241 = vmatpush.bf16.msra.mxu0 %v3960
        %4242 = vmatpush.bf16.msra.mxu0 %v3959
        %4243 = vmatpush.bf16.msra.mxu0 %v3958
        %4244 = vmatpush.bf16.msra.mxu0 %v3957
        %4245 = vmatpush.bf16.msra.mxu0 %v3956
        %4246 = vmatpush.bf16.msra.mxu0 %v3955
        %4247 = vmatpush.bf16.msra.mxu0 %v3954
        %4248 = vmatmul.bf16.gmra.mxu0 %v3131
        %v4249 = vpop.f32.mrf.mxu0
        %v4250 = vadd.f32 %v4236, %v4249
        %v4251 = vpop.f32.mrf.mxu0
        %v4252 = vadd.f32 %v4238, %v4251
        %4253 = vdwg.mxu0
        %4254 = vmatpush.bf16.msra.mxu0 %v3969
        %4255 = vmatpush.bf16.msra.mxu0 %v3968
        %4256 = vmatpush.bf16.msra.mxu0 %v3967
        %4257 = vmatpush.bf16.msra.mxu0 %v3966
        %4258 = vmatpush.bf16.msra.mxu0 %v3965
        %4259 = vmatpush.bf16.msra.mxu0 %v3964
        %4260 = vmatpush.bf16.msra.mxu0 %v3963
        %4261 = vmatpush.bf16.msra.mxu0 %v3962
        %4262 = vmatmul.bf16.gmra.mxu0 %v3132
        %v4263 = vpop.f32.mrf.mxu0
        %v4264 = vadd.f32 %v4250, %v4263
        %v4265 = vpop.f32.mrf.mxu0
        %v4266 = vadd.f32 %v4252, %v4265
        %4267 = vdwg.mxu0
        %4268 = vmatpush.bf16.msra.mxu0 %v3977
        %4269 = vmatpush.bf16.msra.mxu0 %v3976
        %4270 = vmatpush.bf16.msra.mxu0 %v3975
        %4271 = vmatpush.bf16.msra.mxu0 %v3974
        %4272 = vmatpush.bf16.msra.mxu0 %v3973
        %4273 = vmatpush.bf16.msra.mxu0 %v3972
        %4274 = vmatpush.bf16.msra.mxu0 %v3971
        %4275 = vmatpush.bf16.msra.mxu0 %v3970
        %4276 = vmatmul.bf16.gmra.mxu0 %v3133
        %v4277 = vpop.f32.mrf.mxu0
        %v4278 = vadd.f32 %v4264, %v4277
        %v4279 = vpop.f32.mrf.mxu0
        %v4280 = vadd.f32 %v4266, %v4279
        %4281 = vdwg.mxu0
        %4282 = vmatpush.bf16.msra.mxu0 %v3985
        %4283 = vmatpush.bf16.msra.mxu0 %v3984
        %4284 = vmatpush.bf16.msra.mxu0 %v3983
        %4285 = vmatpush.bf16.msra.mxu0 %v3982
        %4286 = vmatpush.bf16.msra.mxu0 %v3981
        %4287 = vmatpush.bf16.msra.mxu0 %v3980
        %4288 = vmatpush.bf16.msra.mxu0 %v3979
        %4289 = vmatpush.bf16.msra.mxu0 %v3978
        %4290 = vmatmul.bf16.gmra.mxu0 %v3134
        %v4291 = vpop.f32.mrf.mxu0
        %v4292 = vadd.f32 %v4278, %v4291
        %v4293 = vpop.f32.mrf.mxu0
        %v4294 = vadd.f32 %v4280, %v4293
        %4295 = vdwg.mxu0
        %4296 = vmatpush.bf16.msra.mxu0 %v3993
        %4297 = vmatpush.bf16.msra.mxu0 %v3992
        %4298 = vmatpush.bf16.msra.mxu0 %v3991
        %4299 = vmatpush.bf16.msra.mxu0 %v3990
        %4300 = vmatpush.bf16.msra.mxu0 %v3989
        %4301 = vmatpush.bf16.msra.mxu0 %v3988
        %4302 = vmatpush.bf16.msra.mxu0 %v3987
        %4303 = vmatpush.bf16.msra.mxu0 %v3986
        %4304 = vmatmul.bf16.gmra.mxu0 %v3135
        %v4305 = vpop.f32.mrf.mxu0
        %v4306 = vadd.f32 %v4292, %v4305
        %v4307 = vpop.f32.mrf.mxu0
        %v4308 = vadd.f32 %v4294, %v4307
        %4309 = vdwg.mxu0
        %4310 = vmatpush.bf16.msra.mxu0 %v4001
        %4311 = vmatpush.bf16.msra.mxu0 %v4000
        %4312 = vmatpush.bf16.msra.mxu0 %v3999
        %4313 = vmatpush.bf16.msra.mxu0 %v3998
        %4314 = vmatpush.bf16.msra.mxu0 %v3997
        %4315 = vmatpush.bf16.msra.mxu0 %v3996
        %4316 = vmatpush.bf16.msra.mxu0 %v3995
        %4317 = vmatpush.bf16.msra.mxu0 %v3994
        %4318 = vmatmul.bf16.gmra.mxu0 %v3136
        %v4319 = vpop.f32.mrf.mxu0
        %v4320 = vadd.f32 %v4306, %v4319
        %v4321 = vpop.f32.mrf.mxu0
        %v4322 = vadd.f32 %v4308, %v4321
        %4323 = vdwg.mxu0
        %4324 = vmatpush.bf16.msra.mxu0 %v4009
        %4325 = vmatpush.bf16.msra.mxu0 %v4008
        %4326 = vmatpush.bf16.msra.mxu0 %v4007
        %4327 = vmatpush.bf16.msra.mxu0 %v4006
        %4328 = vmatpush.bf16.msra.mxu0 %v4005
        %4329 = vmatpush.bf16.msra.mxu0 %v4004
        %4330 = vmatpush.bf16.msra.mxu0 %v4003
        %4331 = vmatpush.bf16.msra.mxu0 %v4002
        %4332 = vmatmul.bf16.gmra.mxu0 %v3137
        %v4333 = vpop.f32.mrf.mxu0
        %v4334 = vadd.f32 %v4320, %v4333
        %v4335 = vpop.f32.mrf.mxu0
        %v4336 = vadd.f32 %v4322, %v4335
        %4337 = vdwg.mxu0
        %4338 = vmatpush.bf16.msra.mxu0 %v4017
        %4339 = vmatpush.bf16.msra.mxu0 %v4016
        %4340 = vmatpush.bf16.msra.mxu0 %v4015
        %4341 = vmatpush.bf16.msra.mxu0 %v4014
        %4342 = vmatpush.bf16.msra.mxu0 %v4013
        %4343 = vmatpush.bf16.msra.mxu0 %v4012
        %4344 = vmatpush.bf16.msra.mxu0 %v4011
        %4345 = vmatpush.bf16.msra.mxu0 %v4010
        %4346 = vmatmul.bf16.gmra.mxu0 %v3138
        %v4347 = vpop.f32.mrf.mxu0
        %v4348 = vadd.f32 %v4334, %v4347
        %v4349 = vpop.f32.mrf.mxu0
        %v4350 = vadd.f32 %v4336, %v4349
        %4351 = vdwg.mxu0
        %4352 = vmatpush.bf16.msra.mxu0 %v4025
        %4353 = vmatpush.bf16.msra.mxu0 %v4024
        %4354 = vmatpush.bf16.msra.mxu0 %v4023
        %4355 = vmatpush.bf16.msra.mxu0 %v4022
        %4356 = vmatpush.bf16.msra.mxu0 %v4021
        %4357 = vmatpush.bf16.msra.mxu0 %v4020
        %4358 = vmatpush.bf16.msra.mxu0 %v4019
        %4359 = vmatpush.bf16.msra.mxu0 %v4018
        %4360 = vmatmul.bf16.gmra.mxu0 %v3139
        %v4361 = vpop.f32.mrf.mxu0
        %v4362 = vadd.f32 %v4348, %v4361
        %v4363 = vpop.f32.mrf.mxu0
        %v4364 = vadd.f32 %v4350, %v4363
        %4365 = vdwg.mxu0
        %4366 = vmatpush.bf16.msra.mxu0 %v4033
        %4367 = vmatpush.bf16.msra.mxu0 %v4032
        %4368 = vmatpush.bf16.msra.mxu0 %v4031
        %4369 = vmatpush.bf16.msra.mxu0 %v4030
        %4370 = vmatpush.bf16.msra.mxu0 %v4029
        %4371 = vmatpush.bf16.msra.mxu0 %v4028
        %4372 = vmatpush.bf16.msra.mxu0 %v4027
        %4373 = vmatpush.bf16.msra.mxu0 %v4026
        %4374 = vmatmul.bf16.gmra.mxu0 %v3140
        %v4375 = vpop.f32.mrf.mxu0
        %v4376 = vadd.f32 %v4362, %v4375
        %v4377 = vpop.f32.mrf.mxu0
        %v4378 = vadd.f32 %v4364, %v4377
        %4379 = vdwg.mxu0
        %4380 = vmatpush.bf16.msra.mxu0 %v4041
        %4381 = vmatpush.bf16.msra.mxu0 %v4040
        %4382 = vmatpush.bf16.msra.mxu0 %v4039
        %4383 = vmatpush.bf16.msra.mxu0 %v4038
        %4384 = vmatpush.bf16.msra.mxu0 %v4037
        %4385 = vmatpush.bf16.msra.mxu0 %v4036
        %4386 = vmatpush.bf16.msra.mxu0 %v4035
        %4387 = vmatpush.bf16.msra.mxu0 %v4034
        %4388 = vmatmul.bf16.gmra.mxu0 %v3141
        %v4389 = vpop.f32.mrf.mxu0
        %v4390 = vadd.f32 %v4376, %v4389
        %v4391 = vpop.f32.mrf.mxu0
        %v4392 = vadd.f32 %v4378, %v4391
        %4393 = vdwg.mxu0
        %v4394 = vadd.f32 %v2063, %v4390
        %v4395 = vadd.f32 %v2064, %v4392
        %4396 = vadd.xlane.f32.xlu0 %v4394
        %v4397 = vpop.xlane.xlu0 %4396
        %4398 = vadd.xlane.f32.xlu0 %v4395
        %v4399 = vpop.xlane.xlu0 %4398
        %v4400 = vmul.f32 %v4397, %v2012
        %v4401 = vmul.f32 %v4399, %v2012
        %v4402 = vmul.f32 %v4394, %v4394
        %v4403 = vmul.f32 %v4395, %v4395
        %4404 = vadd.xlane.f32.xlu0 %v4402
        %v4405 = vpop.xlane.xlu0 %4404
        %4406 = vadd.xlane.f32.xlu0 %v4403
        %v4407 = vpop.xlane.xlu0 %4406
        %v4408 = vmul.f32 %v4405, %v2012
        %v4409 = vmul.f32 %v4407, %v2012
        %v4410 = vmul.f32 %v4400, %v4400
        %v4411 = vmul.f32 %v4401, %v4401
        %v4412 = vsub.f32 %v4408, %v4410
        %v4413 = vsub.f32 %v4409, %v4411
        %v4414 = vsub.f32 %v4394, %v4400
        %v4415 = vsub.f32 %v4395, %v4401
        %v4416 = vadd.f32 %v4412, 1e-05
        %v4417 = vadd.f32 %v4413, 1e-05
        %v4418 = vrsqrt.pop %v4416
        %v4419 = vmul.f32 %v4418, %v4416
        %v4420 = vmul.f32 %v4419, %v4418
        %v4421 = vmul.f32 0.5, %v4420
        %v4422 = vsub.f32 1.5, %v4421
        %v4423 = vmul.f32 %v4418, %v4422
        %vm4424 = vweird.f32 %v4416
        %vm4425 = vweird.f32 %v4418
        %vm4426 = vmor %vm4424, %vm4425
        %v4427 = vsel %vm4426, %v4418, %v4423
        %v4428 = vrsqrt.pop %v4417
        %v4429 = vmul.f32 %v4428, %v4417
        %v4430 = vmul.f32 %v4429, %v4428
        %v4431 = vmul.f32 0.5, %v4430
        %v4432 = vsub.f32 1.5, %v4431
        %v4433 = vmul.f32 %v4428, %v4432
        %vm4434 = vweird.f32 %v4417
        %vm4435 = vweird.f32 %v4428
        %vm4436 = vmor %vm4434, %vm4435
        %v4437 = vsel %vm4436, %v4428, %v4433
        %v4438 = vmul.f32 %v4414, %v4427
        %v4439 = vmul.f32 %v4415, %v4437
        %v4440 = vld [vmem:[%s1130] sm:$0x1]
        %v4442 = vperm.slane %v4440, 0
        %v4444 = vmul.f32 %v4438, %v4442
        %v4445 = vmul.f32 %v4439, %v4442
        %v4446 = vld [vmem:[%s1139] sm:$0x1]
        %v4448 = vperm.slane %v4446, 0
        %v4450 = vadd.f32 %v4444, %v4448
        %v4451 = vadd.f32 %v4445, %v4448
        %4452 = vst [vmem:[#allocation2] sm:$0xff] %v4450
        %4453 = vst [vmem:[#allocation2 + $0x8] sm:$0xff] %v4451
        %p4454 = scmp.eq.s32.totalorder %s60, 1
        // Predicated region
        $region169: #{_rem_forward.4} parent=95 // pred_check
          %p4455 = pneg %p4454
        $region170: #{_rem_forward.4} parent=95 // pred_check_branch
          %4457 = sbr.rel (%p4455) target = $region172
        $region171: #{_rem_forward.4} parent=95 // pred_region
          %4458 = vst [vmem:[%s1275] sm:$0xff] %v4450
          %4459 = vst [vmem:[%s1275 + $0x8] sm:$0xff] %v4451
        $region172: #{_rem_forward.4} parent=95 // pred_fallthru
          _
        %p4460 = scmp.lt.s32.totalorder %s59, 1
        %s4461 = scalar_select %p4460, %s59, 1
        %s4462 = smul.addr %s4461, 2
        %s4463 = smul.addr %s4462, 8
        %s4464 = scalar_lea.vmem %s19, %s4463
        // Predicated region
        $region173: #{_rem_forward.4} parent=95 // pred_check
          %p4465 = pneg %p601
        $region174: #{_rem_forward.4} parent=95 // pred_check_branch
          %4467 = sbr.rel (%p4465) target = $region176
        $region175: #{_rem_forward.4} parent=95 // pred_region
          _
        $region176: #{_rem_forward.4} parent=95 // pred_fallthru
          _
      $region96: #{_rem_forward.4} parent=5 // pred_fallthru
        _
      %p4468 = scmp.le.s32.totalorder 2, %s50
      // Predicated region
      $region177: #{_rem_forward.4} parent=5 // pred_check
        %p4469 = pneg %p4468
      $region178: #{_rem_forward.4} parent=5 // pred_check_branch
        %4471 = sbr.rel (%p4469) target = $region180
      $region179: #{_rem_forward.4} parent=5 // pred_region
        %s4472 = ssub.s32 %s50, 2
        // Predicated region
        $region181: #{_rem_forward.4} parent=179 // pred_check
          %p4473 = pneg %p607
        $region182: #{_rem_forward.4} parent=179 // pred_check_branch
          %4475 = sbr.rel (%p4473) target = $region184
        $region183: #{_rem_forward.4} parent=179 // pred_region
          %p4476 = scmp.lt.s32.totalorder %s61, 1
          %s4477 = scalar_select %p4476, %s61, 1
          %s4478 = smul.addr %s4477, 2
          %s4479 = smul.addr %s4478, 8
          %s4480 = scalar_lea.vmem %s19, %s4479
        $region184: #{_rem_forward.4} parent=179 // pred_fallthru
          _
      $region180: #{_rem_forward.4} parent=5 // pred_fallthru
        _
    $region6: #{_rem_forward.4} parent=1 // loop_footer
      %s54 = sadd.s32 1, %s50
    $region7: #{_rem_forward.4} parent=1 // loop_footer_branch
      %49 = sbr.rel target = $region3
    $region8: #{_rem_forward.4} parent=1 // loop_exit
      _
    %4481 = vsyncpa [#allocation4], 1
    %s4482 = scalar_lea.sflag [#allocation4], 1
    %4483 = vsyncpa %s4482, 1
    %4484 = vsyncpa [#allocation6], 1
    %s4485 = scalar_lea.sflag [#allocation6], 1
    %4486 = vsyncpa %s4485, 1
    %4487 = vsyncpa [#allocation9], 1
    %s4488 = scalar_lea.sflag [#allocation9], 1
    %4489 = vsyncpa %s4488, 1
    %4490 = vsyncpa [#allocation12], 1
    %s4491 = scalar_lea.sflag [#allocation12], 1
    %4492 = vsyncpa %s4491, 1
    %4493 = vsyncpa [#allocation15], 1
    %s4494 = scalar_lea.sflag [#allocation15], 1
    %4495 = vsyncpa %s4494, 1
    %4496 = vsyncpa [#allocation18], 1
    %s4497 = scalar_lea.sflag [#allocation18], 1
    %4498 = vsyncpa %s4497, 1
    %4499 = vsyncpa [#allocation21], 1
    %s4500 = scalar_lea.sflag [#allocation21], 1
    %4501 = vsyncpa %s4500, 1
    %4502 = vsyncpa [#allocation24], 1
    %s4503 = scalar_lea.sflag [#allocation24], 1
    %4504 = vsyncpa %s4503, 1
    %4505 = vsyncpa [#allocation27], 1
    %s4506 = scalar_lea.sflag [#allocation27], 1
    %4507 = vsyncpa %s4506, 1

</llo_original>
